<compile_context>
chip_gen: v6e
topology: v6e:2x2x1
jax: 0.10.0
libtpu: 0.0.40
codegen_flags: <defaults>
</compile_context>

<pallas_src>
import functools

import jax
import jax.numpy as jnp
from jax import lax
from jax.experimental import pallas as pl
from jax.experimental.pallas import tpu as pltpu

FP16_MIN = -65504.0
FP16_MAX = 65504.0
SQRT_HALF = 0.7071067811865476


def _tpu_generation():
    try:
        kind = jax.devices()[0].device_kind.lower()
    except Exception:
        return 0
    for g in (7, 6, 5):
        if f"v{g}" in kind:
            return g
    return 0


_GEN = _tpu_generation()
if _GEN in (5, 6):
    # v5e / v6e: 128 MiB physical VMEM -> bigger row tiles + higher scoped limit.
    TM_TARGET = 512
    VMEM_LIMIT_BYTES = 96 * 1024 * 1024
else:
    # v7x (64 MiB VMEM) and unknown targets: conservative settings.
    TM_TARGET = 256
    VMEM_LIMIT_BYTES = 48 * 1024 * 1024

VOCAB_TILE_MAX = 2048   # tile the logits vocab axis beyond this width


# ----------------------------------------------------------------------------
# small in-kernel helpers
# ----------------------------------------------------------------------------
def _ln(x, g, b, eps):
    mean = jnp.mean(x, axis=-1, keepdims=True)
    var = jnp.mean(jnp.square(x - mean), axis=-1, keepdims=True)
    return (x - mean) * lax.rsqrt(var + eps) * g + b


def _gelu(y):
    # exact (erf-based) GELU, matching torch.nn.GELU default
    return 0.5 * y * (1.0 + lax.erf(y * SQRT_HALF))


def _bf16(x):
    return x.astype(jnp.bfloat16)


# ----------------------------------------------------------------------------
# Pallas kernels (each fuses an entire logical block)
# ----------------------------------------------------------------------------
def _first_layer_kernel(x_ref, g1_ref, b1_ref, w1_ref, bb1_ref,
                        g2_ref, b2_ref, w2_ref, bb2_ref, o_ref, *, eps):
    # LN(1e-12) -> Linear -> GELU -> LN(1e-12) -> Linear   (bf16 MXU, f32 acc)
    x = x_ref[...].astype(jnp.float32)
    h = _ln(x, g1_ref[...], b1_ref[...], eps)
    h = jnp.dot(_bf16(h), w1_ref[...], preferred_element_type=jnp.float32) + bb1_ref[...]
    h = _gelu(h)
    h = _ln(h, g2_ref[...], b2_ref[...], eps)
    o_ref[...] = jnp.dot(_bf16(h), w2_ref[...],
                         preferred_element_type=jnp.float32) + bb2_ref[...]


def _attn_layer_kernel(x_ref, g_ref, b_ref, wqkv_ref, bqkv_ref, wo_ref, bo_ref,
                       o_ref, *, heads, dh, eps):
    # One batch element per grid step:
    #   clamp -> LN -> fused QKV -> per-head attention -> out-proj accumulate
    #   -> +bias -> +residual(un-clamped x) -> clamp
    # QKV never leaves VMEM.  No concat: wo is applied per head and accumulated.
    # TODO(synk): head packing / q-row tiling for better MXU fill and more grid
    #             steps (review items 4/10) not implemented; per-head matmuls
    #             are narrow when dh < 128.
    D = heads * dh
    x = x_ref[0].astype(jnp.float32)                         # (N, D) residual
    xn = _ln(jnp.clip(x, FP16_MIN, FP16_MAX), g_ref[...], b_ref[...], eps)
    qkv = jnp.dot(_bf16(xn), wqkv_ref[...],
                  preferred_element_type=jnp.float32) + bqkv_ref[...]   # (N, 3D)
    q = qkv[:, :D]
    k = qkv[:, D:2 * D]
    v = qkv[:, 2 * D:]
    wo = wo_ref[...]                                         # (D, D) bf16
    n = x.shape[0]
    y = jnp.zeros((n, D), jnp.float32)
    for h in range(heads):
        lo, hi = h * dh, (h + 1) * dh
        # 1/sqrt(dh) is folded into the Q projection weights.
        s = lax.dot_general(_bf16(q[:, lo:hi]), _bf16(k[:, lo:hi]),
                            (((1,), (1,)), ((), ())),
                            preferred_element_type=jnp.float32)          # (N, N)
        s = s - jnp.max(s, axis=-1, keepdims=True)
        p = jnp.exp(s)
        p = p * pl.reciprocal(jnp.sum(p, axis=-1, keepdims=True), approx=True)
        o_h = jnp.dot(_bf16(p), _bf16(v[:, lo:hi]),
                      preferred_element_type=jnp.float32)                 # (N, dh)
        y = y + jnp.dot(_bf16(o_h), wo[lo:hi, :],
                        preferred_element_type=jnp.float32)              # (N, D)
    o_ref[0] = jnp.clip(y + bo_ref[...] + x, FP16_MIN, FP16_MAX)


def _ln_mlp_resid_kernel(x_ref, g_ref, b_ref, w1_ref, b1_ref, w2_ref, b2_ref,
                         o_ref, *, eps):
    # PreNorm(FeedForward) + residual + clamp, fully fused (bf16 MXU, f32 acc).
    x = x_ref[...].astype(jnp.float32)
    h = _ln(jnp.clip(x, FP16_MIN, FP16_MAX), g_ref[...], b_ref[...], eps)
    h = jnp.dot(_bf16(h), w1_ref[...], preferred_element_type=jnp.float32) + b1_ref[...]
    h = _gelu(h)
    y = jnp.dot(_bf16(h), w2_ref[...], preferred_element_type=jnp.float32) + b2_ref[...]
    o_ref[...] = jnp.clip(y + x, FP16_MIN, FP16_MAX)


def _last_logits_kernel(x_ref, bias_ref, g1_ref, b1_ref, w_ref, bw_ref,
                        g2_ref, b2_ref, emb_ref, o_ref, h_sc, *, eps):
    # last_layer (LN -> Linear -> GELU -> LN) cached in VMEM scratch at the
    # first vocab tile, then logits = h @ emb_tile^T + bias_tile per vocab tile.
    @pl.when(pl.program_id(2) == 0)
    def _():
        x = x_ref[0].astype(jnp.float32)
        h = _ln(x, g1_ref[...], b1_ref[...], eps)
        h = jnp.dot(_bf16(h), w_ref[...],
                    preferred_element_type=jnp.float32) + bw_ref[...]
        h = _gelu(h)
        h_sc[...] = _ln(h, g2_ref[...], b2_ref[...], eps)

    logits = lax.dot_general(_bf16(h_sc[...]), emb_ref[...],
                             (((1,), (1,)), ((), ())),
                             preferred_element_type=jnp.float32)
    o_ref[0] = logits + bias_ref[...]


# ----------------------------------------------------------------------------
# Pallas wrappers
# ----------------------------------------------------------------------------
def _round_up(x, m):
    return ((x + m - 1) // m) * m


def _pick_tm(M, target=None):
    target = TM_TARGET if target is None else target
    if M <= target:
        return _round_up(M, 8)   # activations stay f32 -> 8-row sublane padding
    return target


def _pad_rows(a, rows):
    M = a.shape[0]
    if rows == M:
        return a
    return jnp.pad(a, ((0, rows - M), (0, 0)))


def _run_rowwise(kernel, row_inputs, full_inputs, out_width):
    """Run `kernel` over row tiles of 2-D `row_inputs` (weights loaded whole).

    Kernel signature: (*row_refs, *full_refs, out_ref).
    NOTE: constant-index weight specs would ideally be single-buffered
    (pl.Buffered(1)) on v7x to halve their VMEM footprint (review item 5).
    """
    M = row_inputs[0].shape[0]
    tm = _pick_tm(M)
    Mp = _round_up(M, tm)
    row_inputs = [_pad_rows(a, Mp) for a in row_inputs]
    in_specs = (
        [pl.BlockSpec((tm, a.shape[1]), lambda i: (i, 0)) for a in row_inputs]
        + [pl.BlockSpec(a.shape, lambda i: (0, 0)) for a in full_inputs]
    )
    out = pl.pallas_call(
        kernel,
        out_shape=jax.ShapeDtypeStruct((Mp, out_width), jnp.float32),
        grid=(Mp // tm,),
        in_specs=in_specs,
        out_specs=pl.BlockSpec((tm, out_width), lambda i: (i, 0)),
        compiler_params=pltpu.CompilerParams(
            # On v7x, CORE_PARALLEL / pl.core_map would guarantee dual-TC
            # sharding of this axis (review item 9).
            dimension_semantics=("parallel",),
            vmem_limit_bytes=VMEM_LIMIT_BYTES,
        ),
    )(*row_inputs, *full_inputs)
    return out[:M]


def first_layer(x2d, g1, b1, w1, bb1, g2, b2, w2, bb2):
    kernel = functools.partial(_first_layer_kernel, eps=1e-12)
    return _run_rowwise(
        kernel, [x2d],
        [g1.reshape(1, -1), b1.reshape(1, -1), w1, bb1.reshape(1, -1),
         g2.reshape(1, -1), b2.reshape(1, -1), w2, bb2.reshape(1, -1)],
        out_width=w2.shape[1])


def ln_mlp_resid(x2d, g, b, w1, b1v, w2, b2v):
    kernel = functools.partial(_ln_mlp_resid_kernel, eps=1e-5)
    return _run_rowwise(
        kernel, [x2d],
        [g.reshape(1, -1), b.reshape(1, -1), w1, b1v.reshape(1, -1),
         w2, b2v.reshape(1, -1)],
        out_width=w2.shape[1])


def attn_block(x3d, g, b, w_qkv, b_qkv, wo, bo, heads):
    # x3d: (B, N, D) f32 layer input (pre-clamp residual).
    B, N, D = x3d.shape
    dh = D // heads
    kernel = functools.partial(_attn_layer_kernel, heads=heads, dh=dh, eps=1e-5)
    return pl.pallas_call(
        kernel,
        out_shape=jax.ShapeDtypeStruct((B, N, D), jnp.float32),
        grid=(B,),
        in_specs=[
            pl.BlockSpec((1, N, D), lambda i: (i, 0, 0)),
            pl.BlockSpec((1, D), lambda i: (0, 0)),
            pl.BlockSpec((1, D), lambda i: (0, 0)),
            pl.BlockSpec((D, 3 * D), lambda i: (0, 0)),
            pl.BlockSpec((1, 3 * D), lambda i: (0, 0)),
            pl.BlockSpec((D, D), lambda i: (0, 0)),
            pl.BlockSpec((1, D), lambda i: (0, 0)),
        ],
        out_specs=pl.BlockSpec((1, N, D), lambda i: (i, 0, 0)),
        compiler_params=pltpu.CompilerParams(
            dimension_semantics=("parallel",),
            vmem_limit_bytes=VMEM_LIMIT_BYTES,
        ),
    )(x3d, g.reshape(1, -1), b.reshape(1, -1), w_qkv, b_qkv.reshape(1, -1),
      wo, bo.reshape(1, -1))


def last_layer_logits(x3d, bias, g1, b1, w, bw, g2, b2, emb_bf16):
    # x3d: (B, N, hidden) f32; bias: (N, V) f32 (shared across batch via
    # index_map, never tiled/materialized); emb_bf16: (V, code_dim) bf16.
    B, N, Dh = x3d.shape
    code_dim = w.shape[1]
    V = emb_bf16.shape[0]

    tn = _pick_tm(N)
    Np = _round_up(N, tn)
    Vt = min(_round_up(V, 128), VOCAB_TILE_MAX)
    Vp = _round_up(V, Vt)

    if Np != N:
        x3d = jnp.pad(x3d, ((0, 0), (0, Np - N), (0, 0)))
    bias_p = bias
    if (Np != N) or (Vp != V):
        bias_p = jnp.pad(bias, ((0, Np - N), (0, Vp - V)))
    emb_p = emb_bf16 if Vp == V else jnp.pad(emb_bf16, ((0, Vp - V), (0, 0)))

    kernel = functools.partial(_last_logits_kernel, eps=1e-12)
    out = pl.pallas_call(
        kernel,
        out_shape=jax.ShapeDtypeStruct((B, Np, Vp), jnp.float32),
        grid=(B, Np // tn, Vp // Vt),
        in_specs=[
            pl.BlockSpec((1, tn, Dh), lambda bi, j, v: (bi, j, 0)),
            pl.BlockSpec((tn, Vt), lambda bi, j, v: (j, v)),        # bias reused over batch
            pl.BlockSpec((1, Dh), lambda bi, j, v: (0, 0)),
            pl.BlockSpec((1, Dh), lambda bi, j, v: (0, 0)),
            pl.BlockSpec((Dh, code_dim), lambda bi, j, v: (0, 0)),
            pl.BlockSpec((1, code_dim), lambda bi, j, v: (0, 0)),
            pl.BlockSpec((1, code_dim), lambda bi, j, v: (0, 0)),
            pl.BlockSpec((1, code_dim), lambda bi, j, v: (0, 0)),
            pl.BlockSpec((Vt, code_dim), lambda bi, j, v: (v, 0)),  # vocab-tiled embedding
        ],
        out_specs=pl.BlockSpec((1, tn, Vt), lambda bi, j, v: (bi, j, v)),
        scratch_shapes=[pltpu.VMEM((tn, code_dim), jnp.float32)],
        compiler_params=pltpu.CompilerParams(
            dimension_semantics=("parallel", "parallel", "arbitrary"),
            vmem_limit_bytes=VMEM_LIMIT_BYTES,
        ),
    )(x3d, bias_p, g1.reshape(1, -1), b1.reshape(1, -1), w, bw.reshape(1, -1),
      g2.reshape(1, -1), b2.reshape(1, -1), emb_p)
    return out[:, :N, :V]


# ----------------------------------------------------------------------------
# Parameter construction (deterministic, synthetic; weights stored as bf16)
# ----------------------------------------------------------------------------
def init_params(key, *, code_dim, hidden_dim, codebook_size, depth, heads,
                mlp_dim, tokens_per_sample):
    keys = iter(jax.random.split(key, 16 + 8 * depth))

    def dense(kin, kout):
        w = 0.02 * jax.random.normal(next(keys), (kin, kout), jnp.float32)
        return w.astype(jnp.bfloat16), jnp.zeros((kout,), jnp.float32)

    dh = hidden_dim // heads
    scale = 1.0 / (dh ** 0.5)

    p = {}
    # embedding tables stay f32 (used by the gather); a bf16 copy feeds the
    # logits matmul.
    p["codebook"] = jax.random.normal(next(keys), (codebook_size, code_dim), jnp.float32)
    p["mask_token"] = jax.random.normal(next(keys), (1, code_dim), jnp.float32)
    p["empty_token"] = jax.random.normal(next(keys), (1, code_dim), jnp.float32)
    # non-learned pos_emb path in the reference module ends up as zeros
    p["pos_emb"] = jnp.zeros((1, tokens_per_sample, code_dim), jnp.float32)

    p["fl_ln1"] = (jnp.ones((code_dim,), jnp.float32), jnp.zeros((code_dim,), jnp.float32))
    p["fl_lin1"] = dense(code_dim, hidden_dim)
    p["fl_ln2"] = (jnp.ones((hidden_dim,), jnp.float32), jnp.zeros((hidden_dim,), jnp.float32))
    p["fl_lin2"] = dense(hidden_dim, hidden_dim)

    layers = []
    for _ in range(depth):
        wq = 0.02 * jax.random.normal(next(keys), (hidden_dim, hidden_dim), jnp.float32)
        wk = 0.02 * jax.random.normal(next(keys), (hidden_dim, hidden_dim), jnp.float32)
        wv = 0.02 * jax.random.normal(next(keys), (hidden_dim, hidden_dim), jnp.float32)
        # Fuse Q|K|V into one lane-dense projection; fold 1/sqrt(dh) into Q.
        # (If Q had a nonzero bias it would be scaled the same way.)
        w_qkv = jnp.concatenate([wq * scale, wk, wv], axis=1).astype(jnp.bfloat16)
        b_qkv = jnp.zeros((3 * hidden_dim,), jnp.float32)
        layers.append({
            "ln1": (jnp.ones((hidden_dim,), jnp.float32), jnp.zeros((hidden_dim,), jnp.float32)),
            "wqkv": (w_qkv, b_qkv),
            "wo": dense(hidden_dim, hidden_dim),
            "ln2": (jnp.ones((hidden_dim,), jnp.float32), jnp.zeros((hidden_dim,), jnp.float32)),
            "ff1": dense(hidden_dim, mlp_dim),
            "ff2": dense(mlp_dim, hidden_dim),
        })
    p["layers"] = layers

    p["ll_ln1"] = (jnp.ones((hidden_dim,), jnp.float32), jnp.zeros((hidden_dim,), jnp.float32))
    p["ll_lin"] = dense(hidden_dim, code_dim)
    p["ll_ln2"] = (jnp.ones((code_dim,), jnp.float32), jnp.zeros((code_dim,), jnp.float32))

    p["bias"] = jnp.zeros((tokens_per_sample, codebook_size + 2), jnp.float32)
    return p


# ----------------------------------------------------------------------------
# Forward pass (embedding/reshape glue in XLA, hot path in fused Pallas kernels)
# ----------------------------------------------------------------------------
def mask_transformer_forward(params, img_token, *, heads):
    B = img_token.shape[0]
    inp = img_token.reshape(B, -1)                       # (B, N)
    N = inp.shape[1]

    emb_w = jnp.concatenate(
        [params["codebook"], params["mask_token"], params["empty_token"]], axis=0
    )                                                    # (V, code_dim) f32
    tok = jnp.take(emb_w, inp, axis=0)                   # (B, N, code_dim)
    x = tok + params["pos_emb"]                          # pos_emb is zeros

    code_dim = x.shape[-1]
    x = x.reshape(B * N, code_dim)

    # --- first_layer (one fused kernel) --------------------------------------
    g1, b1 = params["fl_ln1"]
    w1, bb1 = params["fl_lin1"]
    g2, b2 = params["fl_ln2"]
    w2, bb2 = params["fl_lin2"]
    x = first_layer(x, g1, b1, w1, bb1, g2, b2, w2, bb2)

    hidden_dim = x.shape[-1]

    # --- transformer encoder --------------------------------------------------
    for layer in params["layers"]:
        # One kernel: clamp+LN+QKV+attention+out-proj+residual+clamp.
        g, b = layer["ln1"]
        w_qkv, b_qkv = layer["wqkv"]
        wo, bo = layer["wo"]
        x = attn_block(x.reshape(B, N, hidden_dim), g, b, w_qkv, b_qkv,
                       wo, bo, heads).reshape(B * N, hidden_dim)

        # One kernel: clamp+LN+ff1+GELU+ff2+residual+clamp.
        g, b = layer["ln2"]
        w1f, b1f = layer["ff1"]
        w2f, b2f = layer["ff2"]
        x = ln_mlp_resid(x, g, b, w1f, b1f, w2f, b2f)

    # --- last_layer + logits head (fused; vocab-tiled, bias shared over batch)
    g1, b1 = params["ll_ln1"]
    wl, bbl = params["ll_lin"]
    g2, b2 = params["ll_ln2"]
    logits = last_layer_logits(x.reshape(B, N, hidden_dim), params["bias"],
                               g1, b1, wl, bbl, g2, b2,
                               emb_w.astype(jnp.bfloat16))
    return logits                                        # (B, N, V) f32


# ----------------------------------------------------------------------------
if __name__ == "__main__":
    # Small shapes consistent with the module's forward; feature dims chosen
    # as 128 so every kernel's output is lane dense (review item on vst.msk).
    CODE_DIM = 128
    HIDDEN_DIM = 128
    CODEBOOK_SIZE = 126          # -> vocab = codebook_size + 2 = 128
    DEPTH = 2
    HEADS = 4                    # dh = 32
    MLP_DIM = 256
    TOKENS = 8
    BATCH = 2

    key = jax.random.PRNGKey(0)
    pkey, dkey = jax.random.split(key)

    params = init_params(
        pkey,
        code_dim=CODE_DIM,
        hidden_dim=HIDDEN_DIM,
        codebook_size=CODEBOOK_SIZE,
        depth=DEPTH,
        heads=HEADS,
        mlp_dim=MLP_DIM,
        tokens_per_sample=TOKENS,
    )

    img_token = jax.random.randint(
        dkey, (BATCH, TOKENS), 0, CODEBOOK_SIZE + 2, dtype=jnp.int32
    )

    fwd = jax.jit(functools.partial(mask_transformer_forward, heads=HEADS))
    logit = fwd(params, img_token)
    logit = jax.block_until_ready(logit)

    assert logit.shape == (BATCH, TOKENS, CODEBOOK_SIZE + 2)
    assert logit.dtype == jnp.float32
    assert bool(jnp.all(jnp.isfinite(logit)))
    print("KERNEL_OK")
</pallas_src>

<mosaic_0001>
module attributes {stable_mosaic.version = 11 : i64} {
  func.func @_first_layer_kernel(%arg0: i32, %arg1: memref<16x128xf32, #tpu.memory_space<vmem>>, %arg2: memref<1x128xf32, #tpu.memory_space<vmem>>, %arg3: memref<1x128xf32, #tpu.memory_space<vmem>>, %arg4: memref<128x128xbf16, #tpu.memory_space<vmem>>, %arg5: memref<1x128xf32, #tpu.memory_space<vmem>>, %arg6: memref<1x128xf32, #tpu.memory_space<vmem>>, %arg7: memref<1x128xf32, #tpu.memory_space<vmem>>, %arg8: memref<128x128xbf16, #tpu.memory_space<vmem>>, %arg9: memref<1x128xf32, #tpu.memory_space<vmem>>, %arg10: memref<16x128xf32, #tpu.memory_space<vmem>>) attributes {dimension_semantics = [#tpu.dimension_semantics<parallel>], iteration_bounds = array<i64: 1>, scalar_prefetch = 0 : i64, scratch_operands = 0 : i64, tpu.core_type = #tpu.core_type<tc>, window_params = [{transform_indices = @transform_0, window_bounds = array<i64: 16, 128>}, {pipeline_mode = #tpu.pipeline_mode<synchronous>, transform_indices = @transform_1, window_bounds = array<i64: 1, 128>}, {pipeline_mode = #tpu.pipeline_mode<synchronous>, transform_indices = @transform_2, window_bounds = array<i64: 1, 128>}, {pipeline_mode = #tpu.pipeline_mode<synchronous>, transform_indices = @transform_3, window_bounds = array<i64: 128, 128>}, {pipeline_mode = #tpu.pipeline_mode<synchronous>, transform_indices = @transform_4, window_bounds = array<i64: 1, 128>}, {pipeline_mode = #tpu.pipeline_mode<synchronous>, transform_indices = @transform_5, window_bounds = array<i64: 1, 128>}, {pipeline_mode = #tpu.pipeline_mode<synchronous>, transform_indices = @transform_6, window_bounds = array<i64: 1, 128>}, {pipeline_mode = #tpu.pipeline_mode<synchronous>, transform_indices = @transform_7, window_bounds = array<i64: 128, 128>}, {pipeline_mode = #tpu.pipeline_mode<synchronous>, transform_indices = @transform_8, window_bounds = array<i64: 1, 128>}, {transform_indices = @transform_9, window_bounds = array<i64: 16, 128>}]} {
    %c0 = arith.constant 0 : index
    %c0_0 = arith.constant 0 : index
    %0 = vector.load %arg1[%c0, %c0_0] : memref<16x128xf32, #tpu.memory_space<vmem>>, vector<16x128xf32>
    %c0_1 = arith.constant 0 : index
    %c0_2 = arith.constant 0 : index
    %1 = vector.load %arg2[%c0_1, %c0_2] : memref<1x128xf32, #tpu.memory_space<vmem>>, vector<1x128xf32>
    %c0_3 = arith.constant 0 : index
    %c0_4 = arith.constant 0 : index
    %2 = vector.load %arg3[%c0_3, %c0_4] : memref<1x128xf32, #tpu.memory_space<vmem>>, vector<1x128xf32>
    %cst = arith.constant dense<0.000000e+00> : vector<16xf32>
    %3 = vector.multi_reduction <add>, %0, %cst [1] : vector<16x128xf32> to vector<16xf32>
    %4 = vector.shape_cast %3 : vector<16xf32> to vector<16x1xf32>
    %cst_5 = arith.constant 1.280000e+02 : f32
    %5 = vector.broadcast %cst_5 : f32 to vector<16x1xf32>
    %6 = arith.divf %4, %5 : vector<16x1xf32>
    %7 = vector.broadcast %6 : vector<16x1xf32> to vector<16x128xf32>
    %8 = arith.subf %0, %7 : vector<16x128xf32>
    %9 = arith.mulf %8, %8 : vector<16x128xf32>
    %cst_6 = arith.constant dense<0.000000e+00> : vector<16xf32>
    %10 = vector.multi_reduction <add>, %9, %cst_6 [1] : vector<16x128xf32> to vector<16xf32>
    %11 = vector.shape_cast %10 : vector<16xf32> to vector<16x1xf32>
    %cst_7 = arith.constant 1.280000e+02 : f32
    %12 = vector.broadcast %cst_7 : f32 to vector<16x1xf32>
    %13 = arith.divf %11, %12 : vector<16x1xf32>
    %14 = vector.broadcast %6 : vector<16x1xf32> to vector<16x128xf32>
    %15 = arith.subf %0, %14 : vector<16x128xf32>
    %cst_8 = arith.constant 9.99999996E-13 : f32
    %16 = vector.broadcast %cst_8 : f32 to vector<16x1xf32>
    %17 = arith.addf %13, %16 : vector<16x1xf32>
    %18 = math.rsqrt %17 : vector<16x1xf32>
    %19 = vector.broadcast %18 : vector<16x1xf32> to vector<16x128xf32>
    %20 = arith.mulf %15, %19 : vector<16x128xf32>
    %21 = vector.broadcast %1 : vector<1x128xf32> to vector<16x128xf32>
    %22 = arith.mulf %20, %21 : vector<16x128xf32>
    %23 = vector.broadcast %2 : vector<1x128xf32> to vector<16x128xf32>
    %24 = arith.addf %22, %23 : vector<16x128xf32>
    %25 = arith.truncf %24 : vector<16x128xf32> to vector<16x128xbf16>
    %c0_9 = arith.constant 0 : index
    %c0_10 = arith.constant 0 : index
    %26 = vector.load %arg4[%c0_9, %c0_10] : memref<128x128xbf16, #tpu.memory_space<vmem>>, vector<128x128xbf16>
    %cst_11 = arith.constant dense<0.000000e+00> : vector<16x128xf32>
    %27 = tpu.matmul %25, %26, %cst_11 {dimension_numbers = #tpu.dot_dimension_numbers<[1], [0], [0], [1], [0, 0, 1, 1], [], []>} : vector<16x128xbf16>, vector<128x128xbf16>, vector<16x128xf32> -> vector<16x128xf32>
    %c0_12 = arith.constant 0 : index
    %c0_13 = arith.constant 0 : index
    %28 = vector.load %arg5[%c0_12, %c0_13] : memref<1x128xf32, #tpu.memory_space<vmem>>, vector<1x128xf32>
    %29 = vector.broadcast %28 : vector<1x128xf32> to vector<16x128xf32>
    %30 = arith.addf %27, %29 : vector<16x128xf32>
    %cst_14 = arith.constant 5.000000e-01 : f32
    %31 = vector.broadcast %cst_14 : f32 to vector<16x128xf32>
    %32 = arith.mulf %31, %30 : vector<16x128xf32>
    %cst_15 = arith.constant 0.707106769 : f32
    %33 = vector.broadcast %cst_15 : f32 to vector<16x128xf32>
    %34 = arith.mulf %30, %33 : vector<16x128xf32>
    %35 = math.erf %34 : vector<16x128xf32>
    %cst_16 = arith.constant 1.000000e+00 : f32
    %36 = vector.broadcast %cst_16 : f32 to vector<16x128xf32>
    %37 = arith.addf %36, %35 : vector<16x128xf32>
    %38 = arith.mulf %32, %37 : vector<16x128xf32>
    %c0_17 = arith.constant 0 : index
    %c0_18 = arith.constant 0 : index
    %39 = vector.load %arg6[%c0_17, %c0_18] : memref<1x128xf32, #tpu.memory_space<vmem>>, vector<1x128xf32>
    %c0_19 = arith.constant 0 : index
    %c0_20 = arith.constant 0 : index
    %40 = vector.load %arg7[%c0_19, %c0_20] : memref<1x128xf32, #tpu.memory_space<vmem>>, vector<1x128xf32>
    %cst_21 = arith.constant dense<0.000000e+00> : vector<16xf32>
    %41 = vector.multi_reduction <add>, %38, %cst_21 [1] : vector<16x128xf32> to vector<16xf32>
    %42 = vector.shape_cast %41 : vector<16xf32> to vector<16x1xf32>
    %cst_22 = arith.constant 1.280000e+02 : f32
    %43 = vector.broadcast %cst_22 : f32 to vector<16x1xf32>
    %44 = arith.divf %42, %43 : vector<16x1xf32>
    %45 = vector.broadcast %44 : vector<16x1xf32> to vector<16x128xf32>
    %46 = arith.subf %38, %45 : vector<16x128xf32>
    %47 = arith.mulf %46, %46 : vector<16x128xf32>
    %cst_23 = arith.constant dense<0.000000e+00> : vector<16xf32>
    %48 = vector.multi_reduction <add>, %47, %cst_23 [1] : vector<16x128xf32> to vector<16xf32>
    %49 = vector.shape_cast %48 : vector<16xf32> to vector<16x1xf32>
    %cst_24 = arith.constant 1.280000e+02 : f32
    %50 = vector.broadcast %cst_24 : f32 to vector<16x1xf32>
    %51 = arith.divf %49, %50 : vector<16x1xf32>
    %52 = vector.broadcast %44 : vector<16x1xf32> to vector<16x128xf32>
    %53 = arith.subf %38, %52 : vector<16x128xf32>
    %cst_25 = arith.constant 9.99999996E-13 : f32
    %54 = vector.broadcast %cst_25 : f32 to vector<16x1xf32>
    %55 = arith.addf %51, %54 : vector<16x1xf32>
    %56 = math.rsqrt %55 : vector<16x1xf32>
    %57 = vector.broadcast %56 : vector<16x1xf32> to vector<16x128xf32>
    %58 = arith.mulf %53, %57 : vector<16x128xf32>
    %59 = vector.broadcast %39 : vector<1x128xf32> to vector<16x128xf32>
    %60 = arith.mulf %58, %59 : vector<16x128xf32>
    %61 = vector.broadcast %40 : vector<1x128xf32> to vector<16x128xf32>
    %62 = arith.addf %60, %61 : vector<16x128xf32>
    %63 = arith.truncf %62 : vector<16x128xf32> to vector<16x128xbf16>
    %c0_26 = arith.constant 0 : index
    %c0_27 = arith.constant 0 : index
    %64 = vector.load %arg8[%c0_26, %c0_27] : memref<128x128xbf16, #tpu.memory_space<vmem>>, vector<128x128xbf16>
    %cst_28 = arith.constant dense<0.000000e+00> : vector<16x128xf32>
    %65 = tpu.matmul %63, %64, %cst_28 {dimension_numbers = #tpu.dot_dimension_numbers<[1], [0], [0], [1], [0, 0, 1, 1], [], []>} : vector<16x128xbf16>, vector<128x128xbf16>, vector<16x128xf32> -> vector<16x128xf32>
    %c0_29 = arith.constant 0 : index
    %c0_30 = arith.constant 0 : index
    %66 = vector.load %arg9[%c0_29, %c0_30] : memref<1x128xf32, #tpu.memory_space<vmem>>, vector<1x128xf32>
    %67 = vector.broadcast %66 : vector<1x128xf32> to vector<16x128xf32>
    %68 = arith.addf %65, %67 : vector<16x128xf32>
    %c0_31 = arith.constant 0 : index
    %c0_32 = arith.constant 0 : index
    %69 = vector.load %arg10[%c0_31, %c0_32] : memref<16x128xf32, #tpu.memory_space<vmem>>, vector<16x128xf32>
    tpu.vector_store %arg10[%c0_31, %c0_32], %68 {strides = array<i32>} : memref<16x128xf32, #tpu.memory_space<vmem>>, vector<16x128xf32>,
    return
  }
  func.func @transform_0(%arg0: i32) -> (i32, i32) {
    %c0_i32 = arith.constant 0 : i32
    %c0_i32_0 = arith.constant 0 : i32
    return %arg0, %c0_i32 : i32, i32
  }
  func.func @transform_1(%arg0: i32) -> (i32, i32) {
    %c0_i32 = arith.constant 0 : i32
    %c0_i32_0 = arith.constant 0 : i32
    %c0_i32_1 = arith.constant 0 : i32
    return %c0_i32, %c0_i32_0 : i32, i32
  }
  func.func @transform_2(%arg0: i32) -> (i32, i32) {
    %c0_i32 = arith.constant 0 : i32
    %c0_i32_0 = arith.constant 0 : i32
    %c0_i32_1 = arith.constant 0 : i32
    return %c0_i32, %c0_i32_0 : i32, i32
  }
  func.func @transform_3(%arg0: i32) -> (i32, i32) {
    %c0_i32 = arith.constant 0 : i32
    %c0_i32_0 = arith.constant 0 : i32
    %c0_i32_1 = arith.constant 0 : i32
    return %c0_i32, %c0_i32_0 : i32, i32
  }
  func.func @transform_4(%arg0: i32) -> (i32, i32) {
    %c0_i32 = arith.constant 0 : i32
    %c0_i32_0 = arith.constant 0 : i32
    %c0_i32_1 = arith.constant 0 : i32
    return %c0_i32, %c0_i32_0 : i32, i32
  }
  func.func @transform_5(%arg0: i32) -> (i32, i32) {
    %c0_i32 = arith.constant 0 : i32
    %c0_i32_0 = arith.constant 0 : i32
    %c0_i32_1 = arith.constant 0 : i32
    return %c0_i32, %c0_i32_0 : i32, i32
  }
  func.func @transform_6(%arg0: i32) -> (i32, i32) {
    %c0_i32 = arith.constant 0 : i32
    %c0_i32_0 = arith.constant 0 : i32
    %c0_i32_1 = arith.constant 0 : i32
    return %c0_i32, %c0_i32_0 : i32, i32
  }
  func.func @transform_7(%arg0: i32) -> (i32, i32) {
    %c0_i32 = arith.constant 0 : i32
    %c0_i32_0 = arith.constant 0 : i32
    %c0_i32_1 = arith.constant 0 : i32
    return %c0_i32, %c0_i32_0 : i32, i32
  }
  func.func @transform_8(%arg0: i32) -> (i32, i32) {
    %c0_i32 = arith.constant 0 : i32
    %c0_i32_0 = arith.constant 0 : i32
    %c0_i32_1 = arith.constant 0 : i32
    return %c0_i32, %c0_i32_0 : i32, i32
  }
  func.func @transform_9(%arg0: i32) -> (i32, i32) {
    %c0_i32 = arith.constant 0 : i32
    %c0_i32_0 = arith.constant 0 : i32
    return %arg0, %c0_i32 : i32, i32
  }
}

module attributes {stable_mosaic.version = 11 : i64} {
  func.func @_ln_mlp_resid_kernel(%arg0: i32, %arg1: memref<16x128xf32, #tpu.memory_space<vmem>>, %arg2: memref<1x128xf32, #tpu.memory_space<vmem>>, %arg3: memref<1x128xf32, #tpu.memory_space<vmem>>, %arg4: memref<128x256xbf16, #tpu.memory_space<vmem>>, %arg5: memref<1x256xf32, #tpu.memory_space<vmem>>, %arg6: memref<256x128xbf16, #tpu.memory_space<vmem>>, %arg7: memref<1x128xf32, #tpu.memory_space<vmem>>, %arg8: memref<16x128xf32, #tpu.memory_space<vmem>>) attributes {dimension_semantics = [#tpu.dimension_semantics<parallel>], iteration_bounds = array<i64: 1>, scalar_prefetch = 0 : i64, scratch_operands = 0 : i64, tpu.core_type = #tpu.core_type<tc>, window_params = [{transform_indices = @transform_0, window_bounds = array<i64: 16, 128>}, {pipeline_mode = #tpu.pipeline_mode<synchronous>, transform_indices = @transform_1, window_bounds = array<i64: 1, 128>}, {pipeline_mode = #tpu.pipeline_mode<synchronous>, transform_indices = @transform_2, window_bounds = array<i64: 1, 128>}, {pipeline_mode = #tpu.pipeline_mode<synchronous>, transform_indices = @transform_3, window_bounds = array<i64: 128, 256>}, {pipeline_mode = #tpu.pipeline_mode<synchronous>, transform_indices = @transform_4, window_bounds = array<i64: 1, 256>}, {pipeline_mode = #tpu.pipeline_mode<synchronous>, transform_indices = @transform_5, window_bounds = array<i64: 256, 128>}, {pipeline_mode = #tpu.pipeline_mode<synchronous>, transform_indices = @transform_6, window_bounds = array<i64: 1, 128>}, {transform_indices = @transform_7, window_bounds = array<i64: 16, 128>}]} {
    %c0 = arith.constant 0 : index
    %c0_0 = arith.constant 0 : index
    %0 = vector.load %arg1[%c0, %c0_0] : memref<16x128xf32, #tpu.memory_space<vmem>>, vector<16x128xf32>
    %cst = arith.constant -6.550400e+04 : f32
    %cst_1 = arith.constant 6.550400e+04 : f32
    %1 = vector.broadcast %cst : f32 to vector<16x128xf32>
    %2 = arith.maximumf %1, %0 : vector<16x128xf32>
    %3 = vector.broadcast %cst_1 : f32 to vector<16x128xf32>
    %4 = arith.minimumf %3, %2 : vector<16x128xf32>
    %c0_2 = arith.constant 0 : index
    %c0_3 = arith.constant 0 : index
    %5 = vector.load %arg2[%c0_2, %c0_3] : memref<1x128xf32, #tpu.memory_space<vmem>>, vector<1x128xf32>
    %c0_4 = arith.constant 0 : index
    %c0_5 = arith.constant 0 : index
    %6 = vector.load %arg3[%c0_4, %c0_5] : memref<1x128xf32, #tpu.memory_space<vmem>>, vector<1x128xf32>
    %cst_6 = arith.constant dense<0.000000e+00> : vector<16xf32>
    %7 = vector.multi_reduction <add>, %4, %cst_6 [1] : vector<16x128xf32> to vector<16xf32>
    %8 = vector.shape_cast %7 : vector<16xf32> to vector<16x1xf32>
    %cst_7 = arith.constant 1.280000e+02 : f32
    %9 = vector.broadcast %cst_7 : f32 to vector<16x1xf32>
    %10 = arith.divf %8, %9 : vector<16x1xf32>
    %11 = vector.broadcast %10 : vector<16x1xf32> to vector<16x128xf32>
    %12 = arith.subf %4, %11 : vector<16x128xf32>
    %13 = arith.mulf %12, %12 : vector<16x128xf32>
    %cst_8 = arith.constant dense<0.000000e+00> : vector<16xf32>
    %14 = vector.multi_reduction <add>, %13, %cst_8 [1] : vector<16x128xf32> to vector<16xf32>
    %15 = vector.shape_cast %14 : vector<16xf32> to vector<16x1xf32>
    %cst_9 = arith.constant 1.280000e+02 : f32
    %16 = vector.broadcast %cst_9 : f32 to vector<16x1xf32>
    %17 = arith.divf %15, %16 : vector<16x1xf32>
    %18 = vector.broadcast %10 : vector<16x1xf32> to vector<16x128xf32>
    %19 = arith.subf %4, %18 : vector<16x128xf32>
    %cst_10 = arith.constant 9.99999974E-6 : f32
    %20 = vector.broadcast %cst_10 : f32 to vector<16x1xf32>
    %21 = arith.addf %17, %20 : vector<16x1xf32>
    %22 = math.rsqrt %21 : vector<16x1xf32>
    %23 = vector.broadcast %22 : vector<16x1xf32> to vector<16x128xf32>
    %24 = arith.mulf %19, %23 : vector<16x128xf32>
    %25 = vector.broadcast %5 : vector<1x128xf32> to vector<16x128xf32>
    %26 = arith.mulf %24, %25 : vector<16x128xf32>
    %27 = vector.broadcast %6 : vector<1x128xf32> to vector<16x128xf32>
    %28 = arith.addf %26, %27 : vector<16x128xf32>
    %29 = arith.truncf %28 : vector<16x128xf32> to vector<16x128xbf16>
    %c0_11 = arith.constant 0 : index
    %c0_12 = arith.constant 0 : index
    %30 = vector.load %arg4[%c0_11, %c0_12] : memref<128x256xbf16, #tpu.memory_space<vmem>>, vector<128x256xbf16>
    %cst_13 = arith.constant dense<0.000000e+00> : vector<16x256xf32>
    %31 = tpu.matmul %29, %30, %cst_13 {dimension_numbers = #tpu.dot_dimension_numbers<[1], [0], [0], [1], [0, 0, 1, 1], [], []>} : vector<16x128xbf16>, vector<128x256xbf16>, vector<16x256xf32> -> vector<16x256xf32>
    %c0_14 = arith.constant 0 : index
    %c0_15 = arith.constant 0 : index
    %32 = vector.load %arg5[%c0_14, %c0_15] : memref<1x256xf32, #tpu.memory_space<vmem>>, vector<1x256xf32>
    %33 = vector.broadcast %32 : vector<1x256xf32> to vector<16x256xf32>
    %34 = arith.addf %31, %33 : vector<16x256xf32>
    %cst_16 = arith.constant 5.000000e-01 : f32
    %35 = vector.broadcast %cst_16 : f32 to vector<16x256xf32>
    %36 = arith.mulf %35, %34 : vector<16x256xf32>
    %cst_17 = arith.constant 0.707106769 : f32
    %37 = vector.broadcast %cst_17 : f32 to vector<16x256xf32>
    %38 = arith.mulf %34, %37 : vector<16x256xf32>
    %39 = math.erf %38 : vector<16x256xf32>
    %cst_18 = arith.constant 1.000000e+00 : f32
    %40 = vector.broadcast %cst_18 : f32 to vector<16x256xf32>
    %41 = arith.addf %40, %39 : vector<16x256xf32>
    %42 = arith.mulf %36, %41 : vector<16x256xf32>
    %43 = arith.truncf %42 : vector<16x256xf32> to vector<16x256xbf16>
    %c0_19 = arith.constant 0 : index
    %c0_20 = arith.constant 0 : index
    %44 = vector.load %arg6[%c0_19, %c0_20] : memref<256x128xbf16, #tpu.memory_space<vmem>>, vector<256x128xbf16>
    %cst_21 = arith.constant dense<0.000000e+00> : vector<16x128xf32>
    %45 = tpu.matmul %43, %44, %cst_21 {dimension_numbers = #tpu.dot_dimension_numbers<[1], [0], [0], [1], [0, 0, 1, 1], [], []>} : vector<16x256xbf16>, vector<256x128xbf16>, vector<16x128xf32> -> vector<16x128xf32>
    %c0_22 = arith.constant 0 : index
    %c0_23 = arith.constant 0 : index
    %46 = vector.load %arg7[%c0_22, %c0_23] : memref<1x128xf32, #tpu.memory_space<vmem>>, vector<1x128xf32>
    %47 = vector.broadcast %46 : vector<1x128xf32> to vector<16x128xf32>
    %48 = arith.addf %45, %47 : vector<16x128xf32>
    %49 = arith.addf %48, %0 : vector<16x128xf32>
    %cst_24 = arith.constant -6.550400e+04 : f32
    %cst_25 = arith.constant 6.550400e+04 : f32
    %50 = vector.broadcast %cst_24 : f32 to vector<16x128xf32>
    %51 = arith.maximumf %50, %49 : vector<16x128xf32>
    %52 = vector.broadcast %cst_25 : f32 to vector<16x128xf32>
    %53 = arith.minimumf %52, %51 : vector<16x128xf32>
    %c0_26 = arith.constant 0 : index
    %c0_27 = arith.constant 0 : index
    %54 = vector.load %arg8[%c0_26, %c0_27] : memref<16x128xf32, #tpu.memory_space<vmem>>, vector<16x128xf32>
    tpu.vector_store %arg8[%c0_26, %c0_27], %53 {strides = array<i32>} : memref<16x128xf32, #tpu.memory_space<vmem>>, vector<16x128xf32>,
    return
  }
  func.func @transform_0(%arg0: i32) -> (i32, i32) {
    %c0_i32 = arith.constant 0 : i32
    %c0_i32_0 = arith.constant 0 : i32
    return %arg0, %c0_i32 : i32, i32
  }
  func.func @transform_1(%arg0: i32) -> (i32, i32) {
    %c0_i32 = arith.constant 0 : i32
    %c0_i32_0 = arith.constant 0 : i32
    %c0_i32_1 = arith.constant 0 : i32
    return %c0_i32, %c0_i32_0 : i32, i32
  }
  func.func @transform_2(%arg0: i32) -> (i32, i32) {
    %c0_i32 = arith.constant 0 : i32
    %c0_i32_0 = arith.constant 0 : i32
    %c0_i32_1 = arith.constant 0 : i32
    return %c0_i32, %c0_i32_0 : i32, i32
  }
  func.func @transform_3(%arg0: i32) -> (i32, i32) {
    %c0_i32 = arith.constant 0 : i32
    %c0_i32_0 = arith.constant 0 : i32
    %c0_i32_1 = arith.constant 0 : i32
    return %c0_i32, %c0_i32_0 : i32, i32
  }
  func.func @transform_4(%arg0: i32) -> (i32, i32) {
    %c0_i32 = arith.constant 0 : i32
    %c0_i32_0 = arith.constant 0 : i32
    %c0_i32_1 = arith.constant 0 : i32
    return %c0_i32, %c0_i32_0 : i32, i32
  }
  func.func @transform_5(%arg0: i32) -> (i32, i32) {
    %c0_i32 = arith.constant 0 : i32
    %c0_i32_0 = arith.constant 0 : i32
    %c0_i32_1 = arith.constant 0 : i32
    return %c0_i32, %c0_i32_0 : i32, i32
  }
  func.func @transform_6(%arg0: i32) -> (i32, i32) {
    %c0_i32 = arith.constant 0 : i32
    %c0_i32_0 = arith.constant 0 : i32
    %c0_i32_1 = arith.constant 0 : i32
    return %c0_i32, %c0_i32_0 : i32, i32
  }
  func.func @transform_7(%arg0: i32) -> (i32, i32) {
    %c0_i32 = arith.constant 0 : i32
    %c0_i32_0 = arith.constant 0 : i32
    return %arg0, %c0_i32 : i32, i32
  }
}

module attributes {stable_mosaic.version = 11 : i64} {
  func.func @_attn_layer_kernel(%arg0: i32, %arg1: memref<1x8x128xf32, #tpu.memory_space<vmem>>, %arg2: memref<1x128xf32, #tpu.memory_space<vmem>>, %arg3: memref<1x128xf32, #tpu.memory_space<vmem>>, %arg4: memref<128x384xbf16, #tpu.memory_space<vmem>>, %arg5: memref<1x384xf32, #tpu.memory_space<vmem>>, %arg6: memref<128x128xbf16, #tpu.memory_space<vmem>>, %arg7: memref<1x128xf32, #tpu.memory_space<vmem>>, %arg8: memref<1x8x128xf32, #tpu.memory_space<vmem>>) attributes {dimension_semantics = [#tpu.dimension_semantics<parallel>], iteration_bounds = array<i64: 2>, scalar_prefetch = 0 : i64, scratch_operands = 0 : i64, tpu.core_type = #tpu.core_type<tc>, window_params = [{transform_indices = @transform_0, window_bounds = array<i64: 1, 8, 128>}, {pipeline_mode = #tpu.pipeline_mode<synchronous>, transform_indices = @transform_1, window_bounds = array<i64: 1, 128>}, {pipeline_mode = #tpu.pipeline_mode<synchronous>, transform_indices = @transform_2, window_bounds = array<i64: 1, 128>}, {pipeline_mode = #tpu.pipeline_mode<synchronous>, transform_indices = @transform_3, window_bounds = array<i64: 128, 384>}, {pipeline_mode = #tpu.pipeline_mode<synchronous>, transform_indices = @transform_4, window_bounds = array<i64: 1, 384>}, {pipeline_mode = #tpu.pipeline_mode<synchronous>, transform_indices = @transform_5, window_bounds = array<i64: 128, 128>}, {pipeline_mode = #tpu.pipeline_mode<synchronous>, transform_indices = @transform_6, window_bounds = array<i64: 1, 128>}, {transform_indices = @transform_7, window_bounds = array<i64: 1, 8, 128>}]} {
    %c0 = arith.constant 0 : index
    %c0_0 = arith.constant 0 : index
    %c0_1 = arith.constant 0 : index
    %0 = vector.load %arg1[%c0, %c0_0, %c0_1] : memref<1x8x128xf32, #tpu.memory_space<vmem>>, vector<1x8x128xf32>
    %1 = vector.shape_cast %0 : vector<1x8x128xf32> to vector<8x128xf32>
    %cst = arith.constant -6.550400e+04 : f32
    %cst_2 = arith.constant 6.550400e+04 : f32
    %2 = vector.broadcast %cst : f32 to vector<8x128xf32>
    %3 = arith.maximumf %2, %1 : vector<8x128xf32>
    %4 = vector.broadcast %cst_2 : f32 to vector<8x128xf32>
    %5 = arith.minimumf %4, %3 : vector<8x128xf32>
    %c0_3 = arith.constant 0 : index
    %c0_4 = arith.constant 0 : index
    %6 = vector.load %arg2[%c0_3, %c0_4] : memref<1x128xf32, #tpu.memory_space<vmem>>, vector<1x128xf32>
    %c0_5 = arith.constant 0 : index
    %c0_6 = arith.constant 0 : index
    %7 = vector.load %arg3[%c0_5, %c0_6] : memref<1x128xf32, #tpu.memory_space<vmem>>, vector<1x128xf32>
    %cst_7 = arith.constant dense<0.000000e+00> : vector<8xf32>
    %8 = vector.multi_reduction <add>, %5, %cst_7 [1] : vector<8x128xf32> to vector<8xf32>
    %9 = vector.shape_cast %8 : vector<8xf32> to vector<8x1xf32>
    %cst_8 = arith.constant 1.280000e+02 : f32
    %10 = vector.broadcast %cst_8 : f32 to vector<8x1xf32>
    %11 = arith.divf %9, %10 : vector<8x1xf32>
    %12 = vector.broadcast %11 : vector<8x1xf32> to vector<8x128xf32>
    %13 = arith.subf %5, %12 : vector<8x128xf32>
    %14 = arith.mulf %13, %13 : vector<8x128xf32>
    %cst_9 = arith.constant dense<0.000000e+00> : vector<8xf32>
    %15 = vector.multi_reduction <add>, %14, %cst_9 [1] : vector<8x128xf32> to vector<8xf32>
    %16 = vector.shape_cast %15 : vector<8xf32> to vector<8x1xf32>
    %cst_10 = arith.constant 1.280000e+02 : f32
    %17 = vector.broadcast %cst_10 : f32 to vector<8x1xf32>
    %18 = arith.divf %16, %17 : vector<8x1xf32>
    %19 = vector.broadcast %11 : vector<8x1xf32> to vector<8x128xf32>
    %20 = arith.subf %5, %19 : vector<8x128xf32>
    %cst_11 = arith.constant 9.99999974E-6 : f32
    %21 = vector.broadcast %cst_11 : f32 to vector<8x1xf32>
    %22 = arith.addf %18, %21 : vector<8x1xf32>
    %23 = math.rsqrt %22 : vector<8x1xf32>
    %24 = vector.broadcast %23 : vector<8x1xf32> to vector<8x128xf32>
    %25 = arith.mulf %20, %24 : vector<8x128xf32>
    %26 = vector.broadcast %6 : vector<1x128xf32> to vector<8x128xf32>
    %27 = arith.mulf %25, %26 : vector<8x128xf32>
    %28 = vector.broadcast %7 : vector<1x128xf32> to vector<8x128xf32>
    %29 = arith.addf %27, %28 : vector<8x128xf32>
    %30 = arith.truncf %29 : vector<8x128xf32> to vector<8x128xbf16>
    %c0_12 = arith.constant 0 : index
    %c0_13 = arith.constant 0 : index
    %31 = vector.load %arg4[%c0_12, %c0_13] : memref<128x384xbf16, #tpu.memory_space<vmem>>, vector<128x384xbf16>
    %cst_14 = arith.constant dense<0.000000e+00> : vector<8x384xf32>
    %32 = tpu.matmul %30, %31, %cst_14 {dimension_numbers = #tpu.dot_dimension_numbers<[1], [0], [0], [1], [0, 0, 1, 1], [], []>} : vector<8x128xbf16>, vector<128x384xbf16>, vector<8x384xf32> -> vector<8x384xf32>
    %c0_15 = arith.constant 0 : index
    %c0_16 = arith.constant 0 : index
    %33 = vector.load %arg5[%c0_15, %c0_16] : memref<1x384xf32, #tpu.memory_space<vmem>>, vector<1x384xf32>
    %34 = vector.broadcast %33 : vector<1x384xf32> to vector<8x384xf32>
    %35 = arith.addf %32, %34 : vector<8x384xf32>
    %36 = vector.extract_strided_slice %35 {offsets = [0, 0], sizes = [8, 128], strides = [1, 1]} : vector<8x384xf32> to vector<8x128xf32>
    %37 = vector.extract_strided_slice %35 {offsets = [0, 128], sizes = [8, 128], strides = [1, 1]} : vector<8x384xf32> to vector<8x128xf32>
    %38 = vector.extract_strided_slice %35 {offsets = [0, 256], sizes = [8, 128], strides = [1, 1]} : vector<8x384xf32> to vector<8x128xf32>
    %c0_17 = arith.constant 0 : index
    %c0_18 = arith.constant 0 : index
    %39 = vector.load %arg6[%c0_17, %c0_18] : memref<128x128xbf16, #tpu.memory_space<vmem>>, vector<128x128xbf16>
    %cst_19 = arith.constant 0.000000e+00 : f32
    %40 = vector.broadcast %cst_19 : f32 to vector<8x128xf32>
    %41 = vector.extract_strided_slice %36 {offsets = [0, 0], sizes = [8, 32], strides = [1, 1]} : vector<8x128xf32> to vector<8x32xf32>
    %42 = arith.truncf %41 : vector<8x32xf32> to vector<8x32xbf16>
    %43 = vector.extract_strided_slice %37 {offsets = [0, 0], sizes = [8, 32], strides = [1, 1]} : vector<8x128xf32> to vector<8x32xf32>
    %44 = arith.truncf %43 : vector<8x32xf32> to vector<8x32xbf16>
    %cst_20 = arith.constant dense<0.000000e+00> : vector<8x8xf32>
    %45 = tpu.matmul %42, %44, %cst_20 {dimension_numbers = #tpu.dot_dimension_numbers<[1], [1], [0], [0], [0, 0, 1, 0], [], []>} : vector<8x32xbf16>, vector<8x32xbf16>, vector<8x8xf32> -> vector<8x8xf32>
    %cst_21 = arith.constant dense<0xFF800000> : vector<8xf32>
    %46 = vector.multi_reduction <maximumf>, %45, %cst_21 [1] : vector<8x8xf32> to vector<8xf32>
    %47 = vector.shape_cast %46 : vector<8xf32> to vector<8x1xf32>
    %48 = vector.broadcast %47 : vector<8x1xf32> to vector<8x8xf32>
    %49 = arith.subf %45, %48 : vector<8x8xf32>
    %50 = math.exp %49 : vector<8x8xf32>
    %cst_22 = arith.constant dense<0.000000e+00> : vector<8xf32>
    %51 = vector.multi_reduction <add>, %50, %cst_22 [1] : vector<8x8xf32> to vector<8xf32>
    %52 = vector.shape_cast %51 : vector<8xf32> to vector<8x1xf32>
    %53 = tpu.reciprocal %52 {approx = true} : vector<8x1xf32> -> vector<8x1xf32>
    %54 = vector.broadcast %53 : vector<8x1xf32> to vector<8x8xf32>
    %55 = arith.mulf %50, %54 : vector<8x8xf32>
    %56 = arith.truncf %55 : vector<8x8xf32> to vector<8x8xbf16>
    %57 = vector.extract_strided_slice %38 {offsets = [0, 0], sizes = [8, 32], strides = [1, 1]} : vector<8x128xf32> to vector<8x32xf32>
    %58 = arith.truncf %57 : vector<8x32xf32> to vector<8x32xbf16>
    %cst_23 = arith.constant dense<0.000000e+00> : vector<8x32xf32>
    %59 = tpu.matmul %56, %58, %cst_23 {dimension_numbers = #tpu.dot_dimension_numbers<[1], [0], [0], [1], [0, 0, 1, 1], [], []>} : vector<8x8xbf16>, vector<8x32xbf16>, vector<8x32xf32> -> vector<8x32xf32>
    %60 = arith.truncf %59 : vector<8x32xf32> to vector<8x32xbf16>
    %61 = vector.extract_strided_slice %39 {offsets = [0, 0], sizes = [32, 128], strides = [1, 1]} : vector<128x128xbf16> to vector<32x128xbf16>
    %cst_24 = arith.constant dense<0.000000e+00> : vector<8x128xf32>
    %62 = tpu.matmul %60, %61, %cst_24 {dimension_numbers = #tpu.dot_dimension_numbers<[1], [0], [0], [1], [0, 0, 1, 1], [], []>} : vector<8x32xbf16>, vector<32x128xbf16>, vector<8x128xf32> -> vector<8x128xf32>
    %63 = arith.addf %40, %62 : vector<8x128xf32>
    %64 = vector.extract_strided_slice %36 {offsets = [0, 32], sizes = [8, 32], strides = [1, 1]} : vector<8x128xf32> to vector<8x32xf32>
    %65 = arith.truncf %64 : vector<8x32xf32> to vector<8x32xbf16>
    %66 = vector.extract_strided_slice %37 {offsets = [0, 32], sizes = [8, 32], strides = [1, 1]} : vector<8x128xf32> to vector<8x32xf32>
    %67 = arith.truncf %66 : vector<8x32xf32> to vector<8x32xbf16>
    %cst_25 = arith.constant dense<0.000000e+00> : vector<8x8xf32>
    %68 = tpu.matmul %65, %67, %cst_25 {dimension_numbers = #tpu.dot_dimension_numbers<[1], [1], [0], [0], [0, 0, 1, 0], [], []>} : vector<8x32xbf16>, vector<8x32xbf16>, vector<8x8xf32> -> vector<8x8xf32>
    %cst_26 = arith.constant dense<0xFF800000> : vector<8xf32>
    %69 = vector.multi_reduction <maximumf>, %68, %cst_26 [1] : vector<8x8xf32> to vector<8xf32>
    %70 = vector.shape_cast %69 : vector<8xf32> to vector<8x1xf32>
    %71 = vector.broadcast %70 : vector<8x1xf32> to vector<8x8xf32>
    %72 = arith.subf %68, %71 : vector<8x8xf32>
    %73 = math.exp %72 : vector<8x8xf32>
    %cst_27 = arith.constant dense<0.000000e+00> : vector<8xf32>
    %74 = vector.multi_reduction <add>, %73, %cst_27 [1] : vector<8x8xf32> to vector<8xf32>
    %75 = vector.shape_cast %74 : vector<8xf32> to vector<8x1xf32>
    %76 = tpu.reciprocal %75 {approx = true} : vector<8x1xf32> -> vector<8x1xf32>
    %77 = vector.broadcast %76 : vector<8x1xf32> to vector<8x8xf32>
    %78 = arith.mulf %73, %77 : vector<8x8xf32>
    %79 = arith.truncf %78 : vector<8x8xf32> to vector<8x8xbf16>
    %80 = vector.extract_strided_slice %38 {offsets = [0, 32], sizes = [8, 32], strides = [1, 1]} : vector<8x128xf32> to vector<8x32xf32>
    %81 = arith.truncf %80 : vector<8x32xf32> to vector<8x32xbf16>
    %cst_28 = arith.constant dense<0.000000e+00> : vector<8x32xf32>
    %82 = tpu.matmul %79, %81, %cst_28 {dimension_numbers = #tpu.dot_dimension_numbers<[1], [0], [0], [1], [0, 0, 1, 1], [], []>} : vector<8x8xbf16>, vector<8x32xbf16>, vector<8x32xf32> -> vector<8x32xf32>
    %83 = arith.truncf %82 : vector<8x32xf32> to vector<8x32xbf16>
    %84 = vector.extract_strided_slice %39 {offsets = [32, 0], sizes = [32, 128], strides = [1, 1]} : vector<128x128xbf16> to vector<32x128xbf16>
    %cst_29 = arith.constant dense<0.000000e+00> : vector<8x128xf32>
    %85 = tpu.matmul %83, %84, %cst_29 {dimension_numbers = #tpu.dot_dimension_numbers<[1], [0], [0], [1], [0, 0, 1, 1], [], []>} : vector<8x32xbf16>, vector<32x128xbf16>, vector<8x128xf32> -> vector<8x128xf32>
    %86 = arith.addf %63, %85 : vector<8x128xf32>
    %87 = vector.extract_strided_slice %36 {offsets = [0, 64], sizes = [8, 32], strides = [1, 1]} : vector<8x128xf32> to vector<8x32xf32>
    %88 = arith.truncf %87 : vector<8x32xf32> to vector<8x32xbf16>
    %89 = vector.extract_strided_slice %37 {offsets = [0, 64], sizes = [8, 32], strides = [1, 1]} : vector<8x128xf32> to vector<8x32xf32>
    %90 = arith.truncf %89 : vector<8x32xf32> to vector<8x32xbf16>
    %cst_30 = arith.constant dense<0.000000e+00> : vector<8x8xf32>
    %91 = tpu.matmul %88, %90, %cst_30 {dimension_numbers = #tpu.dot_dimension_numbers<[1], [1], [0], [0], [0, 0, 1, 0], [], []>} : vector<8x32xbf16>, vector<8x32xbf16>, vector<8x8xf32> -> vector<8x8xf32>
    %cst_31 = arith.constant dense<0xFF800000> : vector<8xf32>
    %92 = vector.multi_reduction <maximumf>, %91, %cst_31 [1] : vector<8x8xf32> to vector<8xf32>
    %93 = vector.shape_cast %92 : vector<8xf32> to vector<8x1xf32>
    %94 = vector.broadcast %93 : vector<8x1xf32> to vector<8x8xf32>
    %95 = arith.subf %91, %94 : vector<8x8xf32>
    %96 = math.exp %95 : vector<8x8xf32>
    %cst_32 = arith.constant dense<0.000000e+00> : vector<8xf32>
    %97 = vector.multi_reduction <add>, %96, %cst_32 [1] : vector<8x8xf32> to vector<8xf32>
    %98 = vector.shape_cast %97 : vector<8xf32> to vector<8x1xf32>
    %99 = tpu.reciprocal %98 {approx = true} : vector<8x1xf32> -> vector<8x1xf32>
    %100 = vector.broadcast %99 : vector<8x1xf32> to vector<8x8xf32>
    %101 = arith.mulf %96, %100 : vector<8x8xf32>
    %102 = arith.truncf %101 : vector<8x8xf32> to vector<8x8xbf16>
    %103 = vector.extract_strided_slice %38 {offsets = [0, 64], sizes = [8, 32], strides = [1, 1]} : vector<8x128xf32> to vector<8x32xf32>
    %104 = arith.truncf %103 : vector<8x32xf32> to vector<8x32xbf16>
    %cst_33 = arith.constant dense<0.000000e+00> : vector<8x32xf32>
    %105 = tpu.matmul %102, %104, %cst_33 {dimension_numbers = #tpu.dot_dimension_numbers<[1], [0], [0], [1], [0, 0, 1, 1], [], []>} : vector<8x8xbf16>, vector<8x32xbf16>, vector<8x32xf32> -> vector<8x32xf32>
    %106 = arith.truncf %105 : vector<8x32xf32> to vector<8x32xbf16>
    %107 = vector.extract_strided_slice %39 {offsets = [64, 0], sizes = [32, 128], strides = [1, 1]} : vector<128x128xbf16> to vector<32x128xbf16>
    %cst_34 = arith.constant dense<0.000000e+00> : vector<8x128xf32>
    %108 = tpu.matmul %106, %107, %cst_34 {dimension_numbers = #tpu.dot_dimension_numbers<[1], [0], [0], [1], [0, 0, 1, 1], [], []>} : vector<8x32xbf16>, vector<32x128xbf16>, vector<8x128xf32> -> vector<8x128xf32>
    %109 = arith.addf %86, %108 : vector<8x128xf32>
    %110 = vector.extract_strided_slice %36 {offsets = [0, 96], sizes = [8, 32], strides = [1, 1]} : vector<8x128xf32> to vector<8x32xf32>
    %111 = arith.truncf %110 : vector<8x32xf32> to vector<8x32xbf16>
    %112 = vector.extract_strided_slice %37 {offsets = [0, 96], sizes = [8, 32], strides = [1, 1]} : vector<8x128xf32> to vector<8x32xf32>
    %113 = arith.truncf %112 : vector<8x32xf32> to vector<8x32xbf16>
    %cst_35 = arith.constant dense<0.000000e+00> : vector<8x8xf32>
    %114 = tpu.matmul %111, %113, %cst_35 {dimension_numbers = #tpu.dot_dimension_numbers<[1], [1], [0], [0], [0, 0, 1, 0], [], []>} : vector<8x32xbf16>, vector<8x32xbf16>, vector<8x8xf32> -> vector<8x8xf32>
    %cst_36 = arith.constant dense<0xFF800000> : vector<8xf32>
    %115 = vector.multi_reduction <maximumf>, %114, %cst_36 [1] : vector<8x8xf32> to vector<8xf32>
    %116 = vector.shape_cast %115 : vector<8xf32> to vector<8x1xf32>
    %117 = vector.broadcast %116 : vector<8x1xf32> to vector<8x8xf32>
    %118 = arith.subf %114, %117 : vector<8x8xf32>
    %119 = math.exp %118 : vector<8x8xf32>
    %cst_37 = arith.constant dense<0.000000e+00> : vector<8xf32>
    %120 = vector.multi_reduction <add>, %119, %cst_37 [1] : vector<8x8xf32> to vector<8xf32>
    %121 = vector.shape_cast %120 : vector<8xf32> to vector<8x1xf32>
    %122 = tpu.reciprocal %121 {approx = true} : vector<8x1xf32> -> vector<8x1xf32>
    %123 = vector.broadcast %122 : vector<8x1xf32> to vector<8x8xf32>
    %124 = arith.mulf %119, %123 : vector<8x8xf32>
    %125 = arith.truncf %124 : vector<8x8xf32> to vector<8x8xbf16>
    %126 = vector.extract_strided_slice %38 {offsets = [0, 96], sizes = [8, 32], strides = [1, 1]} : vector<8x128xf32> to vector<8x32xf32>
    %127 = arith.truncf %126 : vector<8x32xf32> to vector<8x32xbf16>
    %cst_38 = arith.constant dense<0.000000e+00> : vector<8x32xf32>
    %128 = tpu.matmul %125, %127, %cst_38 {dimension_numbers = #tpu.dot_dimension_numbers<[1], [0], [0], [1], [0, 0, 1, 1], [], []>} : vector<8x8xbf16>, vector<8x32xbf16>, vector<8x32xf32> -> vector<8x32xf32>
    %129 = arith.truncf %128 : vector<8x32xf32> to vector<8x32xbf16>
    %130 = vector.extract_strided_slice %39 {offsets = [96, 0], sizes = [32, 128], strides = [1, 1]} : vector<128x128xbf16> to vector<32x128xbf16>
    %cst_39 = arith.constant dense<0.000000e+00> : vector<8x128xf32>
    %131 = tpu.matmul %129, %130, %cst_39 {dimension_numbers = #tpu.dot_dimension_numbers<[1], [0], [0], [1], [0, 0, 1, 1], [], []>} : vector<8x32xbf16>, vector<32x128xbf16>, vector<8x128xf32> -> vector<8x128xf32>
    %132 = arith.addf %109, %131 : vector<8x128xf32>
    %c0_40 = arith.constant 0 : index
    %c0_41 = arith.constant 0 : index
    %133 = vector.load %arg7[%c0_40, %c0_41] : memref<1x128xf32, #tpu.memory_space<vmem>>, vector<1x128xf32>
    %134 = vector.broadcast %133 : vector<1x128xf32> to vector<8x128xf32>
    %135 = arith.addf %132, %134 : vector<8x128xf32>
    %136 = arith.addf %135, %1 : vector<8x128xf32>
    %cst_42 = arith.constant -6.550400e+04 : f32
    %cst_43 = arith.constant 6.550400e+04 : f32
    %137 = vector.broadcast %cst_42 : f32 to vector<8x128xf32>
    %138 = arith.maximumf %137, %136 : vector<8x128xf32>
    %139 = vector.broadcast %cst_43 : f32 to vector<8x128xf32>
    %140 = arith.minimumf %139, %138 : vector<8x128xf32>
    %c0_44 = arith.constant 0 : index
    %c0_45 = arith.constant 0 : index
    %c0_46 = arith.constant 0 : index
    %141 = vector.load %arg8[%c0_44, %c0_45, %c0_46] : memref<1x8x128xf32, #tpu.memory_space<vmem>>, vector<1x8x128xf32>
    %142 = vector.shape_cast %141 : vector<1x8x128xf32> to vector<8x128xf32>
    %143 = vector.shape_cast %140 : vector<8x128xf32> to vector<1x8x128xf32>
    tpu.vector_store %arg8[%c0_44, %c0_45, %c0_46], %143 {strides = array<i32>} : memref<1x8x128xf32, #tpu.memory_space<vmem>>, vector<1x8x128xf32>,
    return
  }
  func.func @transform_0(%arg0: i32) -> (i32, i32, i32) {
    %c0_i32 = arith.constant 0 : i32
    %c0_i32_0 = arith.constant 0 : i32
    %c0_i32_1 = arith.constant 0 : i32
    return %arg0, %c0_i32, %c0_i32_0 : i32, i32, i32
  }
  func.func @transform_1(%arg0: i32) -> (i32, i32) {
    %c0_i32 = arith.constant 0 : i32
    %c0_i32_0 = arith.constant 0 : i32
    %c0_i32_1 = arith.constant 0 : i32
    return %c0_i32, %c0_i32_0 : i32, i32
  }
  func.func @transform_2(%arg0: i32) -> (i32, i32) {
    %c0_i32 = arith.constant 0 : i32
    %c0_i32_0 = arith.constant 0 : i32
    %c0_i32_1 = arith.constant 0 : i32
    return %c0_i32, %c0_i32_0 : i32, i32
  }
  func.func @transform_3(%arg0: i32) -> (i32, i32) {
    %c0_i32 = arith.constant 0 : i32
    %c0_i32_0 = arith.constant 0 : i32
    %c0_i32_1 = arith.constant 0 : i32
    return %c0_i32, %c0_i32_0 : i32, i32
  }
  func.func @transform_4(%arg0: i32) -> (i32, i32) {
    %c0_i32 = arith.constant 0 : i32
    %c0_i32_0 = arith.constant 0 : i32
    %c0_i32_1 = arith.constant 0 : i32
    return %c0_i32, %c0_i32_0 : i32, i32
  }
  func.func @transform_5(%arg0: i32) -> (i32, i32) {
    %c0_i32 = arith.constant 0 : i32
    %c0_i32_0 = arith.constant 0 : i32
    %c0_i32_1 = arith.constant 0 : i32
    return %c0_i32, %c0_i32_0 : i32, i32
  }
  func.func @transform_6(%arg0: i32) -> (i32, i32) {
    %c0_i32 = arith.constant 0 : i32
    %c0_i32_0 = arith.constant 0 : i32
    %c0_i32_1 = arith.constant 0 : i32
    return %c0_i32, %c0_i32_0 : i32, i32
  }
  func.func @transform_7(%arg0: i32) -> (i32, i32, i32) {
    %c0_i32 = arith.constant 0 : i32
    %c0_i32_0 = arith.constant 0 : i32
    %c0_i32_1 = arith.constant 0 : i32
    return %arg0, %c0_i32, %c0_i32_0 : i32, i32, i32
  }
}

module attributes {stable_mosaic.version = 11 : i64} {
  func.func @_last_logits_kernel(%arg0: i32, %arg1: i32, %arg2: i32, %arg3: memref<1x8x128xf32, #tpu.memory_space<vmem>>, %arg4: memref<8x128xf32, #tpu.memory_space<vmem>>, %arg5: memref<1x128xf32, #tpu.memory_space<vmem>>, %arg6: memref<1x128xf32, #tpu.memory_space<vmem>>, %arg7: memref<128x128xbf16, #tpu.memory_space<vmem>>, %arg8: memref<1x128xf32, #tpu.memory_space<vmem>>, %arg9: memref<1x128xf32, #tpu.memory_space<vmem>>, %arg10: memref<1x128xf32, #tpu.memory_space<vmem>>, %arg11: memref<128x128xbf16, #tpu.memory_space<vmem>>, %arg12: memref<1x8x128xf32, #tpu.memory_space<vmem>>, %arg13: memref<8x128xf32, #tpu.memory_space<vmem>>) attributes {dimension_semantics = [#tpu.dimension_semantics<parallel>, #tpu.dimension_semantics<parallel>, #tpu.dimension_semantics<arbitrary>], iteration_bounds = array<i64: 2, 1, 1>, scalar_prefetch = 0 : i64, scratch_operands = 1 : i64, tpu.core_type = #tpu.core_type<tc>, window_params = [{transform_indices = @transform_0, window_bounds = array<i64: 1, 8, 128>}, {transform_indices = @transform_1, window_bounds = array<i64: 8, 128>}, {pipeline_mode = #tpu.pipeline_mode<synchronous>, transform_indices = @transform_2, window_bounds = array<i64: 1, 128>}, {pipeline_mode = #tpu.pipeline_mode<synchronous>, transform_indices = @transform_3, window_bounds = array<i64: 1, 128>}, {pipeline_mode = #tpu.pipeline_mode<synchronous>, transform_indices = @transform_4, window_bounds = array<i64: 128, 128>}, {pipeline_mode = #tpu.pipeline_mode<synchronous>, transform_indices = @transform_5, window_bounds = array<i64: 1, 128>}, {pipeline_mode = #tpu.pipeline_mode<synchronous>, transform_indices = @transform_6, window_bounds = array<i64: 1, 128>}, {pipeline_mode = #tpu.pipeline_mode<synchronous>, transform_indices = @transform_7, window_bounds = array<i64: 1, 128>}, {transform_indices = @transform_8, window_bounds = array<i64: 128, 128>}, {transform_indices = @transform_9, window_bounds = array<i64: 1, 8, 128>}]} {
    %c0_i32 = arith.constant 0 : i32
    %0 = arith.cmpi eq, %arg2, %c0_i32 : i32
    %1 = arith.extui %0 : i1 to i32
    %c0_i32_0 = arith.constant 0 : i32
    %2 = arith.cmpi ne, %1, %c0_i32_0 : i32
    scf.if %2 {
      %c0_9 = arith.constant 0 : index
      %c0_10 = arith.constant 0 : index
      %c0_11 = arith.constant 0 : index
      %12 = vector.load %arg3[%c0_9, %c0_10, %c0_11] : memref<1x8x128xf32, #tpu.memory_space<vmem>>, vector<1x8x128xf32>
      %13 = vector.shape_cast %12 : vector<1x8x128xf32> to vector<8x128xf32>
      %c0_12 = arith.constant 0 : index
      %c0_13 = arith.constant 0 : index
      %14 = vector.load %arg5[%c0_12, %c0_13] : memref<1x128xf32, #tpu.memory_space<vmem>>, vector<1x128xf32>
      %c0_14 = arith.constant 0 : index
      %c0_15 = arith.constant 0 : index
      %15 = vector.load %arg6[%c0_14, %c0_15] : memref<1x128xf32, #tpu.memory_space<vmem>>, vector<1x128xf32>
      %cst_16 = arith.constant dense<0.000000e+00> : vector<8xf32>
      %16 = vector.multi_reduction <add>, %13, %cst_16 [1] : vector<8x128xf32> to vector<8xf32>
      %17 = vector.shape_cast %16 : vector<8xf32> to vector<8x1xf32>
      %cst_17 = arith.constant 1.280000e+02 : f32
      %18 = vector.broadcast %cst_17 : f32 to vector<8x1xf32>
      %19 = arith.divf %17, %18 : vector<8x1xf32>
      %20 = vector.broadcast %19 : vector<8x1xf32> to vector<8x128xf32>
      %21 = arith.subf %13, %20 : vector<8x128xf32>
      %22 = arith.mulf %21, %21 : vector<8x128xf32>
      %cst_18 = arith.constant dense<0.000000e+00> : vector<8xf32>
      %23 = vector.multi_reduction <add>, %22, %cst_18 [1] : vector<8x128xf32> to vector<8xf32>
      %24 = vector.shape_cast %23 : vector<8xf32> to vector<8x1xf32>
      %cst_19 = arith.constant 1.280000e+02 : f32
      %25 = vector.broadcast %cst_19 : f32 to vector<8x1xf32>
      %26 = arith.divf %24, %25 : vector<8x1xf32>
      %27 = vector.broadcast %19 : vector<8x1xf32> to vector<8x128xf32>
      %28 = arith.subf %13, %27 : vector<8x128xf32>
      %cst_20 = arith.constant 9.99999996E-13 : f32
      %29 = vector.broadcast %cst_20 : f32 to vector<8x1xf32>
      %30 = arith.addf %26, %29 : vector<8x1xf32>
      %31 = math.rsqrt %30 : vector<8x1xf32>
      %32 = vector.broadcast %31 : vector<8x1xf32> to vector<8x128xf32>
      %33 = arith.mulf %28, %32 : vector<8x128xf32>
      %34 = vector.broadcast %14 : vector<1x128xf32> to vector<8x128xf32>
      %35 = arith.mulf %33, %34 : vector<8x128xf32>
      %36 = vector.broadcast %15 : vector<1x128xf32> to vector<8x128xf32>
      %37 = arith.addf %35, %36 : vector<8x128xf32>
      %38 = arith.truncf %37 : vector<8x128xf32> to vector<8x128xbf16>
      %c0_21 = arith.constant 0 : index
      %c0_22 = arith.constant 0 : index
      %39 = vector.load %arg7[%c0_21, %c0_22] : memref<128x128xbf16, #tpu.memory_space<vmem>>, vector<128x128xbf16>
      %cst_23 = arith.constant dense<0.000000e+00> : vector<8x128xf32>
      %40 = tpu.matmul %38, %39, %cst_23 {dimension_numbers = #tpu.dot_dimension_numbers<[1], [0], [0], [1], [0, 0, 1, 1], [], []>} : vector<8x128xbf16>, vector<128x128xbf16>, vector<8x128xf32> -> vector<8x128xf32>
      %c0_24 = arith.constant 0 : index
      %c0_25 = arith.constant 0 : index
      %41 = vector.load %arg8[%c0_24, %c0_25] : memref<1x128xf32, #tpu.memory_space<vmem>>, vector<1x128xf32>
      %42 = vector.broadcast %41 : vector<1x128xf32> to vector<8x128xf32>
      %43 = arith.addf %40, %42 : vector<8x128xf32>
      %cst_26 = arith.constant 5.000000e-01 : f32
      %44 = vector.broadcast %cst_26 : f32 to vector<8x128xf32>
      %45 = arith.mulf %44, %43 : vector<8x128xf32>
      %cst_27 = arith.constant 0.707106769 : f32
      %46 = vector.broadcast %cst_27 : f32 to vector<8x128xf32>
      %47 = arith.mulf %43, %46 : vector<8x128xf32>
      %48 = math.erf %47 : vector<8x128xf32>
      %cst_28 = arith.constant 1.000000e+00 : f32
      %49 = vector.broadcast %cst_28 : f32 to vector<8x128xf32>
      %50 = arith.addf %49, %48 : vector<8x128xf32>
      %51 = arith.mulf %45, %50 : vector<8x128xf32>
      %c0_29 = arith.constant 0 : index
      %c0_30 = arith.constant 0 : index
      %52 = vector.load %arg9[%c0_29, %c0_30] : memref<1x128xf32, #tpu.memory_space<vmem>>, vector<1x128xf32>
      %c0_31 = arith.constant 0 : index
      %c0_32 = arith.constant 0 : index
      %53 = vector.load %arg10[%c0_31, %c0_32] : memref<1x128xf32, #tpu.memory_space<vmem>>, vector<1x128xf32>
      %cst_33 = arith.constant dense<0.000000e+00> : vector<8xf32>
      %54 = vector.multi_reduction <add>, %51, %cst_33 [1] : vector<8x128xf32> to vector<8xf32>
      %55 = vector.shape_cast %54 : vector<8xf32> to vector<8x1xf32>
      %cst_34 = arith.constant 1.280000e+02 : f32
      %56 = vector.broadcast %cst_34 : f32 to vector<8x1xf32>
      %57 = arith.divf %55, %56 : vector<8x1xf32>
      %58 = vector.broadcast %57 : vector<8x1xf32> to vector<8x128xf32>
      %59 = arith.subf %51, %58 : vector<8x128xf32>
      %60 = arith.mulf %59, %59 : vector<8x128xf32>
      %cst_35 = arith.constant dense<0.000000e+00> : vector<8xf32>
      %61 = vector.multi_reduction <add>, %60, %cst_35 [1] : vector<8x128xf32> to vector<8xf32>
      %62 = vector.shape_cast %61 : vector<8xf32> to vector<8x1xf32>
      %cst_36 = arith.constant 1.280000e+02 : f32
      %63 = vector.broadcast %cst_36 : f32 to vector<8x1xf32>
      %64 = arith.divf %62, %63 : vector<8x1xf32>
      %65 = vector.broadcast %57 : vector<8x1xf32> to vector<8x128xf32>
      %66 = arith.subf %51, %65 : vector<8x128xf32>
      %cst_37 = arith.constant 9.99999996E-13 : f32
      %67 = vector.broadcast %cst_37 : f32 to vector<8x1xf32>
      %68 = arith.addf %64, %67 : vector<8x1xf32>
      %69 = math.rsqrt %68 : vector<8x1xf32>
      %70 = vector.broadcast %69 : vector<8x1xf32> to vector<8x128xf32>
      %71 = arith.mulf %66, %70 : vector<8x128xf32>
      %72 = vector.broadcast %52 : vector<1x128xf32> to vector<8x128xf32>
      %73 = arith.mulf %71, %72 : vector<8x128xf32>
      %74 = vector.broadcast %53 : vector<1x128xf32> to vector<8x128xf32>
      %75 = arith.addf %73, %74 : vector<8x128xf32>
      %c0_38 = arith.constant 0 : index
      %c0_39 = arith.constant 0 : index
      %76 = vector.load %arg13[%c0_38, %c0_39] : memref<8x128xf32, #tpu.memory_space<vmem>>, vector<8x128xf32>
      tpu.vector_store %arg13[%c0_38, %c0_39], %75 {strides = array<i32>} : memref<8x128xf32, #tpu.memory_space<vmem>>, vector<8x128xf32>,
    } else {
    }
    %c0 = arith.constant 0 : index
    %c0_1 = arith.constant 0 : index
    %3 = vector.load %arg13[%c0, %c0_1] : memref<8x128xf32, #tpu.memory_space<vmem>>, vector<8x128xf32>
    %4 = arith.truncf %3 : vector<8x128xf32> to vector<8x128xbf16>
    %c0_2 = arith.constant 0 : index
    %c0_3 = arith.constant 0 : index
    %5 = vector.load %arg11[%c0_2, %c0_3] : memref<128x128xbf16, #tpu.memory_space<vmem>>, vector<128x128xbf16>
    %cst = arith.constant dense<0.000000e+00> : vector<8x128xf32>
    %6 = tpu.matmul %4, %5, %cst {dimension_numbers = #tpu.dot_dimension_numbers<[1], [1], [0], [0], [0, 0, 1, 0], [], []>} : vector<8x128xbf16>, vector<128x128xbf16>, vector<8x128xf32> -> vector<8x128xf32>
    %c0_4 = arith.constant 0 : index
    %c0_5 = arith.constant 0 : index
    %7 = vector.load %arg4[%c0_4, %c0_5] : memref<8x128xf32, #tpu.memory_space<vmem>>, vector<8x128xf32>
    %8 = arith.addf %6, %7 : vector<8x128xf32>
    %c0_6 = arith.constant 0 : index
    %c0_7 = arith.constant 0 : index
    %c0_8 = arith.constant 0 : index
    %9 = vector.load %arg12[%c0_6, %c0_7, %c0_8] : memref<1x8x128xf32, #tpu.memory_space<vmem>>, vector<1x8x128xf32>
    %10 = vector.shape_cast %9 : vector<1x8x128xf32> to vector<8x128xf32>
    %11 = vector.shape_cast %8 : vector<8x128xf32> to vector<1x8x128xf32>
    tpu.vector_store %arg12[%c0_6, %c0_7, %c0_8], %11 {strides = array<i32>} : memref<1x8x128xf32, #tpu.memory_space<vmem>>, vector<1x8x128xf32>,
    return
  }
  func.func @transform_0(%arg0: i32, %arg1: i32, %arg2: i32) -> (i32, i32, i32) {
    %c0_i32 = arith.constant 0 : i32
    %c0_i32_0 = arith.constant 0 : i32
    return %arg0, %arg1, %c0_i32 : i32, i32, i32
  }
  func.func @transform_1(%arg0: i32, %arg1: i32, %arg2: i32) -> (i32, i32) {
    %c0_i32 = arith.constant 0 : i32
    return %arg1, %arg2 : i32, i32
  }
  func.func @transform_2(%arg0: i32, %arg1: i32, %arg2: i32) -> (i32, i32) {
    %c0_i32 = arith.constant 0 : i32
    %c0_i32_0 = arith.constant 0 : i32
    %c0_i32_1 = arith.constant 0 : i32
    return %c0_i32, %c0_i32_0 : i32, i32
  }
  func.func @transform_3(%arg0: i32, %arg1: i32, %arg2: i32) -> (i32, i32) {
    %c0_i32 = arith.constant 0 : i32
    %c0_i32_0 = arith.constant 0 : i32
    %c0_i32_1 = arith.constant 0 : i32
    return %c0_i32, %c0_i32_0 : i32, i32
  }
  func.func @transform_4(%arg0: i32, %arg1: i32, %arg2: i32) -> (i32, i32) {
    %c0_i32 = arith.constant 0 : i32
    %c0_i32_0 = arith.constant 0 : i32
    %c0_i32_1 = arith.constant 0 : i32
    return %c0_i32, %c0_i32_0 : i32, i32
  }
  func.func @transform_5(%arg0: i32, %arg1: i32, %arg2: i32) -> (i32, i32) {
    %c0_i32 = arith.constant 0 : i32
    %c0_i32_0 = arith.constant 0 : i32
    %c0_i32_1 = arith.constant 0 : i32
    return %c0_i32, %c0_i32_0 : i32, i32
  }
  func.func @transform_6(%arg0: i32, %arg1: i32, %arg2: i32) -> (i32, i32) {
    %c0_i32 = arith.constant 0 : i32
    %c0_i32_0 = arith.constant 0 : i32
    %c0_i32_1 = arith.constant 0 : i32
    return %c0_i32, %c0_i32_0 : i32, i32
  }
  func.func @transform_7(%arg0: i32, %arg1: i32, %arg2: i32) -> (i32, i32) {
    %c0_i32 = arith.constant 0 : i32
    %c0_i32_0 = arith.constant 0 : i32
    %c0_i32_1 = arith.constant 0 : i32
    return %c0_i32, %c0_i32_0 : i32, i32
  }
  func.func @transform_8(%arg0: i32, %arg1: i32, %arg2: i32) -> (i32, i32) {
    %c0_i32 = arith.constant 0 : i32
    %c0_i32_0 = arith.constant 0 : i32
    return %arg2, %c0_i32 : i32, i32
  }
  func.func @transform_9(%arg0: i32, %arg1: i32, %arg2: i32) -> (i32, i32, i32) {
    %c0_i32 = arith.constant 0 : i32
    return %arg0, %arg1, %arg2 : i32, i32, i32
  }
}

</mosaic_0001>

<llo_original>
// kernel: mask_transformer_forward.6
$region0: #{mask_transformer_forward.6}
  #allocation0 [shape = 'u32[]', space=smem, size = 0x4, offset = 0x4, fixed_abs, tag = 'smem constant byte address 0x4 - core index']
  #allocation1 [shape = 'u32[144,128]{1,0:T(1,128)}', space=vmem, size = 0x12000, scoped, tag = 'internal scratch']
  %s0 = inlined_call_operand.vmem [shape: f32[16,128], index: 0, kind: input, shape index: {}]
  %s1 = inlined_call_operand.vmem [shape: f32[1,128], index: 1, kind: input, shape index: {}]
  %s2 = inlined_call_operand.vmem [shape: f32[1,128], index: 2, kind: input, shape index: {}]
  %s3 = inlined_call_operand.vmem [shape: bf16[128,128], index: 3, kind: input, shape index: {}]
  %s4 = inlined_call_operand.vmem [shape: f32[1,128], index: 4, kind: input, shape index: {}]
  %s5 = inlined_call_operand.vmem [shape: f32[1,128], index: 5, kind: input, shape index: {}]
  %s6 = inlined_call_operand.vmem [shape: f32[1,128], index: 6, kind: input, shape index: {}]
  %s7 = inlined_call_operand.vmem [shape: bf16[128,128], index: 7, kind: input, shape index: {}]
  %s8 = inlined_call_operand.vmem [shape: f32[1,128], index: 8, kind: input, shape index: {}]
  %s9 = inlined_call_operand.vmem [shape: f32[16,128], index: 9, kind: output, shape index: {}]
  %s10 = sld [smem:[#allocation0]]
  $region46: #{mask_transformer_forward.6} parent=0
    _
  %s12 = ssub.s32 1, %s10
  %s13 = scalar_select 0, %s12, %s10
  // Predicated region
  $region2: #{mask_transformer_forward.6} parent=0 // pred_check
    _
  $region3: #{mask_transformer_forward.6} parent=0 // pred_check_branch
    %15 = sbr.rel (0) target = $region5
  $region4: #{mask_transformer_forward.6} parent=0 // pred_region
    _
  $region5: #{mask_transformer_forward.6} parent=0 // pred_fallthru
    _
  // Predicated region
  $region6: #{mask_transformer_forward.6} parent=0 // pred_check
    _
  $region7: #{mask_transformer_forward.6} parent=0 // pred_check_branch
    %17 = sbr.rel (0) target = $region9
  $region8: #{mask_transformer_forward.6} parent=0 // pred_region
    _
  $region9: #{mask_transformer_forward.6} parent=0 // pred_fallthru
    _
  // Predicated region
  $region10: #{mask_transformer_forward.6} parent=0 // pred_check
    _
  $region11: #{mask_transformer_forward.6} parent=0 // pred_check_branch
    %19 = sbr.rel (0) target = $region13
  $region12: #{mask_transformer_forward.6} parent=0 // pred_region
    _
  $region13: #{mask_transformer_forward.6} parent=0 // pred_fallthru
    _
  // Predicated region
  $region14: #{mask_transformer_forward.6} parent=0 // pred_check
    _
  $region15: #{mask_transformer_forward.6} parent=0 // pred_check_branch
    %21 = sbr.rel (0) target = $region17
  $region16: #{mask_transformer_forward.6} parent=0 // pred_region
    _
  $region17: #{mask_transformer_forward.6} parent=0 // pred_fallthru
    _
  // Predicated region
  $region18: #{mask_transformer_forward.6} parent=0 // pred_check
    _
  $region19: #{mask_transformer_forward.6} parent=0 // pred_check_branch
    %23 = sbr.rel (0) target = $region21
  $region20: #{mask_transformer_forward.6} parent=0 // pred_region
    _
  $region21: #{mask_transformer_forward.6} parent=0 // pred_fallthru
    _
  // Predicated region
  $region22: #{mask_transformer_forward.6} parent=0 // pred_check
    _
  $region23: #{mask_transformer_forward.6} parent=0 // pred_check_branch
    %25 = sbr.rel (0) target = $region25
  $region24: #{mask_transformer_forward.6} parent=0 // pred_region
    _
  $region25: #{mask_transformer_forward.6} parent=0 // pred_fallthru
    _
  // Predicated region
  $region26: #{mask_transformer_forward.6} parent=0 // pred_check
    _
  $region27: #{mask_transformer_forward.6} parent=0 // pred_check_branch
    %27 = sbr.rel (0) target = $region29
  $region28: #{mask_transformer_forward.6} parent=0 // pred_region
    _
  $region29: #{mask_transformer_forward.6} parent=0 // pred_fallthru
    _
  // Predicated region
  $region30: #{mask_transformer_forward.6} parent=0 // pred_check
    _
  $region31: #{mask_transformer_forward.6} parent=0 // pred_check_branch
    %29 = sbr.rel (0) target = $region33
  $region32: #{mask_transformer_forward.6} parent=0 // pred_region
    _
  $region33: #{mask_transformer_forward.6} parent=0 // pred_fallthru
    _
  // Predicated region
  $region34: #{mask_transformer_forward.6} parent=0 // pred_check
    _
  $region35: #{mask_transformer_forward.6} parent=0 // pred_check_branch
    %31 = sbr.rel (0) target = $region37
  $region36: #{mask_transformer_forward.6} parent=0 // pred_region
    _
  $region37: #{mask_transformer_forward.6} parent=0 // pred_fallthru
    _
  %v33 = vld [vmem:[%s0] sm:$0xff]
  %v34 = vld [vmem:[%s0 + $0x8] sm:$0xff]
  %v35 = vld [vmem:[%s1] sm:$0x1]
  %v36 = vld [vmem:[%s2] sm:$0x1]
  %37 = vadd.xlane.f32.xlu0 %v33
  %v38 = vpop.xlane.xlu0 %37
  %39 = vadd.xlane.f32.xlu0 %v34
  %v40 = vpop.xlane.xlu0 %39
  %v41 = vrcp.pop 128.0
  %v42 = vmul.f32 %v38, %v41
  %v43 = vmul.f32 %v40, %v41
  %v44 = vsub.f32 %v33, %v42
  %v45 = vsub.f32 %v34, %v43
  %v46 = vmul.f32 %v44, %v44
  %v47 = vmul.f32 %v45, %v45
  %48 = vadd.xlane.f32.xlu0 %v46
  %v49 = vpop.xlane.xlu0 %48
  %50 = vadd.xlane.f32.xlu0 %v47
  %v51 = vpop.xlane.xlu0 %50
  %v52 = vmul.f32 %v49, %v41
  %v53 = vmul.f32 %v51, %v41
  %v54 = vadd.f32 %v52, 1e-12
  %v55 = vadd.f32 %v53, 1e-12
  %v56 = vrsqrt.pop %v54
  %v57 = vrsqrt.pop %v55
  %v58 = vmul.f32 %v44, %v56
  %v59 = vmul.f32 %v45, %v57
  %v61 = vlaneseq
  %v62 = vshrl.u32 %v61, 7
  %v63 = vsub.s32 0, %v62
  %v64 = vrot.slane %v35, %v63
  %v66 = vmul.f32 %v58, %v64
  %v67 = vmul.f32 %v59, %v64
  %v69 = vlaneseq
  %v70 = vshrl.u32 %v69, 7
  %v71 = vsub.s32 0, %v70
  %v72 = vrot.slane %v36, %v71
  %v74 = vadd.f32 %v66, %v72
  %v75 = vadd.f32 %v67, %v72
  %v76 = vpack.c.bf16 %v75, %v74
  %v77 = vld [vmem:[%s3] sm:$0xf]
  %v78 = vld [vmem:[%s3 + $0x4] sm:$0xf]
  %v79 = vld [vmem:[%s3 + $0x8] sm:$0xf]
  %v80 = vld [vmem:[%s3 + $0xc] sm:$0xf]
  %v81 = vld [vmem:[%s3 + $0x10] sm:$0xf]
  %v82 = vld [vmem:[%s3 + $0x14] sm:$0xf]
  %v83 = vld [vmem:[%s3 + $0x18] sm:$0xf]
  %v84 = vld [vmem:[%s3 + $0x1c] sm:$0xf]
  %v85 = vld [vmem:[%s3 + $0x20] sm:$0xf]
  %v86 = vld [vmem:[%s3 + $0x24] sm:$0xf]
  %v87 = vld [vmem:[%s3 + $0x28] sm:$0xf]
  %v88 = vld [vmem:[%s3 + $0x2c] sm:$0xf]
  %v89 = vld [vmem:[%s3 + $0x30] sm:$0xf]
  %v90 = vld [vmem:[%s3 + $0x34] sm:$0xf]
  %v91 = vld [vmem:[%s3 + $0x38] sm:$0xf]
  %v92 = vld [vmem:[%s3 + $0x3c] sm:$0xf]
  %v93 = vld [vmem:[%s4] sm:$0x1]
  %v95 = vlaneseq
  %v96 = vshrl.u32 %v95, 7
  %v97 = vsub.s32 0, %v96
  %v98 = vrot.slane %v93, %v97
  %v116 = vunpack.c.l.b16 %v77
  %v117 = vunpack.c.l.b16 %v78
  %v118 = vunpack.c.l.b16 %v79
  %v119 = vunpack.c.l.b16 %v80
  %v120 = vunpack.c.l.b16 %v81
  %v121 = vunpack.c.l.b16 %v82
  %v122 = vunpack.c.l.b16 %v83
  %v123 = vunpack.c.l.b16 %v84
  %v124 = vunpack.c.l.b16 %v85
  %v125 = vunpack.c.l.b16 %v86
  %v126 = vunpack.c.l.b16 %v87
  %v127 = vunpack.c.l.b16 %v88
  %v128 = vunpack.c.l.b16 %v89
  %v129 = vunpack.c.l.b16 %v90
  %v130 = vunpack.c.l.b16 %v91
  %v131 = vunpack.c.l.b16 %v92
  %v132 = vpack.c.b16 %v117, %v116
  %v133 = vpack.c.b16 %v119, %v118
  %v134 = vpack.c.b16 %v121, %v120
  %v135 = vpack.c.b16 %v123, %v122
  %v136 = vpack.c.b16 %v125, %v124
  %v137 = vpack.c.b16 %v127, %v126
  %v138 = vpack.c.b16 %v129, %v128
  %v139 = vpack.c.b16 %v131, %v130
  %148 = vmatprep.subr.bf16.mxu0 0
  %149 = vmatpush1.bf16.msra.mxu0 %v139
  %150 = vmatprep.subr.bf16.mxu0 0
  %151 = vmatpush1.bf16.msra.mxu0 %v138
  %152 = vmatprep.subr.bf16.mxu0 0
  %153 = vmatpush1.bf16.msra.mxu0 %v137
  %154 = vmatprep.subr.bf16.mxu0 0
  %155 = vmatpush1.bf16.msra.mxu0 %v136
  %156 = vmatprep.subr.bf16.mxu0 0
  %157 = vmatpush1.bf16.msra.mxu0 %v135
  %158 = vmatprep.subr.bf16.mxu0 0
  %159 = vmatpush1.bf16.msra.mxu0 %v134
  %160 = vmatprep.subr.bf16.mxu0 0
  %161 = vmatpush1.bf16.msra.mxu0 %v133
  %162 = vmatprep.subr.bf16.mxu0 0
  %163 = vmatpush1.bf16.msra.mxu0 %v132
  %164 = vmatprep.subr.bf16.mxu0 0
  %165 = vmatpush2.bf16.msra.mxu0 0
  %166 = vmatprep.subr.bf16.mxu0 0
  %167 = vmatpush2.bf16.msra.mxu0 0
  %168 = vmatprep.subr.bf16.mxu0 0
  %169 = vmatpush2.bf16.msra.mxu0 0
  %170 = vmatprep.subr.bf16.mxu0 0
  %171 = vmatpush2.bf16.msra.mxu0 0
  %172 = vmatprep.subr.bf16.mxu0 0
  %173 = vmatpush2.bf16.msra.mxu0 0
  %174 = vmatprep.subr.bf16.mxu0 0
  %175 = vmatpush2.bf16.msra.mxu0 0
  %176 = vmatprep.subr.bf16.mxu0 0
  %177 = vmatpush2.bf16.msra.mxu0 0
  %178 = vmatprep.subr.bf16.mxu0 0
  %179 = vmatpush2.bf16.msra.mxu0 0
  %180 = vmatprep.mubr.bf16.mxu0 0
  %181 = vmatmul.mubr.bf16.gmra.mxu0 %v76
  %v182 = vpop.f32.mrf.mxu0
  %v183 = vadd.f32 %v98, %v182
  %v184 = vpop.f32.mrf.mxu0
  %v185 = vpop.f32.mrf.mxu0
  %v186 = vadd.f32 %v98, %v185
  %v187 = vpop.f32.mrf.mxu0
  %188 = vdwg.mxu0
  %v189 = vmul.f32 %v183, 0.5
  %v190 = vmul.f32 %v186, 0.5
  %v191 = vmul.f32 %v183, 0.70710677
  %v192 = vmul.f32 %v186, 0.70710677
  %v193 = verf.f32.pop %v191
  %v194 = verf.f32.pop %v192
  %v195 = vadd.f32 %v193, 1.0
  %v196 = vadd.f32 %v194, 1.0
  %v197 = vmul.f32 %v189, %v195
  %v198 = vmul.f32 %v190, %v196
  %v199 = vld [vmem:[%s5] sm:$0x1]
  %v200 = vld [vmem:[%s6] sm:$0x1]
  %201 = vadd.xlane.f32.xlu0 %v197
  %v202 = vpop.xlane.xlu0 %201
  %203 = vadd.xlane.f32.xlu0 %v198
  %v204 = vpop.xlane.xlu0 %203
  %v205 = vmul.f32 %v202, %v41
  %v206 = vmul.f32 %v204, %v41
  %v207 = vsub.f32 %v197, %v205
  %v208 = vsub.f32 %v198, %v206
  %v209 = vmul.f32 %v207, %v207
  %v210 = vmul.f32 %v208, %v208
  %211 = vadd.xlane.f32.xlu0 %v209
  %v212 = vpop.xlane.xlu0 %211
  %213 = vadd.xlane.f32.xlu0 %v210
  %v214 = vpop.xlane.xlu0 %213
  %v215 = vmul.f32 %v212, %v41
  %v216 = vmul.f32 %v214, %v41
  %v217 = vadd.f32 %v215, 1e-12
  %v218 = vadd.f32 %v216, 1e-12
  %v219 = vrsqrt.pop %v217
  %v220 = vrsqrt.pop %v218
  %v221 = vmul.f32 %v207, %v219
  %v222 = vmul.f32 %v208, %v220
  %v224 = vlaneseq
  %v225 = vshrl.u32 %v224, 7
  %v226 = vsub.s32 0, %v225
  %v227 = vrot.slane %v199, %v226
  %v229 = vmul.f32 %v221, %v227
  %v230 = vmul.f32 %v222, %v227
  %v232 = vlaneseq
  %v233 = vshrl.u32 %v232, 7
  %v234 = vsub.s32 0, %v233
  %v235 = vrot.slane %v200, %v234
  %v237 = vadd.f32 %v229, %v235
  %v238 = vadd.f32 %v230, %v235
  %v239 = vpack.c.bf16 %v238, %v237
  %v240 = vld [vmem:[%s7] sm:$0xf]
  %v241 = vld [vmem:[%s7 + $0x4] sm:$0xf]
  %v242 = vld [vmem:[%s7 + $0x8] sm:$0xf]
  %v243 = vld [vmem:[%s7 + $0xc] sm:$0xf]
  %v244 = vld [vmem:[%s7 + $0x10] sm:$0xf]
  %v245 = vld [vmem:[%s7 + $0x14] sm:$0xf]
  %v246 = vld [vmem:[%s7 + $0x18] sm:$0xf]
  %v247 = vld [vmem:[%s7 + $0x1c] sm:$0xf]
  %v248 = vld [vmem:[%s7 + $0x20] sm:$0xf]
  %v249 = vld [vmem:[%s7 + $0x24] sm:$0xf]
  %v250 = vld [vmem:[%s7 + $0x28] sm:$0xf]
  %v251 = vld [vmem:[%s7 + $0x2c] sm:$0xf]
  %v252 = vld [vmem:[%s7 + $0x30] sm:$0xf]
  %v253 = vld [vmem:[%s7 + $0x34] sm:$0xf]
  %v254 = vld [vmem:[%s7 + $0x38] sm:$0xf]
  %v255 = vld [vmem:[%s7 + $0x3c] sm:$0xf]
  %v256 = vld [vmem:[%s8] sm:$0x1]
  %v258 = vlaneseq
  %v259 = vshrl.u32 %v258, 7
  %v260 = vsub.s32 0, %v259
  %v261 = vrot.slane %v256, %v260
  %v279 = vunpack.c.l.b16 %v240
  %v280 = vunpack.c.l.b16 %v241
  %v281 = vunpack.c.l.b16 %v242
  %v282 = vunpack.c.l.b16 %v243
  %v283 = vunpack.c.l.b16 %v244
  %v284 = vunpack.c.l.b16 %v245
  %v285 = vunpack.c.l.b16 %v246
  %v286 = vunpack.c.l.b16 %v247
  %v287 = vunpack.c.l.b16 %v248
  %v288 = vunpack.c.l.b16 %v249
  %v289 = vunpack.c.l.b16 %v250
  %v290 = vunpack.c.l.b16 %v251
  %v291 = vunpack.c.l.b16 %v252
  %v292 = vunpack.c.l.b16 %v253
  %v293 = vunpack.c.l.b16 %v254
  %v294 = vunpack.c.l.b16 %v255
  %v295 = vpack.c.b16 %v280, %v279
  %v296 = vpack.c.b16 %v282, %v281
  %v297 = vpack.c.b16 %v284, %v283
  %v298 = vpack.c.b16 %v286, %v285
  %v299 = vpack.c.b16 %v288, %v287
  %v300 = vpack.c.b16 %v290, %v289
  %v301 = vpack.c.b16 %v292, %v291
  %v302 = vpack.c.b16 %v294, %v293
  %311 = vmatprep.subr.bf16.mxu0 0
  %312 = vmatpush1.bf16.msra.mxu0 %v302
  %313 = vmatprep.subr.bf16.mxu0 0
  %314 = vmatpush1.bf16.msra.mxu0 %v301
  %315 = vmatprep.subr.bf16.mxu0 0
  %316 = vmatpush1.bf16.msra.mxu0 %v300
  %317 = vmatprep.subr.bf16.mxu0 0
  %318 = vmatpush1.bf16.msra.mxu0 %v299
  %319 = vmatprep.subr.bf16.mxu0 0
  %320 = vmatpush1.bf16.msra.mxu0 %v298
  %321 = vmatprep.subr.bf16.mxu0 0
  %322 = vmatpush1.bf16.msra.mxu0 %v297
  %323 = vmatprep.subr.bf16.mxu0 0
  %324 = vmatpush1.bf16.msra.mxu0 %v296
  %325 = vmatprep.subr.bf16.mxu0 0
  %326 = vmatpush1.bf16.msra.mxu0 %v295
  %327 = vmatprep.subr.bf16.mxu0 0
  %328 = vmatpush2.bf16.msra.mxu0 0
  %329 = vmatprep.subr.bf16.mxu0 0
  %330 = vmatpush2.bf16.msra.mxu0 0
  %331 = vmatprep.subr.bf16.mxu0 0
  %332 = vmatpush2.bf16.msra.mxu0 0
  %333 = vmatprep.subr.bf16.mxu0 0
  %334 = vmatpush2.bf16.msra.mxu0 0
  %335 = vmatprep.subr.bf16.mxu0 0
  %336 = vmatpush2.bf16.msra.mxu0 0
  %337 = vmatprep.subr.bf16.mxu0 0
  %338 = vmatpush2.bf16.msra.mxu0 0
  %339 = vmatprep.subr.bf16.mxu0 0
  %340 = vmatpush2.bf16.msra.mxu0 0
  %341 = vmatprep.subr.bf16.mxu0 0
  %342 = vmatpush2.bf16.msra.mxu0 0
  %343 = vmatprep.mubr.bf16.mxu0 0
  %344 = vmatmul.mubr.bf16.gmra.mxu0 %v239
  %v345 = vpop.f32.mrf.mxu0
  %v346 = vadd.f32 %v261, %v345
  %v347 = vpop.f32.mrf.mxu0
  %v348 = vpop.f32.mrf.mxu0
  %v349 = vadd.f32 %v261, %v348
  %v350 = vpop.f32.mrf.mxu0
  %351 = vdwg.mxu0
  %352 = vst [vmem:[%s9] sm:$0xff] %v346
  %353 = vst [vmem:[%s9 + $0x8] sm:$0xff] %v349
  // Predicated region
  $region38: #{mask_transformer_forward.6} parent=0 // pred_check
    _
  $region39: #{mask_transformer_forward.6} parent=0 // pred_check_branch
    %355 = sbr.rel (0) target = $region41
  $region40: #{mask_transformer_forward.6} parent=0 // pred_region
    _
  $region41: #{mask_transformer_forward.6} parent=0 // pred_fallthru
    _
  // Predicated region
  $region42: #{mask_transformer_forward.6} parent=0 // pred_check
    _
  $region43: #{mask_transformer_forward.6} parent=0 // pred_check_branch
    %357 = sbr.rel (0) target = $region45
  $region44: #{mask_transformer_forward.6} parent=0 // pred_region
    _
  $region45: #{mask_transformer_forward.6} parent=0 // pred_fallthru
    _

// kernel: mask_transformer_forward.8
$region0: #{mask_transformer_forward.8}
  #allocation0 [shape = 'u32[]', space=smem, size = 0x4, offset = 0x4, fixed_abs, tag = 'smem constant byte address 0x4 - core index']
  #allocation1 [shape = 'u32[144,128]{1,0:T(1,128)}', space=vmem, size = 0x12000, scoped, tag = 'internal scratch']
  %s0 = inlined_call_operand.vmem [shape: f32[16,128], index: 0, kind: input, shape index: {}]
  %s1 = inlined_call_operand.vmem [shape: f32[1,128], index: 1, kind: input, shape index: {}]
  %s2 = inlined_call_operand.vmem [shape: f32[1,128], index: 2, kind: input, shape index: {}]
  %s3 = inlined_call_operand.vmem [shape: bf16[128,256], index: 3, kind: input, shape index: {}]
  %s4 = inlined_call_operand.vmem [shape: f32[1,256], index: 4, kind: input, shape index: {}]
  %s5 = inlined_call_operand.vmem [shape: bf16[256,128], index: 5, kind: input, shape index: {}]
  %s6 = inlined_call_operand.vmem [shape: f32[1,128], index: 6, kind: input, shape index: {}]
  %s7 = inlined_call_operand.vmem [shape: f32[16,128], index: 7, kind: output, shape index: {}]
  %s8 = sld [smem:[#allocation0]]
  $region38: #{mask_transformer_forward.8} parent=0
    _
  %s10 = ssub.s32 1, %s8
  %s11 = scalar_select 0, %s10, %s8
  // Predicated region
  $region2: #{mask_transformer_forward.8} parent=0 // pred_check
    _
  $region3: #{mask_transformer_forward.8} parent=0 // pred_check_branch
    %13 = sbr.rel (0) target = $region5
  $region4: #{mask_transformer_forward.8} parent=0 // pred_region
    _
  $region5: #{mask_transformer_forward.8} parent=0 // pred_fallthru
    _
  // Predicated region
  $region6: #{mask_transformer_forward.8} parent=0 // pred_check
    _
  $region7: #{mask_transformer_forward.8} parent=0 // pred_check_branch
    %15 = sbr.rel (0) target = $region9
  $region8: #{mask_transformer_forward.8} parent=0 // pred_region
    _
  $region9: #{mask_transformer_forward.8} parent=0 // pred_fallthru
    _
  // Predicated region
  $region10: #{mask_transformer_forward.8} parent=0 // pred_check
    _
  $region11: #{mask_transformer_forward.8} parent=0 // pred_check_branch
    %17 = sbr.rel (0) target = $region13
  $region12: #{mask_transformer_forward.8} parent=0 // pred_region
    _
  $region13: #{mask_transformer_forward.8} parent=0 // pred_fallthru
    _
  // Predicated region
  $region14: #{mask_transformer_forward.8} parent=0 // pred_check
    _
  $region15: #{mask_transformer_forward.8} parent=0 // pred_check_branch
    %19 = sbr.rel (0) target = $region17
  $region16: #{mask_transformer_forward.8} parent=0 // pred_region
    _
  $region17: #{mask_transformer_forward.8} parent=0 // pred_fallthru
    _
  // Predicated region
  $region18: #{mask_transformer_forward.8} parent=0 // pred_check
    _
  $region19: #{mask_transformer_forward.8} parent=0 // pred_check_branch
    %21 = sbr.rel (0) target = $region21
  $region20: #{mask_transformer_forward.8} parent=0 // pred_region
    _
  $region21: #{mask_transformer_forward.8} parent=0 // pred_fallthru
    _
  // Predicated region
  $region22: #{mask_transformer_forward.8} parent=0 // pred_check
    _
  $region23: #{mask_transformer_forward.8} parent=0 // pred_check_branch
    %23 = sbr.rel (0) target = $region25
  $region24: #{mask_transformer_forward.8} parent=0 // pred_region
    _
  $region25: #{mask_transformer_forward.8} parent=0 // pred_fallthru
    _
  // Predicated region
  $region26: #{mask_transformer_forward.8} parent=0 // pred_check
    _
  $region27: #{mask_transformer_forward.8} parent=0 // pred_check_branch
    %25 = sbr.rel (0) target = $region29
  $region28: #{mask_transformer_forward.8} parent=0 // pred_region
    _
  $region29: #{mask_transformer_forward.8} parent=0 // pred_fallthru
    _
  %v27 = vld [vmem:[%s0] sm:$0xff]
  %v28 = vld [vmem:[%s0 + $0x8] sm:$0xff]
  %v29 = vmax.f32 %v27, -65504.0
  %v30 = vmax.f32 %v28, -65504.0
  %v31 = vmin.f32 %v29, 65504.0
  %v32 = vmin.f32 %v30, 65504.0
  %v33 = vld [vmem:[%s1] sm:$0x1]
  %v34 = vld [vmem:[%s2] sm:$0x1]
  %35 = vadd.xlane.f32.xlu0 %v31
  %v36 = vpop.xlane.xlu0 %35
  %37 = vadd.xlane.f32.xlu0 %v32
  %v38 = vpop.xlane.xlu0 %37
  %v39 = vrcp.pop 128.0
  %v40 = vmul.f32 %v36, %v39
  %v41 = vmul.f32 %v38, %v39
  %v42 = vsub.f32 %v31, %v40
  %v43 = vsub.f32 %v32, %v41
  %v44 = vmul.f32 %v42, %v42
  %v45 = vmul.f32 %v43, %v43
  %46 = vadd.xlane.f32.xlu0 %v44
  %v47 = vpop.xlane.xlu0 %46
  %48 = vadd.xlane.f32.xlu0 %v45
  %v49 = vpop.xlane.xlu0 %48
  %v50 = vmul.f32 %v47, %v39
  %v51 = vmul.f32 %v49, %v39
  %v52 = vadd.f32 %v50, 1e-05
  %v53 = vadd.f32 %v51, 1e-05
  %v54 = vrsqrt.pop %v52
  %v55 = vrsqrt.pop %v53
  %v56 = vmul.f32 %v42, %v54
  %v57 = vmul.f32 %v43, %v55
  %v59 = vlaneseq
  %v60 = vshrl.u32 %v59, 7
  %v61 = vsub.s32 0, %v60
  %v62 = vrot.slane %v33, %v61
  %v64 = vmul.f32 %v56, %v62
  %v65 = vmul.f32 %v57, %v62
  %v67 = vlaneseq
  %v68 = vshrl.u32 %v67, 7
  %v69 = vsub.s32 0, %v68
  %v70 = vrot.slane %v34, %v69
  %v72 = vadd.f32 %v64, %v70
  %v73 = vadd.f32 %v65, %v70
  %v74 = vpack.c.bf16 %v73, %v72
  %v75 = vld [vmem:[%s3] sm:$0xff]
  %v76 = vld [vmem:[%s3 + $0x8] sm:$0xff]
  %v77 = vld [vmem:[%s3 + $0x10] sm:$0xff]
  %v78 = vld [vmem:[%s3 + $0x18] sm:$0xff]
  %v79 = vld [vmem:[%s3 + $0x20] sm:$0xff]
  %v80 = vld [vmem:[%s3 + $0x28] sm:$0xff]
  %v81 = vld [vmem:[%s3 + $0x30] sm:$0xff]
  %v82 = vld [vmem:[%s3 + $0x38] sm:$0xff]
  %v83 = vld [vmem:[%s3 + $0x40] sm:$0xff]
  %v84 = vld [vmem:[%s3 + $0x48] sm:$0xff]
  %v85 = vld [vmem:[%s3 + $0x50] sm:$0xff]
  %v86 = vld [vmem:[%s3 + $0x58] sm:$0xff]
  %v87 = vld [vmem:[%s3 + $0x60] sm:$0xff]
  %v88 = vld [vmem:[%s3 + $0x68] sm:$0xff]
  %v89 = vld [vmem:[%s3 + $0x70] sm:$0xff]
  %v90 = vld [vmem:[%s3 + $0x78] sm:$0xff]
  %v91 = vld [vmem:[%s4] sm:$0x3]
  %v93 = vlaneseq
  %v94 = vshrl.u32 %v93, 7
  %v95 = vsub.s32 0, %v94
  %v96 = vrot.slane %v91, %v95
  %v97 = vlaneseq
  %v98 = vshrl.u32 %v97, 7
  %v99 = vsub.s32 1, %v98
  %v100 = vrot.slane %v91, %v99
  %v119 = vunpack.c.l.b16 %v75
  %v120 = vunpack.c.h.b16 %v75
  %v121 = vunpack.c.l.b16 %v76
  %v122 = vunpack.c.h.b16 %v76
  %v123 = vunpack.c.l.b16 %v77
  %v124 = vunpack.c.h.b16 %v77
  %v125 = vunpack.c.l.b16 %v78
  %v126 = vunpack.c.h.b16 %v78
  %v127 = vunpack.c.l.b16 %v79
  %v128 = vunpack.c.h.b16 %v79
  %v129 = vunpack.c.l.b16 %v80
  %v130 = vunpack.c.h.b16 %v80
  %v131 = vunpack.c.l.b16 %v81
  %v132 = vunpack.c.h.b16 %v81
  %v133 = vunpack.c.l.b16 %v82
  %v134 = vunpack.c.h.b16 %v82
  %v135 = vunpack.c.l.b16 %v83
  %v136 = vunpack.c.h.b16 %v83
  %v137 = vunpack.c.l.b16 %v84
  %v138 = vunpack.c.h.b16 %v84
  %v139 = vunpack.c.l.b16 %v85
  %v140 = vunpack.c.h.b16 %v85
  %v141 = vunpack.c.l.b16 %v86
  %v142 = vunpack.c.h.b16 %v86
  %v143 = vunpack.c.l.b16 %v87
  %v144 = vunpack.c.h.b16 %v87
  %v145 = vunpack.c.l.b16 %v88
  %v146 = vunpack.c.h.b16 %v88
  %v147 = vunpack.c.l.b16 %v89
  %v148 = vunpack.c.h.b16 %v89
  %v149 = vunpack.c.l.b16 %v90
  %v150 = vunpack.c.h.b16 %v90
  %v151 = vpack.c.b16 %v121, %v119
  %v152 = vpack.c.b16 %v122, %v120
  %v153 = vpack.c.b16 %v125, %v123
  %v154 = vpack.c.b16 %v126, %v124
  %v155 = vpack.c.b16 %v129, %v127
  %v156 = vpack.c.b16 %v130, %v128
  %v157 = vpack.c.b16 %v133, %v131
  %v158 = vpack.c.b16 %v134, %v132
  %v159 = vpack.c.b16 %v137, %v135
  %v160 = vpack.c.b16 %v138, %v136
  %v161 = vpack.c.b16 %v141, %v139
  %v162 = vpack.c.b16 %v142, %v140
  %v163 = vpack.c.b16 %v145, %v143
  %v164 = vpack.c.b16 %v146, %v144
  %v165 = vpack.c.b16 %v149, %v147
  %v166 = vpack.c.b16 %v150, %v148
  %183 = vmatprep.subr.bf16.mxu0 %v166
  %184 = vmatpush1.bf16.msra.mxu0 %v165
  %185 = vmatprep.subr.bf16.mxu0 %v164
  %186 = vmatpush1.bf16.msra.mxu0 %v163
  %187 = vmatprep.subr.bf16.mxu0 %v162
  %188 = vmatpush1.bf16.msra.mxu0 %v161
  %189 = vmatprep.subr.bf16.mxu0 %v160
  %190 = vmatpush1.bf16.msra.mxu0 %v159
  %191 = vmatprep.subr.bf16.mxu0 %v158
  %192 = vmatpush1.bf16.msra.mxu0 %v157
  %193 = vmatprep.subr.bf16.mxu0 %v156
  %194 = vmatpush1.bf16.msra.mxu0 %v155
  %195 = vmatprep.subr.bf16.mxu0 %v154
  %196 = vmatpush1.bf16.msra.mxu0 %v153
  %197 = vmatprep.subr.bf16.mxu0 %v152
  %198 = vmatpush1.bf16.msra.mxu0 %v151
  %199 = vmatprep.subr.bf16.mxu0 0
  %200 = vmatpush2.bf16.msra.mxu0 0
  %201 = vmatprep.subr.bf16.mxu0 0
  %202 = vmatpush2.bf16.msra.mxu0 0
  %203 = vmatprep.subr.bf16.mxu0 0
  %204 = vmatpush2.bf16.msra.mxu0 0
  %205 = vmatprep.subr.bf16.mxu0 0
  %206 = vmatpush2.bf16.msra.mxu0 0
  %207 = vmatprep.subr.bf16.mxu0 0
  %208 = vmatpush2.bf16.msra.mxu0 0
  %209 = vmatprep.subr.bf16.mxu0 0
  %210 = vmatpush2.bf16.msra.mxu0 0
  %211 = vmatprep.subr.bf16.mxu0 0
  %212 = vmatpush2.bf16.msra.mxu0 0
  %213 = vmatprep.subr.bf16.mxu0 0
  %214 = vmatpush2.bf16.msra.mxu0 0
  %215 = vmatprep.mubr.bf16.mxu0 0
  %216 = vmatmul.mubr.bf16.gmra.mxu0 %v74
  %v217 = vpop.f32.mrf.mxu0
  %v218 = vadd.f32 %v96, %v217
  %v219 = vpop.f32.mrf.mxu0
  %v220 = vadd.f32 %v100, %v219
  %v221 = vpop.f32.mrf.mxu0
  %v222 = vadd.f32 %v96, %v221
  %v223 = vpop.f32.mrf.mxu0
  %v224 = vadd.f32 %v100, %v223
  %225 = vdwg.mxu0
  %v226 = vmul.f32 %v218, 0.5
  %v227 = vmul.f32 %v220, 0.5
  %v228 = vmul.f32 %v222, 0.5
  %v229 = vmul.f32 %v224, 0.5
  %v230 = vmul.f32 %v218, 0.70710677
  %v231 = vmul.f32 %v220, 0.70710677
  %v232 = vmul.f32 %v222, 0.70710677
  %v233 = vmul.f32 %v224, 0.70710677
  %v234 = verf.f32.pop %v230
  %v235 = verf.f32.pop %v231
  %v236 = verf.f32.pop %v232
  %v237 = verf.f32.pop %v233
  %v238 = vadd.f32 %v234, 1.0
  %v239 = vadd.f32 %v235, 1.0
  %v240 = vadd.f32 %v236, 1.0
  %v241 = vadd.f32 %v237, 1.0
  %v242 = vmul.f32 %v226, %v238
  %v243 = vmul.f32 %v227, %v239
  %v244 = vmul.f32 %v228, %v240
  %v245 = vmul.f32 %v229, %v241
  %v246 = vpack.c.bf16 %v244, %v242
  %v247 = vpack.c.bf16 %v245, %v243
  %v248 = vld [vmem:[%s5] sm:$0xf]
  %v249 = vld [vmem:[%s5 + $0x4] sm:$0xf]
  %v250 = vld [vmem:[%s5 + $0x8] sm:$0xf]
  %v251 = vld [vmem:[%s5 + $0xc] sm:$0xf]
  %v252 = vld [vmem:[%s5 + $0x10] sm:$0xf]
  %v253 = vld [vmem:[%s5 + $0x14] sm:$0xf]
  %v254 = vld [vmem:[%s5 + $0x18] sm:$0xf]
  %v255 = vld [vmem:[%s5 + $0x1c] sm:$0xf]
  %v256 = vld [vmem:[%s5 + $0x20] sm:$0xf]
  %v257 = vld [vmem:[%s5 + $0x24] sm:$0xf]
  %v258 = vld [vmem:[%s5 + $0x28] sm:$0xf]
  %v259 = vld [vmem:[%s5 + $0x2c] sm:$0xf]
  %v260 = vld [vmem:[%s5 + $0x30] sm:$0xf]
  %v261 = vld [vmem:[%s5 + $0x34] sm:$0xf]
  %v262 = vld [vmem:[%s5 + $0x38] sm:$0xf]
  %v263 = vld [vmem:[%s5 + $0x3c] sm:$0xf]
  %v264 = vld [vmem:[%s5 + $0x40] sm:$0xf]
  %v265 = vld [vmem:[%s5 + $0x44] sm:$0xf]
  %v266 = vld [vmem:[%s5 + $0x48] sm:$0xf]
  %v267 = vld [vmem:[%s5 + $0x4c] sm:$0xf]
  %v268 = vld [vmem:[%s5 + $0x50] sm:$0xf]
  %v269 = vld [vmem:[%s5 + $0x54] sm:$0xf]
  %v270 = vld [vmem:[%s5 + $0x58] sm:$0xf]
  %v271 = vld [vmem:[%s5 + $0x5c] sm:$0xf]
  %v272 = vld [vmem:[%s5 + $0x60] sm:$0xf]
  %v273 = vld [vmem:[%s5 + $0x64] sm:$0xf]
  %v274 = vld [vmem:[%s5 + $0x68] sm:$0xf]
  %v275 = vld [vmem:[%s5 + $0x6c] sm:$0xf]
  %v276 = vld [vmem:[%s5 + $0x70] sm:$0xf]
  %v277 = vld [vmem:[%s5 + $0x74] sm:$0xf]
  %v278 = vld [vmem:[%s5 + $0x78] sm:$0xf]
  %v279 = vld [vmem:[%s5 + $0x7c] sm:$0xf]
  %v280 = vld [vmem:[%s6] sm:$0x1]
  %v282 = vlaneseq
  %v283 = vshrl.u32 %v282, 7
  %v284 = vsub.s32 0, %v283
  %v285 = vrot.slane %v280, %v284
  %v319 = vunpack.c.l.b16 %v248
  %v320 = vunpack.c.l.b16 %v249
  %v321 = vunpack.c.l.b16 %v250
  %v322 = vunpack.c.l.b16 %v251
  %v323 = vunpack.c.l.b16 %v252
  %v324 = vunpack.c.l.b16 %v253
  %v325 = vunpack.c.l.b16 %v254
  %v326 = vunpack.c.l.b16 %v255
  %v327 = vunpack.c.l.b16 %v256
  %v328 = vunpack.c.l.b16 %v257
  %v329 = vunpack.c.l.b16 %v258
  %v330 = vunpack.c.l.b16 %v259
  %v331 = vunpack.c.l.b16 %v260
  %v332 = vunpack.c.l.b16 %v261
  %v333 = vunpack.c.l.b16 %v262
  %v334 = vunpack.c.l.b16 %v263
  %v335 = vunpack.c.l.b16 %v264
  %v336 = vunpack.c.l.b16 %v265
  %v337 = vunpack.c.l.b16 %v266
  %v338 = vunpack.c.l.b16 %v267
  %v339 = vunpack.c.l.b16 %v268
  %v340 = vunpack.c.l.b16 %v269
  %v341 = vunpack.c.l.b16 %v270
  %v342 = vunpack.c.l.b16 %v271
  %v343 = vunpack.c.l.b16 %v272
  %v344 = vunpack.c.l.b16 %v273
  %v345 = vunpack.c.l.b16 %v274
  %v346 = vunpack.c.l.b16 %v275
  %v347 = vunpack.c.l.b16 %v276
  %v348 = vunpack.c.l.b16 %v277
  %v349 = vunpack.c.l.b16 %v278
  %v350 = vunpack.c.l.b16 %v279
  %v351 = vpack.c.b16 %v320, %v319
  %v352 = vpack.c.b16 %v322, %v321
  %v353 = vpack.c.b16 %v324, %v323
  %v354 = vpack.c.b16 %v326, %v325
  %v355 = vpack.c.b16 %v328, %v327
  %v356 = vpack.c.b16 %v330, %v329
  %v357 = vpack.c.b16 %v332, %v331
  %v358 = vpack.c.b16 %v334, %v333
  %v359 = vpack.c.b16 %v336, %v335
  %v360 = vpack.c.b16 %v338, %v337
  %v361 = vpack.c.b16 %v340, %v339
  %v362 = vpack.c.b16 %v342, %v341
  %v363 = vpack.c.b16 %v344, %v343
  %v364 = vpack.c.b16 %v346, %v345
  %v365 = vpack.c.b16 %v348, %v347
  %v366 = vpack.c.b16 %v350, %v349
  %383 = vmatprep.subr.bf16.mxu0 0
  %384 = vmatpush1.bf16.msra.mxu0 %v358
  %385 = vmatprep.subr.bf16.mxu0 0
  %386 = vmatpush1.bf16.msra.mxu0 %v357
  %387 = vmatprep.subr.bf16.mxu0 0
  %388 = vmatpush1.bf16.msra.mxu0 %v356
  %389 = vmatprep.subr.bf16.mxu0 0
  %390 = vmatpush1.bf16.msra.mxu0 %v355
  %391 = vmatprep.subr.bf16.mxu0 0
  %392 = vmatpush1.bf16.msra.mxu0 %v354
  %393 = vmatprep.subr.bf16.mxu0 0
  %394 = vmatpush1.bf16.msra.mxu0 %v353
  %395 = vmatprep.subr.bf16.mxu0 0
  %396 = vmatpush1.bf16.msra.mxu0 %v352
  %397 = vmatprep.subr.bf16.mxu0 0
  %398 = vmatpush1.bf16.msra.mxu0 %v351
  %399 = vmatprep.subr.bf16.mxu0 0
  %400 = vmatpush2.bf16.msra.mxu0 %v366
  %401 = vmatprep.subr.bf16.mxu0 0
  %402 = vmatpush2.bf16.msra.mxu0 %v365
  %403 = vmatprep.subr.bf16.mxu0 0
  %404 = vmatpush2.bf16.msra.mxu0 %v364
  %405 = vmatprep.subr.bf16.mxu0 0
  %406 = vmatpush2.bf16.msra.mxu0 %v363
  %407 = vmatprep.subr.bf16.mxu0 0
  %408 = vmatpush2.bf16.msra.mxu0 %v362
  %409 = vmatprep.subr.bf16.mxu0 0
  %410 = vmatpush2.bf16.msra.mxu0 %v361
  %411 = vmatprep.subr.bf16.mxu0 0
  %412 = vmatpush2.bf16.msra.mxu0 %v360
  %413 = vmatprep.subr.bf16.mxu0 0
  %414 = vmatpush2.bf16.msra.mxu0 %v359
  %415 = vmatprep.mubr.bf16.mxu0 %v247
  %416 = vmatmul.mubr.bf16.gmra.mxu0 %v246
  %v417 = vpop.f32.mrf.mxu0
  %v418 = vadd.f32 %v285, %v417
  %v419 = vpop.f32.mrf.mxu0
  %v420 = vpop.f32.mrf.mxu0
  %v421 = vadd.f32 %v285, %v420
  %v422 = vpop.f32.mrf.mxu0
  %423 = vdwg.mxu0
  %v424 = vadd.f32 %v418, %v27
  %v425 = vadd.f32 %v421, %v28
  %v426 = vmax.f32 %v424, -65504.0
  %v427 = vmax.f32 %v425, -65504.0
  %v428 = vmin.f32 %v426, 65504.0
  %v429 = vmin.f32 %v427, 65504.0
  %430 = vst [vmem:[%s7] sm:$0xff] %v428
  %431 = vst [vmem:[%s7 + $0x8] sm:$0xff] %v429
  // Predicated region
  $region30: #{mask_transformer_forward.8} parent=0 // pred_check
    _
  $region31: #{mask_transformer_forward.8} parent=0 // pred_check_branch
    %433 = sbr.rel (0) target = $region33
  $region32: #{mask_transformer_forward.8} parent=0 // pred_region
    _
  $region33: #{mask_transformer_forward.8} parent=0 // pred_fallthru
    _
  // Predicated region
  $region34: #{mask_transformer_forward.8} parent=0 // pred_check
    _
  $region35: #{mask_transformer_forward.8} parent=0 // pred_check_branch
    %435 = sbr.rel (0) target = $region37
  $region36: #{mask_transformer_forward.8} parent=0 // pred_region
    _
  $region37: #{mask_transformer_forward.8} parent=0 // pred_fallthru
    _

// kernel: mask_transformer_forward.7
$region0: #{mask_transformer_forward.7}
  #allocation0 [shape = 'u32[]', space=smem, size = 0x4, offset = 0x4, fixed_abs, tag = 'smem constant byte address 0x4 - core index']
  #allocation1 [shape = 'u32[144,128]{1,0:T(1,128)}', space=vmem, size = 0x12000, scoped, tag = 'internal scratch']
  %s0 = inlined_call_operand.vmem [shape: f32[2,8,128], index: 0, kind: input, shape index: {}]
  %s1 = inlined_call_operand.vmem [shape: f32[1,128], index: 1, kind: input, shape index: {}]
  %s2 = inlined_call_operand.vmem [shape: f32[1,128], index: 2, kind: input, shape index: {}]
  %s3 = inlined_call_operand.vmem [shape: bf16[128,384], index: 3, kind: input, shape index: {}]
  %s4 = inlined_call_operand.vmem [shape: f32[1,384], index: 4, kind: input, shape index: {}]
  %s5 = inlined_call_operand.vmem [shape: bf16[128,128], index: 5, kind: input, shape index: {}]
  %s6 = inlined_call_operand.vmem [shape: f32[1,128], index: 6, kind: input, shape index: {}]
  %s7 = inlined_call_operand.vmem [shape: f32[2,8,128], index: 7, kind: output, shape index: {}]
  %s8 = sld [smem:[#allocation0]]
  $region61: #{mask_transformer_forward.7} parent=0
    _
  %s10 = ssub.s32 1, %s8
  %s11 = scalar_select 0, %s10, %s8
  loop: start=0, step=1, limit=4
  $region2: #{mask_transformer_forward.7} parent=0 // loop_pre_header
    _
  $region3: #{mask_transformer_forward.7} parent=0 // loop_header
    %s13 = sphi 0, %s17
    %p14 = scmp.ge.s32.totalorder %s13, 4
    %s23 = sphi 0, %s25
    %s26 = sphi 0, %s23
    %s27 = sphi 0, %s26
    %s43 = sphi 0, %s27
    %s47 = sphi 0, %s47
    %s49 = sphi 0, %s47
    %s50 = sphi 0, %s49
    %s64 = sphi 0, %s50
    %s68 = sphi 0, %s68
    %s70 = sphi 0, %s68
    %s71 = sphi 0, %s70
    %s85 = sphi 0, %s71
    %s89 = sphi 0, %s89
    %s91 = sphi 0, %s89
    %s92 = sphi 0, %s91
    %s106 = sphi 0, %s92
    %s110 = sphi 0, %s110
    %s112 = sphi 0, %s110
    %s113 = sphi 0, %s112
    %s127 = sphi 0, %s113
    %s131 = sphi 0, %s131
    %s133 = sphi 0, %s131
    %s134 = sphi 0, %s133
    %s148 = sphi 0, %s134
    %s152 = sphi 0, %s152
    %s154 = sphi 0, %s152
    %s155 = sphi 0, %s154
    %s169 = sphi 0, %s155
    %s175 = sphi 0, %s177
    %s178 = sphi 0, %s175
    %s179 = sphi 0, %s178
    %s195 = sphi 0, %s179
  $region4: #{mask_transformer_forward.7} parent=0 // loop_header_branch
    %16 = sbr.rel (%p14) target = $region8
  $region5: #{mask_transformer_forward.7} parent=0 // loop_body
    %s18 = ssub.s32 %s13, 1
    %s19 = ssub.s32 %s13, 2
    %s20 = sadd.s32 %s13, 1
    %s21 = ssub.s32 %s13, %s20
    %p22 = scmp.eq.s32.totalorder %s21, 0
    %s24 = sadd.s32 %s23, 1
    %s25 = scalar_select %p22, %s23, %s24
    %p28 = pneg %p22
    %p29 = scmp.eq.s32.totalorder %s13, 1
    %p30 = por %p28, %p29
    %p31 = scmp.ne.s32.totalorder %s23, %s26
    %p32 = scmp.eq.s32.totalorder %s13, 0
    %p33 = por %p31, %p32
    %p34 = scmp.ne.s32.totalorder %s23, %s26
    %p35 = scmp.eq.s32.totalorder %s18, 1
    %p36 = por %p34, %p35
    %p37 = scmp.ne.s32.totalorder %s26, %s27
    %p38 = scmp.eq.s32.totalorder %s18, 0
    %p39 = por %p37, %p38
    %p40 = scmp.ne.s32.totalorder %s26, %s27
    %p41 = scmp.eq.s32.totalorder %s19, 1
    %p42 = por %p40, %p41
    %p44 = scmp.ne.s32.totalorder %s27, %s43
    %p45 = scmp.eq.s32.totalorder %s19, 0
    %p46 = por %p44, %p45
    %s48 = sadd.s32 %s47, 1
    %p51 = scmp.eq.s32.totalorder %s13, 1
    %p52 = scmp.ne.s32.totalorder %s47, %s49
    %p53 = scmp.eq.s32.totalorder %s13, 0
    %p54 = por %p52, %p53
    %p55 = scmp.ne.s32.totalorder %s47, %s49
    %p56 = scmp.eq.s32.totalorder %s18, 1
    %p57 = por %p55, %p56
    %p58 = scmp.ne.s32.totalorder %s49, %s50
    %p59 = scmp.eq.s32.totalorder %s18, 0
    %p60 = por %p58, %p59
    %p61 = scmp.ne.s32.totalorder %s49, %s50
    %p62 = scmp.eq.s32.totalorder %s19, 1
    %p63 = por %p61, %p62
    %p65 = scmp.ne.s32.totalorder %s50, %s64
    %p66 = scmp.eq.s32.totalorder %s19, 0
    %p67 = por %p65, %p66
    %s69 = sadd.s32 %s68, 1
    %p72 = scmp.eq.s32.totalorder %s13, 1
    %p73 = scmp.ne.s32.totalorder %s68, %s70
    %p74 = scmp.eq.s32.totalorder %s13, 0
    %p75 = por %p73, %p74
    %p76 = scmp.ne.s32.totalorder %s68, %s70
    %p77 = scmp.eq.s32.totalorder %s18, 1
    %p78 = por %p76, %p77
    %p79 = scmp.ne.s32.totalorder %s70, %s71
    %p80 = scmp.eq.s32.totalorder %s18, 0
    %p81 = por %p79, %p80
    %p82 = scmp.ne.s32.totalorder %s70, %s71
    %p83 = scmp.eq.s32.totalorder %s19, 1
    %p84 = por %p82, %p83
    %p86 = scmp.ne.s32.totalorder %s71, %s85
    %p87 = scmp.eq.s32.totalorder %s19, 0
    %p88 = por %p86, %p87
    %s90 = sadd.s32 %s89, 1
    %p93 = scmp.eq.s32.totalorder %s13, 1
    %p94 = scmp.ne.s32.totalorder %s89, %s91
    %p95 = scmp.eq.s32.totalorder %s13, 0
    %p96 = por %p94, %p95
    %p97 = scmp.ne.s32.totalorder %s89, %s91
    %p98 = scmp.eq.s32.totalorder %s18, 1
    %p99 = por %p97, %p98
    %p100 = scmp.ne.s32.totalorder %s91, %s92
    %p101 = scmp.eq.s32.totalorder %s18, 0
    %p102 = por %p100, %p101
    %p103 = scmp.ne.s32.totalorder %s91, %s92
    %p104 = scmp.eq.s32.totalorder %s19, 1
    %p105 = por %p103, %p104
    %p107 = scmp.ne.s32.totalorder %s92, %s106
    %p108 = scmp.eq.s32.totalorder %s19, 0
    %p109 = por %p107, %p108
    %s111 = sadd.s32 %s110, 1
    %p114 = scmp.eq.s32.totalorder %s13, 1
    %p115 = scmp.ne.s32.totalorder %s110, %s112
    %p116 = scmp.eq.s32.totalorder %s13, 0
    %p117 = por %p115, %p116
    %p118 = scmp.ne.s32.totalorder %s110, %s112
    %p119 = scmp.eq.s32.totalorder %s18, 1
    %p120 = por %p118, %p119
    %p121 = scmp.ne.s32.totalorder %s112, %s113
    %p122 = scmp.eq.s32.totalorder %s18, 0
    %p123 = por %p121, %p122
    %p124 = scmp.ne.s32.totalorder %s112, %s113
    %p125 = scmp.eq.s32.totalorder %s19, 1
    %p126 = por %p124, %p125
    %p128 = scmp.ne.s32.totalorder %s113, %s127
    %p129 = scmp.eq.s32.totalorder %s19, 0
    %p130 = por %p128, %p129
    %s132 = sadd.s32 %s131, 1
    %p135 = scmp.eq.s32.totalorder %s13, 1
    %p136 = scmp.ne.s32.totalorder %s131, %s133
    %p137 = scmp.eq.s32.totalorder %s13, 0
    %p138 = por %p136, %p137
    %p139 = scmp.ne.s32.totalorder %s131, %s133
    %p140 = scmp.eq.s32.totalorder %s18, 1
    %p141 = por %p139, %p140
    %p142 = scmp.ne.s32.totalorder %s133, %s134
    %p143 = scmp.eq.s32.totalorder %s18, 0
    %p144 = por %p142, %p143
    %p145 = scmp.ne.s32.totalorder %s133, %s134
    %p146 = scmp.eq.s32.totalorder %s19, 1
    %p147 = por %p145, %p146
    %p149 = scmp.ne.s32.totalorder %s134, %s148
    %p150 = scmp.eq.s32.totalorder %s19, 0
    %p151 = por %p149, %p150
    %s153 = sadd.s32 %s152, 1
    %p156 = scmp.eq.s32.totalorder %s13, 1
    %p157 = scmp.ne.s32.totalorder %s152, %s154
    %p158 = scmp.eq.s32.totalorder %s13, 0
    %p159 = por %p157, %p158
    %p160 = scmp.ne.s32.totalorder %s152, %s154
    %p161 = scmp.eq.s32.totalorder %s18, 1
    %p162 = por %p160, %p161
    %p163 = scmp.ne.s32.totalorder %s154, %s155
    %p164 = scmp.eq.s32.totalorder %s18, 0
    %p165 = por %p163, %p164
    %p166 = scmp.ne.s32.totalorder %s154, %s155
    %p167 = scmp.eq.s32.totalorder %s19, 1
    %p168 = por %p166, %p167
    %p170 = scmp.ne.s32.totalorder %s155, %s169
    %p171 = scmp.eq.s32.totalorder %s19, 0
    %p172 = por %p170, %p171
    %s173 = ssub.s32 %s13, %s20
    %p174 = scmp.eq.s32.totalorder %s173, 0
    %s176 = sadd.s32 %s175, 1
    %s177 = scalar_select %p174, %s175, %s176
    %p180 = pneg %p174
    %p181 = scmp.eq.s32.totalorder %s13, 1
    %p182 = por %p180, %p181
    %p183 = scmp.ne.s32.totalorder %s175, %s178
    %p184 = scmp.eq.s32.totalorder %s13, 0
    %p185 = por %p183, %p184
    %p186 = scmp.ne.s32.totalorder %s175, %s178
    %p187 = scmp.eq.s32.totalorder %s18, 1
    %p188 = por %p186, %p187
    %p189 = scmp.ne.s32.totalorder %s178, %s179
    %p190 = scmp.eq.s32.totalorder %s18, 0
    %p191 = por %p189, %p190
    %p192 = scmp.ne.s32.totalorder %s178, %s179
    %p193 = scmp.eq.s32.totalorder %s19, 1
    %p194 = por %p192, %p193
    %p196 = scmp.ne.s32.totalorder %s179, %s195
    %p197 = scmp.eq.s32.totalorder %s19, 0
    %p198 = por %p196, %p197
    %p199 = scmp.le.s32.totalorder 1, %s13
    %p200 = scmp.lt.s32.totalorder %s13, 3
    %p201 = pnand %p199, %p200
    %p202 = pneg %p201
    // Predicated region
    $region9: #{mask_transformer_forward.7} parent=5 // pred_check
      _
    $region10: #{mask_transformer_forward.7} parent=5 // pred_check_branch
      %204 = sbr.rel (%p201) target = $region12
    $region11: #{mask_transformer_forward.7} parent=5 // pred_region
      %s205 = ssub.s32 %s13, 1
      // Predicated region
      $region13: #{mask_transformer_forward.7} parent=11 // pred_check
        %p206 = pneg %p60
      $region14: #{mask_transformer_forward.7} parent=11 // pred_check_branch
        %208 = sbr.rel (%p206) target = $region16
      $region15: #{mask_transformer_forward.7} parent=11 // pred_region
        _
      $region16: #{mask_transformer_forward.7} parent=11 // pred_fallthru
        _
      // Predicated region
      $region17: #{mask_transformer_forward.7} parent=11 // pred_check
        %p209 = pneg %p81
      $region18: #{mask_transformer_forward.7} parent=11 // pred_check_branch
        %211 = sbr.rel (%p209) target = $region20
      $region19: #{mask_transformer_forward.7} parent=11 // pred_region
        _
      $region20: #{mask_transformer_forward.7} parent=11 // pred_fallthru
        _
      // Predicated region
      $region21: #{mask_transformer_forward.7} parent=11 // pred_check
        %p212 = pneg %p102
      $region22: #{mask_transformer_forward.7} parent=11 // pred_check_branch
        %214 = sbr.rel (%p212) target = $region24
      $region23: #{mask_transformer_forward.7} parent=11 // pred_region
        _
      $region24: #{mask_transformer_forward.7} parent=11 // pred_fallthru
        _
      // Predicated region
      $region25: #{mask_transformer_forward.7} parent=11 // pred_check
        %p215 = pneg %p123
      $region26: #{mask_transformer_forward.7} parent=11 // pred_check_branch
        %217 = sbr.rel (%p215) target = $region28
      $region27: #{mask_transformer_forward.7} parent=11 // pred_region
        _
      $region28: #{mask_transformer_forward.7} parent=11 // pred_fallthru
        _
      // Predicated region
      $region29: #{mask_transformer_forward.7} parent=11 // pred_check
        %p218 = pneg %p144
      $region30: #{mask_transformer_forward.7} parent=11 // pred_check_branch
        %220 = sbr.rel (%p218) target = $region32
      $region31: #{mask_transformer_forward.7} parent=11 // pred_region
        _
      $region32: #{mask_transformer_forward.7} parent=11 // pred_fallthru
        _
      // Predicated region
      $region33: #{mask_transformer_forward.7} parent=11 // pred_check
        %p221 = pneg %p165
      $region34: #{mask_transformer_forward.7} parent=11 // pred_check_branch
        %223 = sbr.rel (%p221) target = $region36
      $region35: #{mask_transformer_forward.7} parent=11 // pred_region
        _
      $region36: #{mask_transformer_forward.7} parent=11 // pred_fallthru
        _
    $region12: #{mask_transformer_forward.7} parent=5 // pred_fallthru
      _
    %p224 = scmp.lt.s32.totalorder %s13, 2
    // Predicated region
    $region37: #{mask_transformer_forward.7} parent=5 // pred_check
      %p225 = pneg %p224
    $region38: #{mask_transformer_forward.7} parent=5 // pred_check_branch
      %227 = sbr.rel (%p225) target = $region40
    $region39: #{mask_transformer_forward.7} parent=5 // pred_region
      // Predicated region
      $region41: #{mask_transformer_forward.7} parent=39 // pred_check
        %p228 = pneg %p33
      $region42: #{mask_transformer_forward.7} parent=39 // pred_check_branch
        %230 = sbr.rel (%p228) target = $region44
      $region43: #{mask_transformer_forward.7} parent=39 // pred_region
        %p231 = scmp.lt.s32.totalorder %s13, 1
        %s232 = scalar_select %p231, %s13, 1
        %s233 = smul.addr %s232, 8
        %s234 = scalar_lea.vmem %s0, %s233
      $region44: #{mask_transformer_forward.7} parent=39 // pred_fallthru
        _
    $region40: #{mask_transformer_forward.7} parent=5 // pred_fallthru
      _
    %p235 = scmp.le.s32.totalorder 1, %s13
    %p236 = scmp.lt.s32.totalorder %s13, 3
    %p237 = pnand %p235, %p236
    %p238 = pneg %p237
    // Predicated region
    $region45: #{mask_transformer_forward.7} parent=5 // pred_check
      _
    $region46: #{mask_transformer_forward.7} parent=5 // pred_check_branch
      %240 = sbr.rel (%p237) target = $region48
    $region47: #{mask_transformer_forward.7} parent=5 // pred_region
      %s241 = ssub.s32 %s13, 1
      %p242 = scmp.lt.s32.totalorder %s18, 1
      %s243 = scalar_select %p242, %s18, 1
      %s244 = smul.addr %s243, 8
      %s245 = scalar_lea.vmem %s0, %s244
      %p246 = pneg %p39
      %p247 = pneg %p36
      %p248 = pneg %p60
      %p249 = pneg %p57
      %p250 = pneg %p81
      %p251 = pneg %p78
      %p252 = pneg %p102
      %p253 = pneg %p99
      %p254 = pneg %p123
      %p255 = pneg %p120
      %p256 = pneg %p144
      %p257 = pneg %p141
      %p258 = pneg %p165
      %p259 = pneg %p162
      %p260 = pneg %p191
      %p261 = pneg %p188
      %p262 = scmp.lt.s32.totalorder %s18, 1
      %s263 = scalar_select %p262, %s18, 1
      %s264 = smul.addr %s263, 8
      %s265 = scalar_lea.vmem %s7, %s264
      %p266 = scmp.lt.s32.totalorder %s18, 1
      %s267 = scalar_select %p266, %s18, 1
      %s268 = smul.addr %s267, 8
      %s269 = scalar_lea.vmem %s0, %s268
      %p270 = scmp.lt.s32.totalorder %s18, 1
      %s271 = scalar_select %p270, %s18, 1
      %s272 = smul.addr %s271, 8
      %s273 = scalar_lea.vmem %s7, %s272
      %v275 = vld [vmem:[%s269] sm:$0xff]
      %v276 = vmax.f32 %v275, -65504.0
      %v277 = vmin.f32 %v276, 65504.0
      %v278 = vld [vmem:[%s1] sm:$0x1]
      %v279 = vld [vmem:[%s2] sm:$0x1]
      %280 = vadd.xlane.f32.xlu0 %v277
      %v281 = vpop.xlane.xlu0 %280
      %v282 = vrcp.pop 128.0
      %v283 = vmul.f32 %v281, %v282
      %v284 = vsub.f32 %v277, %v283
      %v285 = vmul.f32 %v284, %v284
      %286 = vadd.xlane.f32.xlu0 %v285
      %v287 = vpop.xlane.xlu0 %286
      %v288 = vmul.f32 %v287, %v282
      %v289 = vadd.f32 %v288, 1e-05
      %v290 = vrsqrt.pop %v289
      %v291 = vmul.f32 %v284, %v290
      %v293 = vlaneseq
      %v294 = vshrl.u32 %v293, 7
      %v295 = vsub.s32 0, %v294
      %v296 = vrot.slane %v278, %v295
      %v298 = vmul.f32 %v291, %v296
      %v300 = vlaneseq
      %v301 = vshrl.u32 %v300, 7
      %v302 = vsub.s32 0, %v301
      %v303 = vrot.slane %v279, %v302
      %v305 = vadd.f32 %v298, %v303
      %v306 = vpack.c.bf16 %v305, %v305
      %v307 = vld [vmem:[%s3] sm:$0xff]
      %v308 = vld [vmem:[%s3 + $0x8] sm:$0xf]
      %v309 = vld [vmem:[%s3 + $0xc] sm:$0xff]
      %v310 = vld [vmem:[%s3 + $0x14] sm:$0xf]
      %v311 = vld [vmem:[%s3 + $0x18] sm:$0xff]
      %v312 = vld [vmem:[%s3 + $0x20] sm:$0xf]
      %v313 = vld [vmem:[%s3 + $0x24] sm:$0xff]
      %v314 = vld [vmem:[%s3 + $0x2c] sm:$0xf]
      %v315 = vld [vmem:[%s3 + $0x30] sm:$0xff]
      %v316 = vld [vmem:[%s3 + $0x38] sm:$0xf]
      %v317 = vld [vmem:[%s3 + $0x3c] sm:$0xff]
      %v318 = vld [vmem:[%s3 + $0x44] sm:$0xf]
      %v319 = vld [vmem:[%s3 + $0x48] sm:$0xff]
      %v320 = vld [vmem:[%s3 + $0x50] sm:$0xf]
      %v321 = vld [vmem:[%s3 + $0x54] sm:$0xff]
      %v322 = vld [vmem:[%s3 + $0x5c] sm:$0xf]
      %v323 = vld [vmem:[%s3 + $0x60] sm:$0xff]
      %v324 = vld [vmem:[%s3 + $0x68] sm:$0xf]
      %v325 = vld [vmem:[%s3 + $0x6c] sm:$0xff]
      %v326 = vld [vmem:[%s3 + $0x74] sm:$0xf]
      %v327 = vld [vmem:[%s3 + $0x78] sm:$0xff]
      %v328 = vld [vmem:[%s3 + $0x80] sm:$0xf]
      %v329 = vld [vmem:[%s3 + $0x84] sm:$0xff]
      %v330 = vld [vmem:[%s3 + $0x8c] sm:$0xf]
      %v331 = vld [vmem:[%s3 + $0x90] sm:$0xff]
      %v332 = vld [vmem:[%s3 + $0x98] sm:$0xf]
      %v333 = vld [vmem:[%s3 + $0x9c] sm:$0xff]
      %v334 = vld [vmem:[%s3 + $0xa4] sm:$0xf]
      %v335 = vld [vmem:[%s3 + $0xa8] sm:$0xff]
      %v336 = vld [vmem:[%s3 + $0xb0] sm:$0xf]
      %v337 = vld [vmem:[%s3 + $0xb4] sm:$0xff]
      %v338 = vld [vmem:[%s3 + $0xbc] sm:$0xf]
      %v339 = vld [vmem:[%s4] sm:$0x7]
      %v341 = vlaneseq
      %v342 = vshrl.u32 %v341, 7
      %v343 = vsub.s32 0, %v342
      %v344 = vrot.slane %v339, %v343
      %v345 = vlaneseq
      %v346 = vshrl.u32 %v345, 7
      %v347 = vsub.s32 1, %v346
      %v348 = vrot.slane %v339, %v347
      %v349 = vlaneseq
      %v350 = vshrl.u32 %v349, 7
      %v351 = vsub.s32 2, %v350
      %v352 = vrot.slane %v339, %v351
      %v388 = vunpack.c.l.b16 %v307
      %v389 = vunpack.c.h.b16 %v307
      %v390 = vunpack.c.l.b16 %v308
      %v391 = vunpack.c.l.b16 %v309
      %v392 = vunpack.c.h.b16 %v309
      %v393 = vunpack.c.l.b16 %v310
      %v394 = vunpack.c.l.b16 %v311
      %v395 = vunpack.c.h.b16 %v311
      %v396 = vunpack.c.l.b16 %v312
      %v397 = vunpack.c.l.b16 %v313
      %v398 = vunpack.c.h.b16 %v313
      %v399 = vunpack.c.l.b16 %v314
      %v400 = vunpack.c.l.b16 %v315
      %v401 = vunpack.c.h.b16 %v315
      %v402 = vunpack.c.l.b16 %v316
      %v403 = vunpack.c.l.b16 %v317
      %v404 = vunpack.c.h.b16 %v317
      %v405 = vunpack.c.l.b16 %v318
      %v406 = vunpack.c.l.b16 %v319
      %v407 = vunpack.c.h.b16 %v319
      %v408 = vunpack.c.l.b16 %v320
      %v409 = vunpack.c.l.b16 %v321
      %v410 = vunpack.c.h.b16 %v321
      %v411 = vunpack.c.l.b16 %v322
      %v412 = vunpack.c.l.b16 %v323
      %v413 = vunpack.c.h.b16 %v323
      %v414 = vunpack.c.l.b16 %v324
      %v415 = vunpack.c.l.b16 %v325
      %v416 = vunpack.c.h.b16 %v325
      %v417 = vunpack.c.l.b16 %v326
      %v418 = vunpack.c.l.b16 %v327
      %v419 = vunpack.c.h.b16 %v327
      %v420 = vunpack.c.l.b16 %v328
      %v421 = vunpack.c.l.b16 %v329
      %v422 = vunpack.c.h.b16 %v329
      %v423 = vunpack.c.l.b16 %v330
      %v424 = vunpack.c.l.b16 %v331
      %v425 = vunpack.c.h.b16 %v331
      %v426 = vunpack.c.l.b16 %v332
      %v427 = vunpack.c.l.b16 %v333
      %v428 = vunpack.c.h.b16 %v333
      %v429 = vunpack.c.l.b16 %v334
      %v430 = vunpack.c.l.b16 %v335
      %v431 = vunpack.c.h.b16 %v335
      %v432 = vunpack.c.l.b16 %v336
      %v433 = vunpack.c.l.b16 %v337
      %v434 = vunpack.c.h.b16 %v337
      %v435 = vunpack.c.l.b16 %v338
      %v436 = vpack.c.b16 %v391, %v388
      %v437 = vpack.c.b16 %v392, %v389
      %v438 = vpack.c.b16 %v393, %v390
      %v439 = vpack.c.b16 %v397, %v394
      %v440 = vpack.c.b16 %v398, %v395
      %v441 = vpack.c.b16 %v399, %v396
      %v442 = vpack.c.b16 %v403, %v400
      %v443 = vpack.c.b16 %v404, %v401
      %v444 = vpack.c.b16 %v405, %v402
      %v445 = vpack.c.b16 %v409, %v406
      %v446 = vpack.c.b16 %v410, %v407
      %v447 = vpack.c.b16 %v411, %v408
      %v448 = vpack.c.b16 %v415, %v412
      %v449 = vpack.c.b16 %v416, %v413
      %v450 = vpack.c.b16 %v417, %v414
      %v451 = vpack.c.b16 %v421, %v418
      %v452 = vpack.c.b16 %v422, %v419
      %v453 = vpack.c.b16 %v423, %v420
      %v454 = vpack.c.b16 %v427, %v424
      %v455 = vpack.c.b16 %v428, %v425
      %v456 = vpack.c.b16 %v429, %v426
      %v457 = vpack.c.b16 %v433, %v430
      %v458 = vpack.c.b16 %v434, %v431
      %v459 = vpack.c.b16 %v435, %v432
      %484 = vmatprep.subr.bf16.mxu0 %v458
      %485 = vmatpush1.bf16.msra.mxu0 %v457
      %486 = vmatprep.subr.bf16.mxu0 %v455
      %487 = vmatpush1.bf16.msra.mxu0 %v454
      %488 = vmatprep.subr.bf16.mxu0 %v452
      %489 = vmatpush1.bf16.msra.mxu0 %v451
      %490 = vmatprep.subr.bf16.mxu0 %v449
      %491 = vmatpush1.bf16.msra.mxu0 %v448
      %492 = vmatprep.subr.bf16.mxu0 %v446
      %493 = vmatpush1.bf16.msra.mxu0 %v445
      %494 = vmatprep.subr.bf16.mxu0 %v443
      %495 = vmatpush1.bf16.msra.mxu0 %v442
      %496 = vmatprep.subr.bf16.mxu0 %v440
      %497 = vmatpush1.bf16.msra.mxu0 %v439
      %498 = vmatprep.subr.bf16.mxu0 %v437
      %499 = vmatpush1.bf16.msra.mxu0 %v436
      %500 = vmatprep.subr.bf16.mxu0 0
      %501 = vmatpush2.bf16.msra.mxu0 0
      %502 = vmatprep.subr.bf16.mxu0 0
      %503 = vmatpush2.bf16.msra.mxu0 0
      %504 = vmatprep.subr.bf16.mxu0 0
      %505 = vmatpush2.bf16.msra.mxu0 0
      %506 = vmatprep.subr.bf16.mxu0 0
      %507 = vmatpush2.bf16.msra.mxu0 0
      %508 = vmatprep.subr.bf16.mxu0 0
      %509 = vmatpush2.bf16.msra.mxu0 0
      %510 = vmatprep.subr.bf16.mxu0 0
      %511 = vmatpush2.bf16.msra.mxu0 0
      %512 = vmatprep.subr.bf16.mxu0 0
      %513 = vmatpush2.bf16.msra.mxu0 0
      %514 = vmatprep.subr.bf16.mxu0 0
      %515 = vmatpush2.bf16.msra.mxu0 0
      %516 = vmatprep.mubr.bf16.mxu0 0
      %517 = vmatmul.mubr.bf16.gmra.mxu0 %v306
      %v518 = vpop.f32.mrf.mxu0
      %v519 = vadd.f32 %v344, %v518
      %v520 = vpop.f32.mrf.mxu0
      %v521 = vadd.f32 %v348, %v520
      %v522 = vpop.f32.mrf.mxu0
      %v523 = vpop.f32.mrf.mxu0
      %524 = vdwg.mxu0
      %525 = vmatprep.subr.bf16.mxu0 0
      %526 = vmatpush1.bf16.msra.mxu0 %v459
      %527 = vmatprep.subr.bf16.mxu0 0
      %528 = vmatpush1.bf16.msra.mxu0 %v456
      %529 = vmatprep.subr.bf16.mxu0 0
      %530 = vmatpush1.bf16.msra.mxu0 %v453
      %531 = vmatprep.subr.bf16.mxu0 0
      %532 = vmatpush1.bf16.msra.mxu0 %v450
      %533 = vmatprep.subr.bf16.mxu0 0
      %534 = vmatpush1.bf16.msra.mxu0 %v447
      %535 = vmatprep.subr.bf16.mxu0 0
      %536 = vmatpush1.bf16.msra.mxu0 %v444
      %537 = vmatprep.subr.bf16.mxu0 0
      %538 = vmatpush1.bf16.msra.mxu0 %v441
      %539 = vmatprep.subr.bf16.mxu0 0
      %540 = vmatpush1.bf16.msra.mxu0 %v438
      %541 = vmatprep.subr.bf16.mxu0 0
      %542 = vmatpush2.bf16.msra.mxu0 0
      %543 = vmatprep.subr.bf16.mxu0 0
      %544 = vmatpush2.bf16.msra.mxu0 0
      %545 = vmatprep.subr.bf16.mxu0 0
      %546 = vmatpush2.bf16.msra.mxu0 0
      %547 = vmatprep.subr.bf16.mxu0 0
      %548 = vmatpush2.bf16.msra.mxu0 0
      %549 = vmatprep.subr.bf16.mxu0 0
      %550 = vmatpush2.bf16.msra.mxu0 0
      %551 = vmatprep.subr.bf16.mxu0 0
      %552 = vmatpush2.bf16.msra.mxu0 0
      %553 = vmatprep.subr.bf16.mxu0 0
      %554 = vmatpush2.bf16.msra.mxu0 0
      %555 = vmatprep.subr.bf16.mxu0 0
      %556 = vmatpush2.bf16.msra.mxu0 0
      %557 = vmatprep.mubr.bf16.mxu0 0
      %558 = vmatmul.mubr.bf16.gmra.mxu0 %v306
      %v559 = vpop.f32.mrf.mxu0
      %v560 = vadd.f32 %v352, %v559
      %v561 = vpop.f32.mrf.mxu0
      %v562 = vpop.f32.mrf.mxu0
      %v563 = vpop.f32.mrf.mxu0
      %564 = vdwg.mxu0
      %v565 = vld [vmem:[%s5] sm:$0xf]
      %v566 = vld [vmem:[%s5 + $0x4] sm:$0xf]
      %v567 = vld [vmem:[%s5 + $0x8] sm:$0xf]
      %v568 = vld [vmem:[%s5 + $0xc] sm:$0xf]
      %v569 = vld [vmem:[%s5 + $0x10] sm:$0xf]
      %v570 = vld [vmem:[%s5 + $0x14] sm:$0xf]
      %v571 = vld [vmem:[%s5 + $0x18] sm:$0xf]
      %v572 = vld [vmem:[%s5 + $0x1c] sm:$0xf]
      %v573 = vld [vmem:[%s5 + $0x20] sm:$0xf]
      %v574 = vld [vmem:[%s5 + $0x24] sm:$0xf]
      %v575 = vld [vmem:[%s5 + $0x28] sm:$0xf]
      %v576 = vld [vmem:[%s5 + $0x2c] sm:$0xf]
      %v577 = vld [vmem:[%s5 + $0x30] sm:$0xf]
      %v578 = vld [vmem:[%s5 + $0x34] sm:$0xf]
      %v579 = vld [vmem:[%s5 + $0x38] sm:$0xf]
      %v580 = vld [vmem:[%s5 + $0x3c] sm:$0xf]
      %v581 = vpack.c.bf16 %v519, %v519
      %v582 = vpack.c.bf16 %v521, %v521
      %vm583 = vcmask 261120
      %v585 = vsel %vm583, %v581, 0
      %v588 = vsel %vm583, %v582, 0
      %590 = vmatprep.subr.bf16.mxu0 0
      %591 = vmatpush1.bf16.xpose.msra.mxu0 0
      %592 = vmatprep.subr.bf16.mxu0 0
      %593 = vmatpush1.bf16.xpose.msra.mxu0 0
      %594 = vmatprep.subr.bf16.mxu0 0
      %595 = vmatpush1.bf16.xpose.msra.mxu0 0
      %596 = vmatprep.subr.bf16.mxu0 0
      %597 = vmatpush1.bf16.xpose.msra.mxu0 0
      %598 = vmatprep.subr.bf16.mxu0 0
      %599 = vmatpush1.bf16.xpose.msra.mxu0 0
      %600 = vmatprep.subr.bf16.mxu0 0
      %601 = vmatpush1.bf16.xpose.msra.mxu0 0
      %602 = vmatprep.subr.bf16.mxu0 0
      %603 = vmatpush1.bf16.xpose.msra.mxu0 0
      %604 = vmatprep.subr.bf16.mxu0 0
      %605 = vmatpush1.bf16.xpose.msra.mxu0 %v588
      %606 = vmatprep.subr.bf16.mxu0 0
      %607 = vmatpush2.bf16.xpose.msra.mxu0 0
      %608 = vmatprep.subr.bf16.mxu0 0
      %609 = vmatpush2.bf16.xpose.msra.mxu0 0
      %610 = vmatprep.subr.bf16.mxu0 0
      %611 = vmatpush2.bf16.xpose.msra.mxu0 0
      %612 = vmatprep.subr.bf16.mxu0 0
      %613 = vmatpush2.bf16.xpose.msra.mxu0 0
      %614 = vmatprep.subr.bf16.mxu0 0
      %615 = vmatpush2.bf16.xpose.msra.mxu0 0
      %616 = vmatprep.subr.bf16.mxu0 0
      %617 = vmatpush2.bf16.xpose.msra.mxu0 0
      %618 = vmatprep.subr.bf16.mxu0 0
      %619 = vmatpush2.bf16.xpose.msra.mxu0 0
      %620 = vmatprep.subr.bf16.mxu0 0
      %621 = vmatpush2.bf16.xpose.msra.mxu0 0
      %622 = vmatprep.mubr.bf16.mxu0 0
      %623 = vmatmul.mubr.bf16.gmra.mxu0 %v585
      %v624 = vpop.f32.mrf.mxu0
      %v625 = vadd.f32 0.0, %v624
      %v626 = vpop.f32.mrf.mxu0
      %v627 = vpop.f32.mrf.mxu0
      %v628 = vpop.f32.mrf.mxu0
      %629 = vdwg.mxu0
      %vm630 = vcmask 64512
      %v631 = vsel %vm630, %v625, -inf
      %632 = vmax.xlane.f32.xlu0 %v631
      %v633 = vpop.xlane.xlu0 %632
      %v634 = vsub.f32 %v625, %v633
      %v635 = vmul.f32 %v634, 1.442695
      %v636 = vpow.pop %v635
      %v637 = vsel %vm630, %v636, 0.0
      %638 = vadd.xlane.f32.xlu0 %v637
      %v639 = vpop.xlane.xlu0 %638
      %v640 = vrcp.pop %v639
      %v641 = vmul.f32 %v636, %v640
      %v642 = vpack.c.bf16 %v641, %v641
      %v643 = vpack.c.bf16 %v560, %v560
      %v645 = vsel %vm630, %v642, 0
      %vm647 = vcmask 1043456
      %v649 = vsel %vm647, %v643, 0
      %651 = vmatprep.subr.bf16.mxu0 0
      %652 = vmatpush1.bf16.msra.mxu0 0
      %653 = vmatprep.subr.bf16.mxu0 0
      %654 = vmatpush1.bf16.msra.mxu0 0
      %655 = vmatprep.subr.bf16.mxu0 0
      %656 = vmatpush1.bf16.msra.mxu0 0
      %657 = vmatprep.subr.bf16.mxu0 0
      %658 = vmatpush1.bf16.msra.mxu0 0
      %659 = vmatprep.subr.bf16.mxu0 0
      %660 = vmatpush1.bf16.msra.mxu0 0
      %661 = vmatprep.subr.bf16.mxu0 0
      %662 = vmatpush1.bf16.msra.mxu0 0
      %663 = vmatprep.subr.bf16.mxu0 0
      %664 = vmatpush1.bf16.msra.mxu0 0
      %665 = vmatprep.subr.bf16.mxu0 0
      %666 = vmatpush1.bf16.msra.mxu0 %v649
      %667 = vmatprep.subr.bf16.mxu0 0
      %668 = vmatpush2.bf16.msra.mxu0 0
      %669 = vmatprep.subr.bf16.mxu0 0
      %670 = vmatpush2.bf16.msra.mxu0 0
      %671 = vmatprep.subr.bf16.mxu0 0
      %672 = vmatpush2.bf16.msra.mxu0 0
      %673 = vmatprep.subr.bf16.mxu0 0
      %674 = vmatpush2.bf16.msra.mxu0 0
      %675 = vmatprep.subr.bf16.mxu0 0
      %676 = vmatpush2.bf16.msra.mxu0 0
      %677 = vmatprep.subr.bf16.mxu0 0
      %678 = vmatpush2.bf16.msra.mxu0 0
      %679 = vmatprep.subr.bf16.mxu0 0
      %680 = vmatpush2.bf16.msra.mxu0 0
      %681 = vmatprep.subr.bf16.mxu0 0
      %682 = vmatpush2.bf16.msra.mxu0 0
      %683 = vmatprep.mubr.bf16.mxu0 0
      %684 = vmatmul.mubr.bf16.gmra.mxu0 %v645
      %v685 = vpop.f32.mrf.mxu0
      %v686 = vadd.f32 0.0, %v685
      %v687 = vpop.f32.mrf.mxu0
      %v688 = vpop.f32.mrf.mxu0
      %v689 = vpop.f32.mrf.mxu0
      %690 = vdwg.mxu0
      %v691 = vpack.c.bf16 %v686, %v686
      %693 = vrot.lane.b32.xlu0 %v581, 96
      %v694 = vpop.permute.xlu0 %693
      %696 = vrot.lane.b32.xlu0 %v582, 96
      %v697 = vpop.permute.xlu0 %696
      %v699 = vsel %vm583, %v694, 0
      %v702 = vsel %vm583, %v697, 0
      %704 = vmatprep.subr.bf16.mxu0 0
      %705 = vmatpush1.bf16.xpose.msra.mxu0 0
      %706 = vmatprep.subr.bf16.mxu0 0
      %707 = vmatpush1.bf16.xpose.msra.mxu0 0
      %708 = vmatprep.subr.bf16.mxu0 0
      %709 = vmatpush1.bf16.xpose.msra.mxu0 0
      %710 = vmatprep.subr.bf16.mxu0 0
      %711 = vmatpush1.bf16.xpose.msra.mxu0 0
      %712 = vmatprep.subr.bf16.mxu0 0
      %713 = vmatpush1.bf16.xpose.msra.mxu0 0
      %714 = vmatprep.subr.bf16.mxu0 0
      %715 = vmatpush1.bf16.xpose.msra.mxu0 0
      %716 = vmatprep.subr.bf16.mxu0 0
      %717 = vmatpush1.bf16.xpose.msra.mxu0 0
      %718 = vmatprep.subr.bf16.mxu0 0
      %719 = vmatpush1.bf16.xpose.msra.mxu0 %v702
      %720 = vmatprep.subr.bf16.mxu0 0
      %721 = vmatpush2.bf16.xpose.msra.mxu0 0
      %722 = vmatprep.subr.bf16.mxu0 0
      %723 = vmatpush2.bf16.xpose.msra.mxu0 0
      %724 = vmatprep.subr.bf16.mxu0 0
      %725 = vmatpush2.bf16.xpose.msra.mxu0 0
      %726 = vmatprep.subr.bf16.mxu0 0
      %727 = vmatpush2.bf16.xpose.msra.mxu0 0
      %728 = vmatprep.subr.bf16.mxu0 0
      %729 = vmatpush2.bf16.xpose.msra.mxu0 0
      %730 = vmatprep.subr.bf16.mxu0 0
      %731 = vmatpush2.bf16.xpose.msra.mxu0 0
      %732 = vmatprep.subr.bf16.mxu0 0
      %733 = vmatpush2.bf16.xpose.msra.mxu0 0
      %734 = vmatprep.subr.bf16.mxu0 0
      %735 = vmatpush2.bf16.xpose.msra.mxu0 0
      %736 = vmatprep.mubr.bf16.mxu0 0
      %737 = vmatmul.mubr.bf16.gmra.mxu0 %v699
      %v738 = vpop.f32.mrf.mxu0
      %v739 = vadd.f32 0.0, %v738
      %v740 = vpop.f32.mrf.mxu0
      %v741 = vpop.f32.mrf.mxu0
      %v742 = vpop.f32.mrf.mxu0
      %743 = vdwg.mxu0
      %v744 = vsel %vm630, %v739, -inf
      %745 = vmax.xlane.f32.xlu0 %v744
      %v746 = vpop.xlane.xlu0 %745
      %v747 = vsub.f32 %v739, %v746
      %v748 = vmul.f32 %v747, 1.442695
      %v749 = vpow.pop %v748
      %v750 = vsel %vm630, %v749, 0.0
      %751 = vadd.xlane.f32.xlu0 %v750
      %v752 = vpop.xlane.xlu0 %751
      %v753 = vrcp.pop %v752
      %v754 = vmul.f32 %v749, %v753
      %v755 = vpack.c.bf16 %v754, %v754
      %757 = vrot.lane.b32.xlu0 %v643, 96
      %v758 = vpop.permute.xlu0 %757
      %v760 = vsel %vm630, %v755, 0
      %v763 = vsel %vm647, %v758, 0
      %765 = vmatprep.subr.bf16.mxu0 0
      %766 = vmatpush1.bf16.msra.mxu0 0
      %767 = vmatprep.subr.bf16.mxu0 0
      %768 = vmatpush1.bf16.msra.mxu0 0
      %769 = vmatprep.subr.bf16.mxu0 0
      %770 = vmatpush1.bf16.msra.mxu0 0
      %771 = vmatprep.subr.bf16.mxu0 0
      %772 = vmatpush1.bf16.msra.mxu0 0
      %773 = vmatprep.subr.bf16.mxu0 0
      %774 = vmatpush1.bf16.msra.mxu0 0
      %775 = vmatprep.subr.bf16.mxu0 0
      %776 = vmatpush1.bf16.msra.mxu0 0
      %777 = vmatprep.subr.bf16.mxu0 0
      %778 = vmatpush1.bf16.msra.mxu0 0
      %779 = vmatprep.subr.bf16.mxu0 0
      %780 = vmatpush1.bf16.msra.mxu0 %v763
      %781 = vmatprep.subr.bf16.mxu0 0
      %782 = vmatpush2.bf16.msra.mxu0 0
      %783 = vmatprep.subr.bf16.mxu0 0
      %784 = vmatpush2.bf16.msra.mxu0 0
      %785 = vmatprep.subr.bf16.mxu0 0
      %786 = vmatpush2.bf16.msra.mxu0 0
      %787 = vmatprep.subr.bf16.mxu0 0
      %788 = vmatpush2.bf16.msra.mxu0 0
      %789 = vmatprep.subr.bf16.mxu0 0
      %790 = vmatpush2.bf16.msra.mxu0 0
      %791 = vmatprep.subr.bf16.mxu0 0
      %792 = vmatpush2.bf16.msra.mxu0 0
      %793 = vmatprep.subr.bf16.mxu0 0
      %794 = vmatpush2.bf16.msra.mxu0 0
      %795 = vmatprep.subr.bf16.mxu0 0
      %796 = vmatpush2.bf16.msra.mxu0 0
      %797 = vmatprep.mubr.bf16.mxu0 0
      %798 = vmatmul.mubr.bf16.gmra.mxu0 %v760
      %v799 = vpop.f32.mrf.mxu0
      %v800 = vadd.f32 0.0, %v799
      %v801 = vpop.f32.mrf.mxu0
      %v802 = vpop.f32.mrf.mxu0
      %v803 = vpop.f32.mrf.mxu0
      %804 = vdwg.mxu0
      %v805 = vpack.c.bf16 %v800, %v800
      %v810 = vunpack.c.l.b16 %v569
      %v811 = vunpack.c.l.b16 %v570
      %v812 = vunpack.c.l.b16 %v571
      %v813 = vunpack.c.l.b16 %v572
      %v814 = vpack.c.b16 %v811, %v810
      %v815 = vpack.c.b16 %v813, %v812
      %v819 = vsel %vm583, %v805, 0
      %821 = vmatprep.subr.bf16.mxu0 0
      %822 = vmatpush1.bf16.msra.mxu0 0
      %823 = vmatprep.subr.bf16.mxu0 0
      %824 = vmatpush1.bf16.msra.mxu0 0
      %825 = vmatprep.subr.bf16.mxu0 0
      %826 = vmatpush1.bf16.msra.mxu0 0
      %827 = vmatprep.subr.bf16.mxu0 0
      %828 = vmatpush1.bf16.msra.mxu0 0
      %829 = vmatprep.subr.bf16.mxu0 0
      %830 = vmatpush1.bf16.msra.mxu0 0
      %831 = vmatprep.subr.bf16.mxu0 0
      %832 = vmatpush1.bf16.msra.mxu0 0
      %833 = vmatprep.subr.bf16.mxu0 0
      %834 = vmatpush1.bf16.msra.mxu0 %v815
      %835 = vmatprep.subr.bf16.mxu0 0
      %836 = vmatpush1.bf16.msra.mxu0 %v814
      %837 = vmatprep.subr.bf16.mxu0 0
      %838 = vmatpush2.bf16.msra.mxu0 0
      %839 = vmatprep.subr.bf16.mxu0 0
      %840 = vmatpush2.bf16.msra.mxu0 0
      %841 = vmatprep.subr.bf16.mxu0 0
      %842 = vmatpush2.bf16.msra.mxu0 0
      %843 = vmatprep.subr.bf16.mxu0 0
      %844 = vmatpush2.bf16.msra.mxu0 0
      %845 = vmatprep.subr.bf16.mxu0 0
      %846 = vmatpush2.bf16.msra.mxu0 0
      %847 = vmatprep.subr.bf16.mxu0 0
      %848 = vmatpush2.bf16.msra.mxu0 0
      %849 = vmatprep.subr.bf16.mxu0 0
      %850 = vmatpush2.bf16.msra.mxu0 0
      %851 = vmatprep.subr.bf16.mxu0 0
      %852 = vmatpush2.bf16.msra.mxu0 0
      %853 = vmatprep.mubr.bf16.mxu0 0
      %854 = vmatmul.mubr.bf16.gmra.mxu0 %v819
      %v855 = vpop.f32.mrf.mxu0
      %v856 = vadd.f32 0.0, %v855
      %v857 = vpop.f32.mrf.mxu0
      %v858 = vpop.f32.mrf.mxu0
      %v859 = vpop.f32.mrf.mxu0
      %860 = vdwg.mxu0
      %v865 = vunpack.c.l.b16 %v565
      %v866 = vunpack.c.l.b16 %v566
      %v867 = vunpack.c.l.b16 %v567
      %v868 = vunpack.c.l.b16 %v568
      %v869 = vpack.c.b16 %v866, %v865
      %v870 = vpack.c.b16 %v868, %v867
      %v874 = vsel %vm583, %v691, 0
      %876 = vmatprep.subr.bf16.mxu0 0
      %877 = vmatpush1.bf16.msra.mxu0 0
      %878 = vmatprep.subr.bf16.mxu0 0
      %879 = vmatpush1.bf16.msra.mxu0 0
      %880 = vmatprep.subr.bf16.mxu0 0
      %881 = vmatpush1.bf16.msra.mxu0 0
      %882 = vmatprep.subr.bf16.mxu0 0
      %883 = vmatpush1.bf16.msra.mxu0 0
      %884 = vmatprep.subr.bf16.mxu0 0
      %885 = vmatpush1.bf16.msra.mxu0 0
      %886 = vmatprep.subr.bf16.mxu0 0
      %887 = vmatpush1.bf16.msra.mxu0 0
      %888 = vmatprep.subr.bf16.mxu0 0
      %889 = vmatpush1.bf16.msra.mxu0 %v870
      %890 = vmatprep.subr.bf16.mxu0 0
      %891 = vmatpush1.bf16.msra.mxu0 %v869
      %892 = vmatprep.subr.bf16.mxu0 0
      %893 = vmatpush2.bf16.msra.mxu0 0
      %894 = vmatprep.subr.bf16.mxu0 0
      %895 = vmatpush2.bf16.msra.mxu0 0
      %896 = vmatprep.subr.bf16.mxu0 0
      %897 = vmatpush2.bf16.msra.mxu0 0
      %898 = vmatprep.subr.bf16.mxu0 0
      %899 = vmatpush2.bf16.msra.mxu0 0
      %900 = vmatprep.subr.bf16.mxu0 0
      %901 = vmatpush2.bf16.msra.mxu0 0
      %902 = vmatprep.subr.bf16.mxu0 0
      %903 = vmatpush2.bf16.msra.mxu0 0
      %904 = vmatprep.subr.bf16.mxu0 0
      %905 = vmatpush2.bf16.msra.mxu0 0
      %906 = vmatprep.subr.bf16.mxu0 0
      %907 = vmatpush2.bf16.msra.mxu0 0
      %908 = vmatprep.mubr.bf16.mxu0 0
      %909 = vmatmul.mubr.bf16.gmra.mxu0 %v874
      %v910 = vpop.f32.mrf.mxu0
      %v911 = vadd.f32 %v856, %v910
      %v912 = vpop.f32.mrf.mxu0
      %v913 = vpop.f32.mrf.mxu0
      %v914 = vpop.f32.mrf.mxu0
      %915 = vdwg.mxu0
      %916 = vrot.lane.b32.xlu0 %v581, 64
      %v917 = vpop.permute.xlu0 %916
      %918 = vrot.lane.b32.xlu0 %v582, 64
      %v919 = vpop.permute.xlu0 %918
      %v921 = vsel %vm583, %v917, 0
      %v924 = vsel %vm583, %v919, 0
      %926 = vmatprep.subr.bf16.mxu0 0
      %927 = vmatpush1.bf16.xpose.msra.mxu0 0
      %928 = vmatprep.subr.bf16.mxu0 0
      %929 = vmatpush1.bf16.xpose.msra.mxu0 0
      %930 = vmatprep.subr.bf16.mxu0 0
      %931 = vmatpush1.bf16.xpose.msra.mxu0 0
      %932 = vmatprep.subr.bf16.mxu0 0
      %933 = vmatpush1.bf16.xpose.msra.mxu0 0
      %934 = vmatprep.subr.bf16.mxu0 0
      %935 = vmatpush1.bf16.xpose.msra.mxu0 0
      %936 = vmatprep.subr.bf16.mxu0 0
      %937 = vmatpush1.bf16.xpose.msra.mxu0 0
      %938 = vmatprep.subr.bf16.mxu0 0
      %939 = vmatpush1.bf16.xpose.msra.mxu0 0
      %940 = vmatprep.subr.bf16.mxu0 0
      %941 = vmatpush1.bf16.xpose.msra.mxu0 %v924
      %942 = vmatprep.subr.bf16.mxu0 0
      %943 = vmatpush2.bf16.xpose.msra.mxu0 0
      %944 = vmatprep.subr.bf16.mxu0 0
      %945 = vmatpush2.bf16.xpose.msra.mxu0 0
      %946 = vmatprep.subr.bf16.mxu0 0
      %947 = vmatpush2.bf16.xpose.msra.mxu0 0
      %948 = vmatprep.subr.bf16.mxu0 0
      %949 = vmatpush2.bf16.xpose.msra.mxu0 0
      %950 = vmatprep.subr.bf16.mxu0 0
      %951 = vmatpush2.bf16.xpose.msra.mxu0 0
      %952 = vmatprep.subr.bf16.mxu0 0
      %953 = vmatpush2.bf16.xpose.msra.mxu0 0
      %954 = vmatprep.subr.bf16.mxu0 0
      %955 = vmatpush2.bf16.xpose.msra.mxu0 0
      %956 = vmatprep.subr.bf16.mxu0 0
      %957 = vmatpush2.bf16.xpose.msra.mxu0 0
      %958 = vmatprep.mubr.bf16.mxu0 0
      %959 = vmatmul.mubr.bf16.gmra.mxu0 %v921
      %v960 = vpop.f32.mrf.mxu0
      %v961 = vadd.f32 0.0, %v960
      %v962 = vpop.f32.mrf.mxu0
      %v963 = vpop.f32.mrf.mxu0
      %v964 = vpop.f32.mrf.mxu0
      %965 = vdwg.mxu0
      %v966 = vsel %vm630, %v961, -inf
      %967 = vmax.xlane.f32.xlu0 %v966
      %v968 = vpop.xlane.xlu0 %967
      %v969 = vsub.f32 %v961, %v968
      %v970 = vmul.f32 %v969, 1.442695
      %v971 = vpow.pop %v970
      %v972 = vsel %vm630, %v971, 0.0
      %973 = vadd.xlane.f32.xlu0 %v972
      %v974 = vpop.xlane.xlu0 %973
      %v975 = vrcp.pop %v974
      %v976 = vmul.f32 %v971, %v975
      %v977 = vpack.c.bf16 %v976, %v976
      %978 = vrot.lane.b32.xlu0 %v643, 64
      %v979 = vpop.permute.xlu0 %978
      %v981 = vsel %vm630, %v977, 0
      %v984 = vsel %vm647, %v979, 0
      %986 = vmatprep.subr.bf16.mxu0 0
      %987 = vmatpush1.bf16.msra.mxu0 0
      %988 = vmatprep.subr.bf16.mxu0 0
      %989 = vmatpush1.bf16.msra.mxu0 0
      %990 = vmatprep.subr.bf16.mxu0 0
      %991 = vmatpush1.bf16.msra.mxu0 0
      %992 = vmatprep.subr.bf16.mxu0 0
      %993 = vmatpush1.bf16.msra.mxu0 0
      %994 = vmatprep.subr.bf16.mxu0 0
      %995 = vmatpush1.bf16.msra.mxu0 0
      %996 = vmatprep.subr.bf16.mxu0 0
      %997 = vmatpush1.bf16.msra.mxu0 0
      %998 = vmatprep.subr.bf16.mxu0 0
      %999 = vmatpush1.bf16.msra.mxu0 0
      %1000 = vmatprep.subr.bf16.mxu0 0
      %1001 = vmatpush1.bf16.msra.mxu0 %v984
      %1002 = vmatprep.subr.bf16.mxu0 0
      %1003 = vmatpush2.bf16.msra.mxu0 0
      %1004 = vmatprep.subr.bf16.mxu0 0
      %1005 = vmatpush2.bf16.msra.mxu0 0
      %1006 = vmatprep.subr.bf16.mxu0 0
      %1007 = vmatpush2.bf16.msra.mxu0 0
      %1008 = vmatprep.subr.bf16.mxu0 0
      %1009 = vmatpush2.bf16.msra.mxu0 0
      %1010 = vmatprep.subr.bf16.mxu0 0
      %1011 = vmatpush2.bf16.msra.mxu0 0
      %1012 = vmatprep.subr.bf16.mxu0 0
      %1013 = vmatpush2.bf16.msra.mxu0 0
      %1014 = vmatprep.subr.bf16.mxu0 0
      %1015 = vmatpush2.bf16.msra.mxu0 0
      %1016 = vmatprep.subr.bf16.mxu0 0
      %1017 = vmatpush2.bf16.msra.mxu0 0
      %1018 = vmatprep.mubr.bf16.mxu0 0
      %1019 = vmatmul.mubr.bf16.gmra.mxu0 %v981
      %v1020 = vpop.f32.mrf.mxu0
      %v1021 = vadd.f32 0.0, %v1020
      %v1022 = vpop.f32.mrf.mxu0
      %v1023 = vpop.f32.mrf.mxu0
      %v1024 = vpop.f32.mrf.mxu0
      %1025 = vdwg.mxu0
      %v1026 = vpack.c.bf16 %v1021, %v1021
      %v1031 = vunpack.c.l.b16 %v573
      %v1032 = vunpack.c.l.b16 %v574
      %v1033 = vunpack.c.l.b16 %v575
      %v1034 = vunpack.c.l.b16 %v576
      %v1035 = vpack.c.b16 %v1032, %v1031
      %v1036 = vpack.c.b16 %v1034, %v1033
      %v1040 = vsel %vm583, %v1026, 0
      %1042 = vmatprep.subr.bf16.mxu0 0
      %1043 = vmatpush1.bf16.msra.mxu0 0
      %1044 = vmatprep.subr.bf16.mxu0 0
      %1045 = vmatpush1.bf16.msra.mxu0 0
      %1046 = vmatprep.subr.bf16.mxu0 0
      %1047 = vmatpush1.bf16.msra.mxu0 0
      %1048 = vmatprep.subr.bf16.mxu0 0
      %1049 = vmatpush1.bf16.msra.mxu0 0
      %1050 = vmatprep.subr.bf16.mxu0 0
      %1051 = vmatpush1.bf16.msra.mxu0 0
      %1052 = vmatprep.subr.bf16.mxu0 0
      %1053 = vmatpush1.bf16.msra.mxu0 0
      %1054 = vmatprep.subr.bf16.mxu0 0
      %1055 = vmatpush1.bf16.msra.mxu0 %v1036
      %1056 = vmatprep.subr.bf16.mxu0 0
      %1057 = vmatpush1.bf16.msra.mxu0 %v1035
      %1058 = vmatprep.subr.bf16.mxu0 0
      %1059 = vmatpush2.bf16.msra.mxu0 0
      %1060 = vmatprep.subr.bf16.mxu0 0
      %1061 = vmatpush2.bf16.msra.mxu0 0
      %1062 = vmatprep.subr.bf16.mxu0 0
      %1063 = vmatpush2.bf16.msra.mxu0 0
      %1064 = vmatprep.subr.bf16.mxu0 0
      %1065 = vmatpush2.bf16.msra.mxu0 0
      %1066 = vmatprep.subr.bf16.mxu0 0
      %1067 = vmatpush2.bf16.msra.mxu0 0
      %1068 = vmatprep.subr.bf16.mxu0 0
      %1069 = vmatpush2.bf16.msra.mxu0 0
      %1070 = vmatprep.subr.bf16.mxu0 0
      %1071 = vmatpush2.bf16.msra.mxu0 0
      %1072 = vmatprep.subr.bf16.mxu0 0
      %1073 = vmatpush2.bf16.msra.mxu0 0
      %1074 = vmatprep.mubr.bf16.mxu0 0
      %1075 = vmatmul.mubr.bf16.gmra.mxu0 %v1040
      %v1076 = vpop.f32.mrf.mxu0
      %v1077 = vadd.f32 0.0, %v1076
      %v1078 = vpop.f32.mrf.mxu0
      %v1079 = vpop.f32.mrf.mxu0
      %v1080 = vpop.f32.mrf.mxu0
      %1081 = vdwg.mxu0
      %v1082 = vadd.f32 %v911, %v1077
      %1083 = vrot.lane.b32.xlu0 %v581, 32
      %v1084 = vpop.permute.xlu0 %1083
      %1085 = vrot.lane.b32.xlu0 %v582, 32
      %v1086 = vpop.permute.xlu0 %1085
      %v1088 = vsel %vm583, %v1084, 0
      %v1091 = vsel %vm583, %v1086, 0
      %1093 = vmatprep.subr.bf16.mxu0 0
      %1094 = vmatpush1.bf16.xpose.msra.mxu0 0
      %1095 = vmatprep.subr.bf16.mxu0 0
      %1096 = vmatpush1.bf16.xpose.msra.mxu0 0
      %1097 = vmatprep.subr.bf16.mxu0 0
      %1098 = vmatpush1.bf16.xpose.msra.mxu0 0
      %1099 = vmatprep.subr.bf16.mxu0 0
      %1100 = vmatpush1.bf16.xpose.msra.mxu0 0
      %1101 = vmatprep.subr.bf16.mxu0 0
      %1102 = vmatpush1.bf16.xpose.msra.mxu0 0
      %1103 = vmatprep.subr.bf16.mxu0 0
      %1104 = vmatpush1.bf16.xpose.msra.mxu0 0
      %1105 = vmatprep.subr.bf16.mxu0 0
      %1106 = vmatpush1.bf16.xpose.msra.mxu0 0
      %1107 = vmatprep.subr.bf16.mxu0 0
      %1108 = vmatpush1.bf16.xpose.msra.mxu0 %v1091
      %1109 = vmatprep.subr.bf16.mxu0 0
      %1110 = vmatpush2.bf16.xpose.msra.mxu0 0
      %1111 = vmatprep.subr.bf16.mxu0 0
      %1112 = vmatpush2.bf16.xpose.msra.mxu0 0
      %1113 = vmatprep.subr.bf16.mxu0 0
      %1114 = vmatpush2.bf16.xpose.msra.mxu0 0
      %1115 = vmatprep.subr.bf16.mxu0 0
      %1116 = vmatpush2.bf16.xpose.msra.mxu0 0
      %1117 = vmatprep.subr.bf16.mxu0 0
      %1118 = vmatpush2.bf16.xpose.msra.mxu0 0
      %1119 = vmatprep.subr.bf16.mxu0 0
      %1120 = vmatpush2.bf16.xpose.msra.mxu0 0
      %1121 = vmatprep.subr.bf16.mxu0 0
      %1122 = vmatpush2.bf16.xpose.msra.mxu0 0
      %1123 = vmatprep.subr.bf16.mxu0 0
      %1124 = vmatpush2.bf16.xpose.msra.mxu0 0
      %1125 = vmatprep.mubr.bf16.mxu0 0
      %1126 = vmatmul.mubr.bf16.gmra.mxu0 %v1088
      %v1127 = vpop.f32.mrf.mxu0
      %v1128 = vadd.f32 0.0, %v1127
      %v1129 = vpop.f32.mrf.mxu0
      %v1130 = vpop.f32.mrf.mxu0
      %v1131 = vpop.f32.mrf.mxu0
      %1132 = vdwg.mxu0
      %v1133 = vsel %vm630, %v1128, -inf
      %1134 = vmax.xlane.f32.xlu0 %v1133
      %v1135 = vpop.xlane.xlu0 %1134
      %v1136 = vsub.f32 %v1128, %v1135
      %v1137 = vmul.f32 %v1136, 1.442695
      %v1138 = vpow.pop %v1137
      %v1139 = vsel %vm630, %v1138, 0.0
      %1140 = vadd.xlane.f32.xlu0 %v1139
      %v1141 = vpop.xlane.xlu0 %1140
      %v1142 = vrcp.pop %v1141
      %v1143 = vmul.f32 %v1138, %v1142
      %v1144 = vpack.c.bf16 %v1143, %v1143
      %1145 = vrot.lane.b32.xlu0 %v643, 32
      %v1146 = vpop.permute.xlu0 %1145
      %v1148 = vsel %vm630, %v1144, 0
      %v1151 = vsel %vm647, %v1146, 0
      %1153 = vmatprep.subr.bf16.mxu0 0
      %1154 = vmatpush1.bf16.msra.mxu0 0
      %1155 = vmatprep.subr.bf16.mxu0 0
      %1156 = vmatpush1.bf16.msra.mxu0 0
      %1157 = vmatprep.subr.bf16.mxu0 0
      %1158 = vmatpush1.bf16.msra.mxu0 0
      %1159 = vmatprep.subr.bf16.mxu0 0
      %1160 = vmatpush1.bf16.msra.mxu0 0
      %1161 = vmatprep.subr.bf16.mxu0 0
      %1162 = vmatpush1.bf16.msra.mxu0 0
      %1163 = vmatprep.subr.bf16.mxu0 0
      %1164 = vmatpush1.bf16.msra.mxu0 0
      %1165 = vmatprep.subr.bf16.mxu0 0
      %1166 = vmatpush1.bf16.msra.mxu0 0
      %1167 = vmatprep.subr.bf16.mxu0 0
      %1168 = vmatpush1.bf16.msra.mxu0 %v1151
      %1169 = vmatprep.subr.bf16.mxu0 0
      %1170 = vmatpush2.bf16.msra.mxu0 0
      %1171 = vmatprep.subr.bf16.mxu0 0
      %1172 = vmatpush2.bf16.msra.mxu0 0
      %1173 = vmatprep.subr.bf16.mxu0 0
      %1174 = vmatpush2.bf16.msra.mxu0 0
      %1175 = vmatprep.subr.bf16.mxu0 0
      %1176 = vmatpush2.bf16.msra.mxu0 0
      %1177 = vmatprep.subr.bf16.mxu0 0
      %1178 = vmatpush2.bf16.msra.mxu0 0
      %1179 = vmatprep.subr.bf16.mxu0 0
      %1180 = vmatpush2.bf16.msra.mxu0 0
      %1181 = vmatprep.subr.bf16.mxu0 0
      %1182 = vmatpush2.bf16.msra.mxu0 0
      %1183 = vmatprep.subr.bf16.mxu0 0
      %1184 = vmatpush2.bf16.msra.mxu0 0
      %1185 = vmatprep.mubr.bf16.mxu0 0
      %1186 = vmatmul.mubr.bf16.gmra.mxu0 %v1148
      %v1187 = vpop.f32.mrf.mxu0
      %v1188 = vadd.f32 0.0, %v1187
      %v1189 = vpop.f32.mrf.mxu0
      %v1190 = vpop.f32.mrf.mxu0
      %v1191 = vpop.f32.mrf.mxu0
      %1192 = vdwg.mxu0
      %v1193 = vpack.c.bf16 %v1188, %v1188
      %v1198 = vunpack.c.l.b16 %v577
      %v1199 = vunpack.c.l.b16 %v578
      %v1200 = vunpack.c.l.b16 %v579
      %v1201 = vunpack.c.l.b16 %v580
      %v1202 = vpack.c.b16 %v1199, %v1198
      %v1203 = vpack.c.b16 %v1201, %v1200
      %v1207 = vsel %vm583, %v1193, 0
      %1209 = vmatprep.subr.bf16.mxu0 0
      %1210 = vmatpush1.bf16.msra.mxu0 0
      %1211 = vmatprep.subr.bf16.mxu0 0
      %1212 = vmatpush1.bf16.msra.mxu0 0
      %1213 = vmatprep.subr.bf16.mxu0 0
      %1214 = vmatpush1.bf16.msra.mxu0 0
      %1215 = vmatprep.subr.bf16.mxu0 0
      %1216 = vmatpush1.bf16.msra.mxu0 0
      %1217 = vmatprep.subr.bf16.mxu0 0
      %1218 = vmatpush1.bf16.msra.mxu0 0
      %1219 = vmatprep.subr.bf16.mxu0 0
      %1220 = vmatpush1.bf16.msra.mxu0 0
      %1221 = vmatprep.subr.bf16.mxu0 0
      %1222 = vmatpush1.bf16.msra.mxu0 %v1203
      %1223 = vmatprep.subr.bf16.mxu0 0
      %1224 = vmatpush1.bf16.msra.mxu0 %v1202
      %1225 = vmatprep.subr.bf16.mxu0 0
      %1226 = vmatpush2.bf16.msra.mxu0 0
      %1227 = vmatprep.subr.bf16.mxu0 0
      %1228 = vmatpush2.bf16.msra.mxu0 0
      %1229 = vmatprep.subr.bf16.mxu0 0
      %1230 = vmatpush2.bf16.msra.mxu0 0
      %1231 = vmatprep.subr.bf16.mxu0 0
      %1232 = vmatpush2.bf16.msra.mxu0 0
      %1233 = vmatprep.subr.bf16.mxu0 0
      %1234 = vmatpush2.bf16.msra.mxu0 0
      %1235 = vmatprep.subr.bf16.mxu0 0
      %1236 = vmatpush2.bf16.msra.mxu0 0
      %1237 = vmatprep.subr.bf16.mxu0 0
      %1238 = vmatpush2.bf16.msra.mxu0 0
      %1239 = vmatprep.subr.bf16.mxu0 0
      %1240 = vmatpush2.bf16.msra.mxu0 0
      %1241 = vmatprep.mubr.bf16.mxu0 0
      %1242 = vmatmul.mubr.bf16.gmra.mxu0 %v1207
      %v1243 = vpop.f32.mrf.mxu0
      %v1244 = vadd.f32 0.0, %v1243
      %v1245 = vpop.f32.mrf.mxu0
      %v1246 = vpop.f32.mrf.mxu0
      %v1247 = vpop.f32.mrf.mxu0
      %1248 = vdwg.mxu0
      %v1249 = vadd.f32 %v1082, %v1244
      %v1250 = vld [vmem:[%s6] sm:$0x1]
      %v1252 = vlaneseq
      %v1253 = vshrl.u32 %v1252, 7
      %v1254 = vsub.s32 0, %v1253
      %v1255 = vrot.slane %v1250, %v1254
      %v1257 = vadd.f32 %v1249, %v1255
      %v1258 = vadd.f32 %v1257, %v275
      %v1259 = vmax.f32 %v1258, -65504.0
      %v1260 = vmin.f32 %v1259, 65504.0
      %1261 = vst [vmem:[%s273] sm:$0xff] %v1260
      %p1262 = scmp.lt.s32.totalorder %s18, 1
      %s1263 = scalar_select %p1262, %s18, 1
      %s1264 = smul.addr %s1263, 8
      %s1265 = scalar_lea.vmem %s7, %s1264
      // Predicated region
      $region49: #{mask_transformer_forward.7} parent=47 // pred_check
        %p1266 = pneg %p188
      $region50: #{mask_transformer_forward.7} parent=47 // pred_check_branch
        %1268 = sbr.rel (%p1266) target = $region52
      $region51: #{mask_transformer_forward.7} parent=47 // pred_region
        _
      $region52: #{mask_transformer_forward.7} parent=47 // pred_fallthru
        _
    $region48: #{mask_transformer_forward.7} parent=5 // pred_fallthru
      _
    %p1269 = scmp.le.s32.totalorder 2, %s13
    // Predicated region
    $region53: #{mask_transformer_forward.7} parent=5 // pred_check
      %p1270 = pneg %p1269
    $region54: #{mask_transformer_forward.7} parent=5 // pred_check_branch
      %1272 = sbr.rel (%p1270) target = $region56
    $region55: #{mask_transformer_forward.7} parent=5 // pred_region
      %s1273 = ssub.s32 %s13, 2
      // Predicated region
      $region57: #{mask_transformer_forward.7} parent=55 // pred_check
        %p1274 = pneg %p194
      $region58: #{mask_transformer_forward.7} parent=55 // pred_check_branch
        %1276 = sbr.rel (%p1274) target = $region60
      $region59: #{mask_transformer_forward.7} parent=55 // pred_region
        %p1277 = scmp.lt.s32.totalorder %s19, 1
        %s1278 = scalar_select %p1277, %s19, 1
        %s1279 = smul.addr %s1278, 8
        %s1280 = scalar_lea.vmem %s7, %s1279
      $region60: #{mask_transformer_forward.7} parent=55 // pred_fallthru
        _
    $region56: #{mask_transformer_forward.7} parent=5 // pred_fallthru
      _
  $region6: #{mask_transformer_forward.7} parent=0 // loop_footer
    %s17 = sadd.s32 1, %s13
  $region7: #{mask_transformer_forward.7} parent=0 // loop_footer_branch
    %12 = sbr.rel target = $region3
  $region8: #{mask_transformer_forward.7} parent=0 // loop_exit
    _

// kernel: mask_transformer_forward.11
$region0: #{mask_transformer_forward.11}
  #allocation0 [shape = 'u32[]', space=smem, size = 0x4, offset = 0x4, fixed_abs, tag = 'smem constant byte address 0x4 - core index']
  #allocation1 [shape = 'u32[144,128]{1,0:T(1,128)}', space=vmem, size = 0x12000, scoped, tag = 'internal scratch']
  #allocation2 [shape = 'f32[8,128]{1,0:T(8,128)}', space=vmem, size = 0x1000, scoped, tag = 'scratch operand']
  %s0 = inlined_call_operand.vmem [shape: f32[2,8,128], index: 0, kind: input, shape index: {}]
  %s1 = inlined_call_operand.vmem [shape: f32[8,128], index: 1, kind: input, shape index: {}]
  %s2 = inlined_call_operand.vmem [shape: f32[1,128], index: 2, kind: input, shape index: {}]
  %s3 = inlined_call_operand.vmem [shape: f32[1,128], index: 3, kind: input, shape index: {}]
  %s4 = inlined_call_operand.vmem [shape: bf16[128,128], index: 4, kind: input, shape index: {}]
  %s5 = inlined_call_operand.vmem [shape: f32[1,128], index: 5, kind: input, shape index: {}]
  %s6 = inlined_call_operand.vmem [shape: f32[1,128], index: 6, kind: input, shape index: {}]
  %s7 = inlined_call_operand.vmem [shape: f32[1,128], index: 7, kind: input, shape index: {}]
  %s8 = inlined_call_operand.vmem [shape: bf16[128,128], index: 8, kind: input, shape index: {}]
  %s9 = inlined_call_operand.hbm [shape: f32[2,8,128], index: 9, kind: output, shape index: {}]
  %s10 = sld [smem:[#allocation0]]
  $region73: #{mask_transformer_forward.11} parent=0
    _
  %s12 = ssub.s32 1, %s10
  %s13 = scalar_select 0, %s12, %s10
  $region1: #{mask_transformer_forward.11} parent=0
    #allocation3 [shape = 'u8[8192]{0}', space=vmem, size = 0x2000, scoped, tag = 'output window, operand 0']
    #allocation4 [shape = 's32[2]{0}', space=sflag, size = 0x8, scoped, tag = 'scoped memory for mask_transformer_forward.11']
    %14 = vsyncpa [#allocation4], 0
    %s15 = scalar_lea.sflag [#allocation4], 1
    %16 = vsyncpa %s15, 0
    loop: start=0, step=1, limit=4
    $region2: #{mask_transformer_forward.11} parent=1 // loop_pre_header
      _
    $region3: #{mask_transformer_forward.11} parent=1 // loop_header
      %s18 = sphi 0, %s22
      %p19 = scmp.ge.s32.totalorder %s18, 4
      %s25 = sphi 0, %s44
      %s26 = sphi 0, %s40
      %s27 = sphi 0, %s36
      %s28 = sphi 0, %s25
      %s29 = sphi 0, %s26
      %s30 = sphi 0, %s27
      %s31 = sphi 0, %s28
      %s32 = sphi 0, %s29
      %s33 = sphi 0, %s30
      %s49 = sphi 0, %s51
      %s52 = sphi 0, %s49
      %s53 = sphi 0, %s52
      %s69 = sphi 0, %s53
      %s77 = sphi 0, %s79
      %s80 = sphi 0, %s77
      %s81 = sphi 0, %s80
      %s97 = sphi 0, %s81
      %s101 = sphi 0, %s101
      %s103 = sphi 0, %s101
      %s104 = sphi 0, %s103
      %s118 = sphi 0, %s104
      %s122 = sphi 0, %s122
      %s124 = sphi 0, %s122
      %s125 = sphi 0, %s124
      %s139 = sphi 0, %s125
      %s143 = sphi 0, %s143
      %s145 = sphi 0, %s143
      %s146 = sphi 0, %s145
      %s160 = sphi 0, %s146
      %s164 = sphi 0, %s164
      %s166 = sphi 0, %s164
      %s167 = sphi 0, %s166
      %s181 = sphi 0, %s167
      %s185 = sphi 0, %s185
      %s187 = sphi 0, %s185
      %s188 = sphi 0, %s187
      %s202 = sphi 0, %s188
      %s206 = sphi 0, %s206
      %s208 = sphi 0, %s206
      %s209 = sphi 0, %s208
      %s223 = sphi 0, %s209
      %s229 = sphi 0, %s231
      %s232 = sphi 0, %s229
      %s233 = sphi 0, %s232
      %s249 = sphi 0, %s233
      %s259 = sphi 0, %s261
      %s262 = sphi 0, %s259
      %s263 = sphi 0, %s262
      %s279 = sphi 0, %s263
    $region4: #{mask_transformer_forward.11} parent=1 // loop_header_branch
      %21 = sbr.rel (%p19) target = $region8
    $region5: #{mask_transformer_forward.11} parent=1 // loop_body
      %s23 = ssub.s32 %s18, 1
      %s24 = ssub.s32 %s18, 2
      %s34 = sadd.s32 1, %s27
      %p35 = scmp.ge.s32.totalorder %s34, 1
      %s36 = scalar_select %p35, 0, %s34
      %s37 = sadd.s32 1, %s26
      %s38 = scalar_select %p35, %s37, %s26
      %p39 = scmp.ge.s32.totalorder %s38, 1
      %s40 = scalar_select %p39, 0, %s38
      %s41 = sadd.s32 1, %s25
      %s42 = scalar_select %p39, %s41, %s25
      %p43 = scmp.ge.s32.totalorder %s42, 2
      %s44 = scalar_select %p43, 0, %s42
      %s45 = ssub.s32 %s25, %s44
      %s46 = ssub.s32 %s26, %s40
      %s47 = sor.u32 %s45, %s46
      %p48 = scmp.eq.s32.totalorder %s47, 0
      %s50 = sadd.s32 %s49, 1
      %s51 = scalar_select %p48, %s49, %s50
      %p54 = pneg %p48
      %p55 = scmp.eq.s32.totalorder %s18, 1
      %p56 = por %p54, %p55
      %p57 = scmp.ne.s32.totalorder %s49, %s52
      %p58 = scmp.eq.s32.totalorder %s18, 0
      %p59 = por %p57, %p58
      %p60 = scmp.ne.s32.totalorder %s49, %s52
      %p61 = scmp.eq.s32.totalorder %s23, 1
      %p62 = por %p60, %p61
      %p63 = scmp.ne.s32.totalorder %s52, %s53
      %p64 = scmp.eq.s32.totalorder %s23, 0
      %p65 = por %p63, %p64
      %p66 = scmp.ne.s32.totalorder %s52, %s53
      %p67 = scmp.eq.s32.totalorder %s24, 1
      %p68 = por %p66, %p67
      %p70 = scmp.ne.s32.totalorder %s53, %s69
      %p71 = scmp.eq.s32.totalorder %s24, 0
      %p72 = por %p70, %p71
      %s73 = ssub.s32 %s26, %s40
      %s74 = ssub.s32 %s27, %s36
      %s75 = sor.u32 %s73, %s74
      %p76 = scmp.eq.s32.totalorder %s75, 0
      %s78 = sadd.s32 %s77, 1
      %s79 = scalar_select %p76, %s77, %s78
      %p82 = pneg %p76
      %p83 = scmp.eq.s32.totalorder %s18, 1
      %p84 = por %p82, %p83
      %p85 = scmp.ne.s32.totalorder %s77, %s80
      %p86 = scmp.eq.s32.totalorder %s18, 0
      %p87 = por %p85, %p86
      %p88 = scmp.ne.s32.totalorder %s77, %s80
      %p89 = scmp.eq.s32.totalorder %s23, 1
      %p90 = por %p88, %p89
      %p91 = scmp.ne.s32.totalorder %s80, %s81
      %p92 = scmp.eq.s32.totalorder %s23, 0
      %p93 = por %p91, %p92
      %p94 = scmp.ne.s32.totalorder %s80, %s81
      %p95 = scmp.eq.s32.totalorder %s24, 1
      %p96 = por %p94, %p95
      %p98 = scmp.ne.s32.totalorder %s81, %s97
      %p99 = scmp.eq.s32.totalorder %s24, 0
      %p100 = por %p98, %p99
      %s102 = sadd.s32 %s101, 1
      %p105 = scmp.eq.s32.totalorder %s18, 1
      %p106 = scmp.ne.s32.totalorder %s101, %s103
      %p107 = scmp.eq.s32.totalorder %s18, 0
      %p108 = por %p106, %p107
      %p109 = scmp.ne.s32.totalorder %s101, %s103
      %p110 = scmp.eq.s32.totalorder %s23, 1
      %p111 = por %p109, %p110
      %p112 = scmp.ne.s32.totalorder %s103, %s104
      %p113 = scmp.eq.s32.totalorder %s23, 0
      %p114 = por %p112, %p113
      %p115 = scmp.ne.s32.totalorder %s103, %s104
      %p116 = scmp.eq.s32.totalorder %s24, 1
      %p117 = por %p115, %p116
      %p119 = scmp.ne.s32.totalorder %s104, %s118
      %p120 = scmp.eq.s32.totalorder %s24, 0
      %p121 = por %p119, %p120
      %s123 = sadd.s32 %s122, 1
      %p126 = scmp.eq.s32.totalorder %s18, 1
      %p127 = scmp.ne.s32.totalorder %s122, %s124
      %p128 = scmp.eq.s32.totalorder %s18, 0
      %p129 = por %p127, %p128
      %p130 = scmp.ne.s32.totalorder %s122, %s124
      %p131 = scmp.eq.s32.totalorder %s23, 1
      %p132 = por %p130, %p131
      %p133 = scmp.ne.s32.totalorder %s124, %s125
      %p134 = scmp.eq.s32.totalorder %s23, 0
      %p135 = por %p133, %p134
      %p136 = scmp.ne.s32.totalorder %s124, %s125
      %p137 = scmp.eq.s32.totalorder %s24, 1
      %p138 = por %p136, %p137
      %p140 = scmp.ne.s32.totalorder %s125, %s139
      %p141 = scmp.eq.s32.totalorder %s24, 0
      %p142 = por %p140, %p141
      %s144 = sadd.s32 %s143, 1
      %p147 = scmp.eq.s32.totalorder %s18, 1
      %p148 = scmp.ne.s32.totalorder %s143, %s145
      %p149 = scmp.eq.s32.totalorder %s18, 0
      %p150 = por %p148, %p149
      %p151 = scmp.ne.s32.totalorder %s143, %s145
      %p152 = scmp.eq.s32.totalorder %s23, 1
      %p153 = por %p151, %p152
      %p154 = scmp.ne.s32.totalorder %s145, %s146
      %p155 = scmp.eq.s32.totalorder %s23, 0
      %p156 = por %p154, %p155
      %p157 = scmp.ne.s32.totalorder %s145, %s146
      %p158 = scmp.eq.s32.totalorder %s24, 1
      %p159 = por %p157, %p158
      %p161 = scmp.ne.s32.totalorder %s146, %s160
      %p162 = scmp.eq.s32.totalorder %s24, 0
      %p163 = por %p161, %p162
      %s165 = sadd.s32 %s164, 1
      %p168 = scmp.eq.s32.totalorder %s18, 1
      %p169 = scmp.ne.s32.totalorder %s164, %s166
      %p170 = scmp.eq.s32.totalorder %s18, 0
      %p171 = por %p169, %p170
      %p172 = scmp.ne.s32.totalorder %s164, %s166
      %p173 = scmp.eq.s32.totalorder %s23, 1
      %p174 = por %p172, %p173
      %p175 = scmp.ne.s32.totalorder %s166, %s167
      %p176 = scmp.eq.s32.totalorder %s23, 0
      %p177 = por %p175, %p176
      %p178 = scmp.ne.s32.totalorder %s166, %s167
      %p179 = scmp.eq.s32.totalorder %s24, 1
      %p180 = por %p178, %p179
      %p182 = scmp.ne.s32.totalorder %s167, %s181
      %p183 = scmp.eq.s32.totalorder %s24, 0
      %p184 = por %p182, %p183
      %s186 = sadd.s32 %s185, 1
      %p189 = scmp.eq.s32.totalorder %s18, 1
      %p190 = scmp.ne.s32.totalorder %s185, %s187
      %p191 = scmp.eq.s32.totalorder %s18, 0
      %p192 = por %p190, %p191
      %p193 = scmp.ne.s32.totalorder %s185, %s187
      %p194 = scmp.eq.s32.totalorder %s23, 1
      %p195 = por %p193, %p194
      %p196 = scmp.ne.s32.totalorder %s187, %s188
      %p197 = scmp.eq.s32.totalorder %s23, 0
      %p198 = por %p196, %p197
      %p199 = scmp.ne.s32.totalorder %s187, %s188
      %p200 = scmp.eq.s32.totalorder %s24, 1
      %p201 = por %p199, %p200
      %p203 = scmp.ne.s32.totalorder %s188, %s202
      %p204 = scmp.eq.s32.totalorder %s24, 0
      %p205 = por %p203, %p204
      %s207 = sadd.s32 %s206, 1
      %p210 = scmp.eq.s32.totalorder %s18, 1
      %p211 = scmp.ne.s32.totalorder %s206, %s208
      %p212 = scmp.eq.s32.totalorder %s18, 0
      %p213 = por %p211, %p212
      %p214 = scmp.ne.s32.totalorder %s206, %s208
      %p215 = scmp.eq.s32.totalorder %s23, 1
      %p216 = por %p214, %p215
      %p217 = scmp.ne.s32.totalorder %s208, %s209
      %p218 = scmp.eq.s32.totalorder %s23, 0
      %p219 = por %p217, %p218
      %p220 = scmp.ne.s32.totalorder %s208, %s209
      %p221 = scmp.eq.s32.totalorder %s24, 1
      %p222 = por %p220, %p221
      %p224 = scmp.ne.s32.totalorder %s209, %s223
      %p225 = scmp.eq.s32.totalorder %s24, 0
      %p226 = por %p224, %p225
      %s227 = ssub.s32 %s27, %s36
      %p228 = scmp.eq.s32.totalorder %s227, 0
      %s230 = sadd.s32 %s229, 1
      %s231 = scalar_select %p228, %s229, %s230
      %p234 = pneg %p228
      %p235 = scmp.eq.s32.totalorder %s18, 1
      %p236 = por %p234, %p235
      %p237 = scmp.ne.s32.totalorder %s229, %s232
      %p238 = scmp.eq.s32.totalorder %s18, 0
      %p239 = por %p237, %p238
      %p240 = scmp.ne.s32.totalorder %s229, %s232
      %p241 = scmp.eq.s32.totalorder %s23, 1
      %p242 = por %p240, %p241
      %p243 = scmp.ne.s32.totalorder %s232, %s233
      %p244 = scmp.eq.s32.totalorder %s23, 0
      %p245 = por %p243, %p244
      %p246 = scmp.ne.s32.totalorder %s232, %s233
      %p247 = scmp.eq.s32.totalorder %s24, 1
      %p248 = por %p246, %p247
      %p250 = scmp.ne.s32.totalorder %s233, %s249
      %p251 = scmp.eq.s32.totalorder %s24, 0
      %p252 = por %p250, %p251
      %s253 = ssub.s32 %s25, %s44
      %s254 = ssub.s32 %s26, %s40
      %s255 = sor.u32 %s253, %s254
      %s256 = ssub.s32 %s27, %s36
      %s257 = sor.u32 %s255, %s256
      %p258 = scmp.eq.s32.totalorder %s257, 0
      %s260 = sadd.s32 %s259, 1
      %s261 = scalar_select %p258, %s259, %s260
      %p264 = pneg %p258
      %p265 = scmp.eq.s32.totalorder %s18, 1
      %p266 = por %p264, %p265
      %p267 = scmp.ne.s32.totalorder %s259, %s262
      %p268 = scmp.eq.s32.totalorder %s18, 0
      %p269 = por %p267, %p268
      %p270 = scmp.ne.s32.totalorder %s259, %s262
      %p271 = scmp.eq.s32.totalorder %s23, 1
      %p272 = por %p270, %p271
      %p273 = scmp.ne.s32.totalorder %s262, %s263
      %p274 = scmp.eq.s32.totalorder %s23, 0
      %p275 = por %p273, %p274
      %p276 = scmp.ne.s32.totalorder %s262, %s263
      %p277 = scmp.eq.s32.totalorder %s24, 1
      %p278 = por %p276, %p277
      %p280 = scmp.ne.s32.totalorder %s263, %s279
      %p281 = scmp.eq.s32.totalorder %s24, 0
      %p282 = por %p280, %p281
      %p283 = scmp.le.s32.totalorder 1, %s18
      %p284 = scmp.lt.s32.totalorder %s18, 3
      %p285 = pnand %p283, %p284
      %p286 = pneg %p285
      // Predicated region
      $region9: #{mask_transformer_forward.11} parent=5 // pred_check
        _
      $region10: #{mask_transformer_forward.11} parent=5 // pred_check_branch
        %288 = sbr.rel (%p285) target = $region12
      $region11: #{mask_transformer_forward.11} parent=5 // pred_region
        %s289 = ssub.s32 %s18, 1
        // Predicated region
        $region13: #{mask_transformer_forward.11} parent=11 // pred_check
          %p290 = pneg %p93
        $region14: #{mask_transformer_forward.11} parent=11 // pred_check_branch
          %292 = sbr.rel (%p290) target = $region16
        $region15: #{mask_transformer_forward.11} parent=11 // pred_region
          %p293 = scmp.lt.s32.totalorder %s29, 0
          %s294 = scalar_select %p293, %s29, 0
          %p295 = scmp.lt.s32.totalorder %s30, 0
          %s296 = scalar_select %p295, %s30, 0
          %s297 = sadd.s32 %s296, %s294
          %s298 = smul.addr %s297, 8
          %s299 = scalar_lea.vmem %s1, %s298
        $region16: #{mask_transformer_forward.11} parent=11 // pred_fallthru
          _
        // Predicated region
        $region17: #{mask_transformer_forward.11} parent=11 // pred_check
          %p300 = pneg %p114
        $region18: #{mask_transformer_forward.11} parent=11 // pred_check_branch
          %302 = sbr.rel (%p300) target = $region20
        $region19: #{mask_transformer_forward.11} parent=11 // pred_region
          _
        $region20: #{mask_transformer_forward.11} parent=11 // pred_fallthru
          _
        // Predicated region
        $region21: #{mask_transformer_forward.11} parent=11 // pred_check
          %p303 = pneg %p135
        $region22: #{mask_transformer_forward.11} parent=11 // pred_check_branch
          %305 = sbr.rel (%p303) target = $region24
        $region23: #{mask_transformer_forward.11} parent=11 // pred_region
          _
        $region24: #{mask_transformer_forward.11} parent=11 // pred_fallthru
          _
        // Predicated region
        $region25: #{mask_transformer_forward.11} parent=11 // pred_check
          %p306 = pneg %p156
        $region26: #{mask_transformer_forward.11} parent=11 // pred_check_branch
          %308 = sbr.rel (%p306) target = $region28
        $region27: #{mask_transformer_forward.11} parent=11 // pred_region
          _
        $region28: #{mask_transformer_forward.11} parent=11 // pred_fallthru
          _
        // Predicated region
        $region29: #{mask_transformer_forward.11} parent=11 // pred_check
          %p309 = pneg %p177
        $region30: #{mask_transformer_forward.11} parent=11 // pred_check_branch
          %311 = sbr.rel (%p309) target = $region32
        $region31: #{mask_transformer_forward.11} parent=11 // pred_region
          _
        $region32: #{mask_transformer_forward.11} parent=11 // pred_fallthru
          _
        // Predicated region
        $region33: #{mask_transformer_forward.11} parent=11 // pred_check
          %p312 = pneg %p198
        $region34: #{mask_transformer_forward.11} parent=11 // pred_check_branch
          %314 = sbr.rel (%p312) target = $region36
        $region35: #{mask_transformer_forward.11} parent=11 // pred_region
          _
        $region36: #{mask_transformer_forward.11} parent=11 // pred_fallthru
          _
        // Predicated region
        $region37: #{mask_transformer_forward.11} parent=11 // pred_check
          %p315 = pneg %p219
        $region38: #{mask_transformer_forward.11} parent=11 // pred_check_branch
          %317 = sbr.rel (%p315) target = $region40
        $region39: #{mask_transformer_forward.11} parent=11 // pred_region
          _
        $region40: #{mask_transformer_forward.11} parent=11 // pred_fallthru
          _
        // Predicated region
        $region41: #{mask_transformer_forward.11} parent=11 // pred_check
          %p318 = pneg %p245
        $region42: #{mask_transformer_forward.11} parent=11 // pred_check_branch
          %320 = sbr.rel (%p318) target = $region44
        $region43: #{mask_transformer_forward.11} parent=11 // pred_region
          %s321 = smul.u32 16, %s30
          %p322 = scmp.lt.s32.totalorder %s321, 15
          %s323 = scalar_select %p322, %s321, 15
          %s324 = smul.addr %s323, 4
          %s325 = scalar_lea.vmem %s8, %s324
          %s326 = smul.u32 16, %s30
        $region44: #{mask_transformer_forward.11} parent=11 // pred_fallthru
          _
      $region12: #{mask_transformer_forward.11} parent=5 // pred_fallthru
        _
      %p327 = scmp.lt.s32.totalorder %s18, 2
      // Predicated region
      $region45: #{mask_transformer_forward.11} parent=5 // pred_check
        %p328 = pneg %p327
      $region46: #{mask_transformer_forward.11} parent=5 // pred_check_branch
        %330 = sbr.rel (%p328) target = $region48
      $region47: #{mask_transformer_forward.11} parent=5 // pred_region
        // Predicated region
        $region49: #{mask_transformer_forward.11} parent=47 // pred_check
          %p331 = pneg %p59
        $region50: #{mask_transformer_forward.11} parent=47 // pred_check_branch
          %333 = sbr.rel (%p331) target = $region52
        $region51: #{mask_transformer_forward.11} parent=47 // pred_region
          %p334 = scmp.lt.s32.totalorder %s25, 1
          %s335 = scalar_select %p334, %s25, 1
          %p336 = scmp.lt.s32.totalorder %s26, 0
          %s337 = scalar_select %p336, %s26, 0
          %s338 = sadd.s32 %s337, %s335
          %s339 = smul.addr %s338, 8
          %s340 = scalar_lea.vmem %s0, %s339
        $region52: #{mask_transformer_forward.11} parent=47 // pred_fallthru
          _
      $region48: #{mask_transformer_forward.11} parent=5 // pred_fallthru
        _
      %p341 = scmp.le.s32.totalorder 1, %s18
      %p342 = scmp.lt.s32.totalorder %s18, 3
      %p343 = pnand %p341, %p342
      %p344 = pneg %p343
      // Predicated region
      $region53: #{mask_transformer_forward.11} parent=5 // pred_check
        _
      $region54: #{mask_transformer_forward.11} parent=5 // pred_check_branch
        %346 = sbr.rel (%p343) target = $region56
      $region55: #{mask_transformer_forward.11} parent=5 // pred_region
        %s347 = ssub.s32 %s18, 1
        %p348 = scmp.lt.s32.totalorder %s28, 1
        %s349 = scalar_select %p348, %s28, 1
        %p350 = scmp.lt.s32.totalorder %s29, 0
        %s351 = scalar_select %p350, %s29, 0
        %s352 = sadd.s32 %s351, %s349
        %s353 = smul.addr %s352, 8
        %s354 = scalar_lea.vmem %s0, %s353
        %p355 = pneg %p65
        %p356 = pneg %p62
        %p357 = scmp.lt.s32.totalorder %s29, 0
        %s358 = scalar_select %p357, %s29, 0
        %p359 = scmp.lt.s32.totalorder %s30, 0
        %s360 = scalar_select %p359, %s30, 0
        %s361 = sadd.s32 %s360, %s358
        %s362 = smul.addr %s361, 8
        %s363 = scalar_lea.vmem %s1, %s362
        %p364 = pneg %p93
        %p365 = pneg %p90
        %p366 = pneg %p114
        %p367 = pneg %p111
        %p368 = pneg %p135
        %p369 = pneg %p132
        %p370 = pneg %p156
        %p371 = pneg %p153
        %p372 = pneg %p177
        %p373 = pneg %p174
        %p374 = pneg %p198
        %p375 = pneg %p195
        %p376 = pneg %p219
        %p377 = pneg %p216
        %s378 = smul.u32 16, %s30
        %p379 = scmp.lt.s32.totalorder %s378, 15
        %s380 = scalar_select %p379, %s378, 15
        %s381 = smul.addr %s380, 4
        %s382 = scalar_lea.vmem %s8, %s381
        %p383 = pneg %p245
        %p384 = pneg %p242
        %p385 = pneg %p275
        %p386 = pneg %p272
        %s387 = sand.u32 %s262, 1
        %s388 = scalar_lea.sflag [#allocation4], %s387
        %s389 = sand.u32 %s262, 1
        %s390 = smul.addr %s389, 8
        %s391 = scalar_lea.vmem [#allocation3], %s390
        %p392 = scmp.lt.s32.totalorder %s28, 1
        %s393 = scalar_select %p392, %s28, 1
        %p394 = scmp.lt.s32.totalorder %s29, 0
        %s395 = scalar_select %p394, %s29, 0
        %s396 = sadd.s32 %s395, %s393
        %s397 = smul.addr %s396, 8
        %s398 = scalar_lea.vmem %s0, %s397
        %p399 = scmp.lt.s32.totalorder %s29, 0
        %s400 = scalar_select %p399, %s29, 0
        %p401 = scmp.lt.s32.totalorder %s30, 0
        %s402 = scalar_select %p401, %s30, 0
        %s403 = sadd.s32 %s402, %s400
        %s404 = smul.addr %s403, 8
        %s405 = scalar_lea.vmem %s1, %s404
        %s406 = smul.u32 16, %s30
        %p407 = scmp.lt.s32.totalorder %s406, 15
        %s408 = scalar_select %p407, %s406, 15
        %s409 = smul.addr %s408, 4
        %s410 = scalar_lea.vmem %s8, %s409
        %s411 = smul.u32 16, %s30
        %p413 = scmp.eq.s32.totalorder %s30, 0
        // Predicated region
        $region57: #{mask_transformer_forward.11} parent=55 // pred_check
          %p414 = pneg %p413
        $region58: #{mask_transformer_forward.11} parent=55 // pred_check_branch
          %416 = sbr.rel (%p414) target = $region60
        $region59: #{mask_transformer_forward.11} parent=55 // pred_region
          %v417 = vld [vmem:[%s398] sm:$0xff]
          %v418 = vld [vmem:[%s2] sm:$0x1]
          %v419 = vld [vmem:[%s3] sm:$0x1]
          %420 = vadd.xlane.f32.xlu0 %v417
          %v421 = vpop.xlane.xlu0 %420
          %v422 = vrcp.pop 128.0
          %v423 = vmul.f32 %v421, %v422
          %v424 = vsub.f32 %v417, %v423
          %v425 = vmul.f32 %v424, %v424
          %426 = vadd.xlane.f32.xlu0 %v425
          %v427 = vpop.xlane.xlu0 %426
          %v428 = vmul.f32 %v427, %v422
          %v429 = vadd.f32 %v428, 1e-12
          %v430 = vrsqrt.pop %v429
          %v431 = vmul.f32 %v424, %v430
          %v433 = vlaneseq
          %v434 = vshrl.u32 %v433, 7
          %v435 = vsub.s32 0, %v434
          %v436 = vrot.slane %v418, %v435
          %v438 = vmul.f32 %v431, %v436
          %v440 = vlaneseq
          %v441 = vshrl.u32 %v440, 7
          %v442 = vsub.s32 0, %v441
          %v443 = vrot.slane %v419, %v442
          %v445 = vadd.f32 %v438, %v443
          %v446 = vpack.c.bf16 %v445, %v445
          %v447 = vld [vmem:[%s4] sm:$0xf]
          %v448 = vld [vmem:[%s4 + $0x4] sm:$0xf]
          %v449 = vld [vmem:[%s4 + $0x8] sm:$0xf]
          %v450 = vld [vmem:[%s4 + $0xc] sm:$0xf]
          %v451 = vld [vmem:[%s4 + $0x10] sm:$0xf]
          %v452 = vld [vmem:[%s4 + $0x14] sm:$0xf]
          %v453 = vld [vmem:[%s4 + $0x18] sm:$0xf]
          %v454 = vld [vmem:[%s4 + $0x1c] sm:$0xf]
          %v455 = vld [vmem:[%s4 + $0x20] sm:$0xf]
          %v456 = vld [vmem:[%s4 + $0x24] sm:$0xf]
          %v457 = vld [vmem:[%s4 + $0x28] sm:$0xf]
          %v458 = vld [vmem:[%s4 + $0x2c] sm:$0xf]
          %v459 = vld [vmem:[%s4 + $0x30] sm:$0xf]
          %v460 = vld [vmem:[%s4 + $0x34] sm:$0xf]
          %v461 = vld [vmem:[%s4 + $0x38] sm:$0xf]
          %v462 = vld [vmem:[%s4 + $0x3c] sm:$0xf]
          %v463 = vld [vmem:[%s5] sm:$0x1]
          %v465 = vlaneseq
          %v466 = vshrl.u32 %v465, 7
          %v467 = vsub.s32 0, %v466
          %v468 = vrot.slane %v463, %v467
          %v486 = vunpack.c.l.b16 %v447
          %v487 = vunpack.c.l.b16 %v448
          %v488 = vunpack.c.l.b16 %v449
          %v489 = vunpack.c.l.b16 %v450
          %v490 = vunpack.c.l.b16 %v451
          %v491 = vunpack.c.l.b16 %v452
          %v492 = vunpack.c.l.b16 %v453
          %v493 = vunpack.c.l.b16 %v454
          %v494 = vunpack.c.l.b16 %v455
          %v495 = vunpack.c.l.b16 %v456
          %v496 = vunpack.c.l.b16 %v457
          %v497 = vunpack.c.l.b16 %v458
          %v498 = vunpack.c.l.b16 %v459
          %v499 = vunpack.c.l.b16 %v460
          %v500 = vunpack.c.l.b16 %v461
          %v501 = vunpack.c.l.b16 %v462
          %v502 = vpack.c.b16 %v487, %v486
          %v503 = vpack.c.b16 %v489, %v488
          %v504 = vpack.c.b16 %v491, %v490
          %v505 = vpack.c.b16 %v493, %v492
          %v506 = vpack.c.b16 %v495, %v494
          %v507 = vpack.c.b16 %v497, %v496
          %v508 = vpack.c.b16 %v499, %v498
          %v509 = vpack.c.b16 %v501, %v500
          %518 = vmatprep.subr.bf16.mxu0 0
          %519 = vmatpush1.bf16.msra.mxu0 %v509
          %520 = vmatprep.subr.bf16.mxu0 0
          %521 = vmatpush1.bf16.msra.mxu0 %v508
          %522 = vmatprep.subr.bf16.mxu0 0
          %523 = vmatpush1.bf16.msra.mxu0 %v507
          %524 = vmatprep.subr.bf16.mxu0 0
          %525 = vmatpush1.bf16.msra.mxu0 %v506
          %526 = vmatprep.subr.bf16.mxu0 0
          %527 = vmatpush1.bf16.msra.mxu0 %v505
          %528 = vmatprep.subr.bf16.mxu0 0
          %529 = vmatpush1.bf16.msra.mxu0 %v504
          %530 = vmatprep.subr.bf16.mxu0 0
          %531 = vmatpush1.bf16.msra.mxu0 %v503
          %532 = vmatprep.subr.bf16.mxu0 0
          %533 = vmatpush1.bf16.msra.mxu0 %v502
          %534 = vmatprep.subr.bf16.mxu0 0
          %535 = vmatpush2.bf16.msra.mxu0 0
          %536 = vmatprep.subr.bf16.mxu0 0
          %537 = vmatpush2.bf16.msra.mxu0 0
          %538 = vmatprep.subr.bf16.mxu0 0
          %539 = vmatpush2.bf16.msra.mxu0 0
          %540 = vmatprep.subr.bf16.mxu0 0
          %541 = vmatpush2.bf16.msra.mxu0 0
          %542 = vmatprep.subr.bf16.mxu0 0
          %543 = vmatpush2.bf16.msra.mxu0 0
          %544 = vmatprep.subr.bf16.mxu0 0
          %545 = vmatpush2.bf16.msra.mxu0 0
          %546 = vmatprep.subr.bf16.mxu0 0
          %547 = vmatpush2.bf16.msra.mxu0 0
          %548 = vmatprep.subr.bf16.mxu0 0
          %549 = vmatpush2.bf16.msra.mxu0 0
          %550 = vmatprep.mubr.bf16.mxu0 0
          %551 = vmatmul.mubr.bf16.gmra.mxu0 %v446
          %v552 = vpop.f32.mrf.mxu0
          %v553 = vadd.f32 %v468, %v552
          %v554 = vpop.f32.mrf.mxu0
          %v555 = vpop.f32.mrf.mxu0
          %v556 = vpop.f32.mrf.mxu0
          %557 = vdwg.mxu0
          %v558 = vmul.f32 %v553, 0.5
          %v559 = vmul.f32 %v553, 0.70710677
          %v560 = verf.f32.pop %v559
          %v561 = vadd.f32 %v560, 1.0
          %v562 = vmul.f32 %v558, %v561
          %v563 = vld [vmem:[%s6] sm:$0x1]
          %v564 = vld [vmem:[%s7] sm:$0x1]
          %565 = vadd.xlane.f32.xlu0 %v562
          %v566 = vpop.xlane.xlu0 %565
          %v567 = vmul.f32 %v566, %v422
          %v568 = vsub.f32 %v562, %v567
          %v569 = vmul.f32 %v568, %v568
          %570 = vadd.xlane.f32.xlu0 %v569
          %v571 = vpop.xlane.xlu0 %570
          %v572 = vmul.f32 %v571, %v422
          %v573 = vadd.f32 %v572, 1e-12
          %v574 = vrsqrt.pop %v573
          %v575 = vmul.f32 %v568, %v574
          %v577 = vlaneseq
          %v578 = vshrl.u32 %v577, 7
          %v579 = vsub.s32 0, %v578
          %v580 = vrot.slane %v563, %v579
          %v582 = vmul.f32 %v575, %v580
          %v584 = vlaneseq
          %v585 = vshrl.u32 %v584, 7
          %v586 = vsub.s32 0, %v585
          %v587 = vrot.slane %v564, %v586
          %v589 = vadd.f32 %v582, %v587
          %590 = vst [vmem:[#allocation2] sm:$0xff] %v589
        $region60: #{mask_transformer_forward.11} parent=55 // pred_fallthru
          _
        %v591 = vld [vmem:[#allocation2] sm:$0xff]
        %v592 = vpack.c.bf16 %v591, %v591
        %v593 = vld [vmem:[%s410] sm:$0xf]
        %v594 = vld [vmem:[%s410 + $0x4] sm:$0xf]
        %v595 = vld [vmem:[%s410 + $0x8] sm:$0xf]
        %v596 = vld [vmem:[%s410 + $0xc] sm:$0xf]
        %v597 = vld [vmem:[%s410 + $0x10] sm:$0xf]
        %v598 = vld [vmem:[%s410 + $0x14] sm:$0xf]
        %v599 = vld [vmem:[%s410 + $0x18] sm:$0xf]
        %v600 = vld [vmem:[%s410 + $0x1c] sm:$0xf]
        %v601 = vld [vmem:[%s410 + $0x20] sm:$0xf]
        %v602 = vld [vmem:[%s410 + $0x24] sm:$0xf]
        %v603 = vld [vmem:[%s410 + $0x28] sm:$0xf]
        %v604 = vld [vmem:[%s410 + $0x2c] sm:$0xf]
        %v605 = vld [vmem:[%s410 + $0x30] sm:$0xf]
        %v606 = vld [vmem:[%s410 + $0x34] sm:$0xf]
        %v607 = vld [vmem:[%s410 + $0x38] sm:$0xf]
        %v608 = vld [vmem:[%s410 + $0x3c] sm:$0xf]
        %v609 = vld [vmem:[%s405] sm:$0xff]
        %v626 = vunpack.c.l.b16 %v593
        %v627 = vunpack.c.l.b16 %v594
        %v628 = vunpack.c.l.b16 %v595
        %v629 = vunpack.c.l.b16 %v596
        %v630 = vunpack.c.l.b16 %v597
        %v631 = vunpack.c.l.b16 %v598
        %v632 = vunpack.c.l.b16 %v599
        %v633 = vunpack.c.l.b16 %v600
        %v634 = vunpack.c.l.b16 %v601
        %v635 = vunpack.c.l.b16 %v602
        %v636 = vunpack.c.l.b16 %v603
        %v637 = vunpack.c.l.b16 %v604
        %v638 = vunpack.c.l.b16 %v605
        %v639 = vunpack.c.l.b16 %v606
        %v640 = vunpack.c.l.b16 %v607
        %v641 = vunpack.c.l.b16 %v608
        %v642 = vpack.c.b16 %v627, %v626
        %v643 = vpack.c.b16 %v629, %v628
        %v644 = vpack.c.b16 %v631, %v630
        %v645 = vpack.c.b16 %v633, %v632
        %v646 = vpack.c.b16 %v635, %v634
        %v647 = vpack.c.b16 %v637, %v636
        %v648 = vpack.c.b16 %v639, %v638
        %v649 = vpack.c.b16 %v641, %v640
        %658 = vmatprep.subr.bf16.mxu0 0
        %659 = vmatpush1.bf16.xpose.msra.mxu0 %v649
        %660 = vmatprep.subr.bf16.mxu0 0
        %661 = vmatpush1.bf16.xpose.msra.mxu0 %v648
        %662 = vmatprep.subr.bf16.mxu0 0
        %663 = vmatpush1.bf16.xpose.msra.mxu0 %v647
        %664 = vmatprep.subr.bf16.mxu0 0
        %665 = vmatpush1.bf16.xpose.msra.mxu0 %v646
        %666 = vmatprep.subr.bf16.mxu0 0
        %667 = vmatpush1.bf16.xpose.msra.mxu0 %v645
        %668 = vmatprep.subr.bf16.mxu0 0
        %669 = vmatpush1.bf16.xpose.msra.mxu0 %v644
        %670 = vmatprep.subr.bf16.mxu0 0
        %671 = vmatpush1.bf16.xpose.msra.mxu0 %v643
        %672 = vmatprep.subr.bf16.mxu0 0
        %673 = vmatpush1.bf16.xpose.msra.mxu0 %v642
        %674 = vmatprep.subr.bf16.mxu0 0
        %675 = vmatpush2.bf16.xpose.msra.mxu0 0
        %676 = vmatprep.subr.bf16.mxu0 0
        %677 = vmatpush2.bf16.xpose.msra.mxu0 0
        %678 = vmatprep.subr.bf16.mxu0 0
        %679 = vmatpush2.bf16.xpose.msra.mxu0 0
        %680 = vmatprep.subr.bf16.mxu0 0
        %681 = vmatpush2.bf16.xpose.msra.mxu0 0
        %682 = vmatprep.subr.bf16.mxu0 0
        %683 = vmatpush2.bf16.xpose.msra.mxu0 0
        %684 = vmatprep.subr.bf16.mxu0 0
        %685 = vmatpush2.bf16.xpose.msra.mxu0 0
        %686 = vmatprep.subr.bf16.mxu0 0
        %687 = vmatpush2.bf16.xpose.msra.mxu0 0
        %688 = vmatprep.subr.bf16.mxu0 0
        %689 = vmatpush2.bf16.xpose.msra.mxu0 0
        %690 = vmatprep.mubr.bf16.mxu0 0
        %691 = vmatmul.mubr.bf16.gmra.mxu0 %v592
        %v692 = vpop.f32.mrf.mxu0
        %v693 = vadd.f32 %v609, %v692
        %v694 = vpop.f32.mrf.mxu0
        %v695 = vpop.f32.mrf.mxu0
        %v696 = vpop.f32.mrf.mxu0
        %697 = vdwg.mxu0
        %698 = vst [vmem:[%s391] sm:$0xff] %v693
        %s699 = sand.u32 %s262, 1
        %s700 = scalar_lea.sflag [#allocation4], %s699
        %s701 = sand.u32 %s262, 1
        %s702 = smul.addr %s701, 8
        %s703 = scalar_lea.vmem [#allocation3], %s702
        // Predicated region
        $region61: #{mask_transformer_forward.11} parent=55 // pred_check
          %p704 = pneg %p272
        $region62: #{mask_transformer_forward.11} parent=55 // pred_check_branch
          %706 = sbr.rel (%p704) target = $region64
        $region63: #{mask_transformer_forward.11} parent=55 // pred_region
          %s708 = ssub.s32 128, 128
          %709 = vsyncadd %s700, %s708
          %s710 = sadd.s32 %s30, %s29
          %s711 = sadd.s32 %s710, %s28
          %s712 = smul.addr %s711, 128
          %s713 = scalar_lea.hbm %s9, %s712
          %s715 = sshll.u32 %s703, 4
          %s716 = int_to_ptr.vmem [resolvable:$true] %s715
          %718 = dma.vmem_to_hbm [thread:$0]  %s716, 128, %s713, %s700
        $region64: #{mask_transformer_forward.11} parent=55 // pred_fallthru
          _
      $region56: #{mask_transformer_forward.11} parent=5 // pred_fallthru
        _
      %p719 = scmp.le.s32.totalorder 2, %s18
      // Predicated region
      $region65: #{mask_transformer_forward.11} parent=5 // pred_check
        %p720 = pneg %p719
      $region66: #{mask_transformer_forward.11} parent=5 // pred_check_branch
        %722 = sbr.rel (%p720) target = $region68
      $region67: #{mask_transformer_forward.11} parent=5 // pred_region
        %s723 = ssub.s32 %s18, 2
        // Predicated region
        $region69: #{mask_transformer_forward.11} parent=67 // pred_check
          %p724 = pneg %p278
        $region70: #{mask_transformer_forward.11} parent=67 // pred_check_branch
          %726 = sbr.rel (%p724) target = $region72
        $region71: #{mask_transformer_forward.11} parent=67 // pred_region
          %s727 = sand.u32 %s263, 1
          %s728 = scalar_lea.sflag [#allocation4], %s727
          %s729 = sand.u32 %s263, 1
          %s730 = smul.addr %s729, 8
          %s731 = scalar_lea.vmem [#allocation3], %s730
          %732 = dma.done %s728, 128
        $region72: #{mask_transformer_forward.11} parent=67 // pred_fallthru
          _
      $region68: #{mask_transformer_forward.11} parent=5 // pred_fallthru
        _
    $region6: #{mask_transformer_forward.11} parent=1 // loop_footer
      %s22 = sadd.s32 1, %s18
    $region7: #{mask_transformer_forward.11} parent=1 // loop_footer_branch
      %17 = sbr.rel target = $region3
    $region8: #{mask_transformer_forward.11} parent=1 // loop_exit
      _
    %733 = vsyncpa [#allocation4], 1
    %s734 = scalar_lea.sflag [#allocation4], 1
    %735 = vsyncpa %s734, 1

</llo_original>
